<compile_context>
chip_gen: v7x
topology: tpu7x:2x2x1
jax: 0.10.0
libtpu: 0.0.40
codegen_flags: <defaults>
</compile_context>

<pallas_src>
from functools import partial

import jax
import jax.numpy as jnp
from jax import lax
from jax.experimental import pallas as pl
from jax.experimental.pallas import tpu as pltpu


def _softmax_lastaxis(x):
    m = jnp.max(x, axis=-1, keepdims=True)
    e = jnp.exp(x - m)
    return e * pl.reciprocal(jnp.sum(e, axis=-1, keepdims=True), approx=True)


def trans_kernel(v_ref, qe_ref, wqp_ref, wco_ref, wg_ref, pk_ref,
                 mvq_ref, mqv_ref, pred_ref, dis_ref, *, B, Lv, Lq, n_co):
    H = v_ref.shape[-1]
    scale = float(H) ** -0.5                       # python constant

    # ---- packed small row-vector params: one (8, 2H) VMEM tile ---------------
    pk = pk_ref[...]
    bqp = pk[0:1, :H]        # q_proj bias               (1, H)
    wfv = pk[1:2, :H]        # v-fusion attention row    (1, H)
    wfq = pk[2:3, :H]        # q-fusion attention row    (1, H)
    bg = pk[3:4, :]          # context-gate bias         (1, 2H)
    wc_v = pk[4:5, :H]       # classifier weights (v half)
    wc_q = pk[4:5, H:]       # classifier weights (q half)
    bc = pk[5:6, 0:1]        # classifier bias           (1, 1)

    v_flat = v_ref[...]      # (B*Lv, H)
    qe_flat = qe_ref[...]    # (B*Lq, Dq)

    # ---- q_proj: single (B*Lq, Dq) @ (Dq, H) MXU matmul ----------------------
    qh_flat = jnp.dot(qe_flat, wqp_ref[...],
                      preferred_element_type=jnp.float32) + bqp          # (B*Lq, H)

    # ---- block-diagonal structure of the cross-batch score matrix (hoisted) --
    mvq = mvq_ref[...]                        # (B*Lv, B*Lq): 1.0 in-block else 0.0
    mqv = mqv_ref[...]                        # (B*Lq, B*Lv)
    bias_vq = (mvq - 1.0) * 1e30              # 0 in-block, -1e30 off-block
    bias_qv = (mqv - 1.0) * 1e30

    # ---- stacked co-attention layers (static unroll, n_co is small) ----------
    v_att = v_flat
    q_att = qh_flat
    sq_acc = jnp.zeros(mvq.shape, jnp.float32)
    for i in range(n_co):
        Ws = wco_ref[i] * scale               # fold 1/sqrt(H) into W once per layer
        vW = jnp.dot(v_att, Ws, preferred_element_type=jnp.float32)      # (B*Lv, H)

        # cross-batch flattened scores; block-diagonal masked softmax
        S = lax.dot_general(vW, q_att, (((1,), (1,)), ((), ())),
                            preferred_element_type=jnp.float32)          # (B*Lv, B*Lq)
        S_T = lax.dot_general(q_att, vW, (((1,), (1,)), ((), ())),
                              preferred_element_type=jnp.float32)        # (B*Lq, B*Lv)

        A_v = _softmax_lastaxis(S + bias_vq)      # off-block probs -> exactly 0
        A_q = _softmax_lastaxis(S_T + bias_qv)

        new_v = jnp.dot(A_v, q_att, preferred_element_type=jnp.float32)  # (B*Lv, H)
        new_q = jnp.dot(A_q, v_att, preferred_element_type=jnp.float32)  # (B*Lq, H)

        sq = S * mvq                              # in-block scores only
        sq_acc = sq_acc + sq * sq                 # single reduce after the loop

        v_att, q_att = new_v, new_q

    # ---- attention fusion: (original, attended) -> pooled vector -------------
    def fuse(orig, att, wf):
        scores = jnp.sum((orig + att) * wf, axis=-1)          # (B, L)
        alpha = _softmax_lastaxis(scores)
        return jnp.sum(alpha[:, :, None] * att, axis=1)       # (B, H)

    v_re = fuse(v_flat.reshape(B, Lv, H), v_att.reshape(B, Lv, H), wfv)
    q_re = fuse(qh_flat.reshape(B, Lq, H), q_att.reshape(B, Lq, H), wfq)

    # ---- context gate (no lane-axis concat: wg pre-split into halves) --------
    gate = jax.nn.sigmoid(
        jnp.dot(v_re, wg_ref[0], preferred_element_type=jnp.float32)
        + jnp.dot(q_re, wg_ref[1], preferred_element_type=jnp.float32)
        + bg)                                                  # (B, 2H)
    gated_v = gate[:, :H] * v_re                               # (B, H)
    gated_q = gate[:, H:] * q_re                               # (B, H)

    # ---- classifier: lane-dense (1, B) prediction row -------------------------
    pred_row = (lax.dot_general(wc_v, gated_v, (((1,), (1,)), ((), ())),
                                preferred_element_type=jnp.float32)
                + lax.dot_general(wc_q, gated_q, (((1,), (1,)), ((), ())),
                                  preferred_element_type=jnp.float32)
                + bc)                                          # (1, B)

    pred_ref[...] = pred_row
    inv_cnt = 1.0 / float(B * Lv * Lq)
    dis_ref[...] = (jnp.sum(sq_acc) * inv_cnt) * jnp.ones((1, 1), jnp.float32)


@partial(jax.jit, static_argnames=("num_choice",))
def trans_model_forward(v, q, q_embed, params, num_choice=5):
    """Mirrors TransModel.forward(v, q, q_embed, labels) -> (pred, disagreement_loss)."""
    B = q.shape[0]
    Lv, H = v.shape[1], v.shape[2]
    Lq, Dq = q_embed.shape[1], q_embed.shape[2]
    n_co = params['wco'].shape[0]
    H2 = 2 * H

    # pack the five tiny row-vector params + scalar bias into one padded VMEM tile
    pk = jnp.zeros((8, H2), jnp.float32)
    pk = pk.at[0, :H].set(params['bqp'][0])
    pk = pk.at[1, :H].set(params['wfv'][0])
    pk = pk.at[2, :H].set(params['wfq'][0])
    pk = pk.at[3, :].set(params['bg'][0])
    pk = pk.at[4, :].set(params['wc'][0])
    pk = pk.at[5, 0].set(params['bc'][0, 0])

    wg_stacked = jnp.stack([params['wg'][:H], params['wg'][H:]], axis=0)   # (2, H, 2H)

    # block-diagonal masks of the cross-batch score matrix (constant-folded by XLA)
    rb = jnp.repeat(jnp.arange(B, dtype=jnp.int32), Lv)
    cb = jnp.repeat(jnp.arange(B, dtype=jnp.int32), Lq)
    mask_vq = (rb[:, None] == cb[None, :]).astype(jnp.float32)             # (B*Lv, B*Lq)
    mask_qv = mask_vq.T                                                    # (B*Lq, B*Lv)

    v_flat = v.reshape(B * Lv, H)
    qe_flat = q_embed.reshape(B * Lq, Dq)

    # advisory cost estimate for XLA scheduling of this latency-bound call
    BLv, BLq = B * Lv, B * Lq
    flops = (2 * BLq * Dq * H
             + n_co * (2 * BLv * H * H + 4 * BLv * BLq * H + 4 * BLv * BLq * H)
             + 4 * B * H * H2 + 4 * B * H)
    transcendentals = n_co * 2 * BLv * BLq + B * (Lv + Lq) + B * H2
    bytes_accessed = 4 * (v_flat.size + qe_flat.size + params['wqp'].size
                          + params['wco'].size + wg_stacked.size + pk.size
                          + mask_vq.size + mask_qv.size + B + 1)

    kernel = partial(trans_kernel, B=B, Lv=Lv, Lq=Lq, n_co=n_co)
    pred_row, dis = pl.pallas_call(
        kernel,
        out_shape=(jax.ShapeDtypeStruct((1, B), jnp.float32),
                   jax.ShapeDtypeStruct((1, 1), jnp.float32)),
        in_specs=[pl.BlockSpec(memory_space=pltpu.MemorySpace.VMEM)] * 8,
        out_specs=(pl.BlockSpec(memory_space=pltpu.MemorySpace.VMEM),
                   pl.BlockSpec(memory_space=pltpu.MemorySpace.VMEM)),
        cost_estimate=pl.CostEstimate(flops=int(flops),
                                      transcendentals=int(transcendentals),
                                      bytes_accessed=int(bytes_accessed)),
    )(v_flat, qe_flat, params['wqp'], params['wco'], wg_stacked, pk,
      mask_vq, mask_qv)

    pred = pred_row.reshape(B // num_choice, num_choice)    # == pred.view(B/5, 5)
    return pred, dis[0, 0]


def trans_model_reference(v, q, q_embed, params, num_choice=5):
    """Pure-JAX reference with identical math, for correctness checking."""
    H = v.shape[-1]
    scale = 1.0 / jnp.sqrt(jnp.float32(H))
    qh = jnp.einsum('bld,dh->blh', q_embed, params['wqp']) + params['bqp'][None]
    v_att, q_att = v, qh
    dis = jnp.zeros((), jnp.float32)
    for i in range(params['wco'].shape[0]):
        S = jnp.einsum('bvh,hk,bqk->bvq', v_att, params['wco'][i], q_att) * scale
        A_v = jax.nn.softmax(S, axis=-1)
        A_q = jax.nn.softmax(S, axis=1)
        new_v = jnp.einsum('bvq,bqh->bvh', A_v, q_att)
        new_q = jnp.einsum('bvq,bvh->bqh', A_q, v_att)
        dis = dis + jnp.mean(S * S)
        v_att, q_att = new_v, new_q

    def fuse(orig, att, wf):
        alpha = jax.nn.softmax(jnp.sum((orig + att) * wf[None], axis=-1), axis=-1)
        return jnp.sum(alpha[:, :, None] * att, axis=1)

    v_re = fuse(v, v_att, params['wfv'])
    q_re = fuse(qh, q_att, params['wfq'])
    logits = jnp.concatenate([v_re, q_re], axis=1)
    gate = jax.nn.sigmoid(logits @ params['wg'] + params['bg'])
    gated = gate * logits
    pred = jnp.sum(gated * params['wc'], axis=-1) + params['bc'][0, 0]
    return pred.reshape(v.shape[0] // num_choice, num_choice), dis


def make_params(key, Dq, H, n_co):
    ks = jax.random.split(key, 8)
    s = 0.1
    return {
        'wqp': s * jax.random.normal(ks[0], (Dq, H), jnp.float32),
        'bqp': s * jax.random.normal(ks[1], (1, H), jnp.float32),
        'wco': s * jax.random.normal(ks[2], (n_co, H, H), jnp.float32),
        'wfv': s * jax.random.normal(ks[3], (1, H), jnp.float32),
        'wfq': s * jax.random.normal(ks[4], (1, H), jnp.float32),
        'wg':  s * jax.random.normal(ks[5], (2 * H, 2 * H), jnp.float32),
        'bg':  s * jax.random.normal(ks[6], (1, 2 * H), jnp.float32),
        'wc':  s * jax.random.normal(ks[7], (1, 2 * H), jnp.float32),
        'bc':  jnp.zeros((1, 1), jnp.float32),
    }


if __name__ == "__main__":
    num_choice = 5
    n_group = 2                 # number of questions
    B = n_group * num_choice    # flattened batch (question x choice), as in evaluate()
    Lv, Lq = 8, 8               # video regions / question tokens
    Dq, H = 16, 32              # embedding dim / hidden dim
    n_co = 2                    # number of co-attention layers

    key = jax.random.PRNGKey(0)
    kv, kq, ke, kp = jax.random.split(key, 4)
    v = jax.random.normal(kv, (B, Lv, H), jnp.float32)
    q = jax.random.normal(kq, (B, Dq), jnp.float32)        # only shape[0] is consumed
    q_embed = jax.random.normal(ke, (B, Lq, Dq), jnp.float32)
    params = make_params(kp, Dq, H, n_co)

    pred, dis_loss = trans_model_forward(v, q, q_embed, params, num_choice)
    jax.block_until_ready((pred, dis_loss))

    pred_ref, dis_ref = trans_model_reference(v, q, q_embed, params, num_choice)
    assert pred.shape == (n_group, num_choice)
    # tolerance slightly loosened vs 1e-4 because softmax normalizations use the
    # EUP approximate reciprocal (pl.reciprocal(approx=True))
    assert jnp.allclose(pred, pred_ref, atol=2e-3, rtol=2e-3)
    assert jnp.allclose(dis_loss, dis_ref, atol=2e-3, rtol=2e-3)

    print("KERNEL_OK")
</pallas_src>

<mosaic_0001>
module attributes {stable_mosaic.version = 11 : i64} {
  func.func @trans_kernel(%arg0: memref<80x32xf32, #tpu.memory_space<vmem>>, %arg1: memref<80x16xf32, #tpu.memory_space<vmem>>, %arg2: memref<16x32xf32, #tpu.memory_space<vmem>>, %arg3: memref<2x32x32xf32, #tpu.memory_space<vmem>>, %arg4: memref<2x32x64xf32, #tpu.memory_space<vmem>>, %arg5: memref<8x64xf32, #tpu.memory_space<vmem>>, %arg6: memref<80x80xf32, #tpu.memory_space<vmem>>, %arg7: memref<80x80xf32, #tpu.memory_space<vmem>>, %arg8: memref<1x10xf32, #tpu.memory_space<vmem>>, %arg9: memref<1x1xf32, #tpu.memory_space<vmem>>) attributes {dimension_semantics = [], scalar_prefetch = 0 : i64, scratch_operands = 0 : i64, tpu.core_type = #tpu.core_type<tc>} {
    %c0 = arith.constant 0 : index
    %c0_0 = arith.constant 0 : index
    %0 = vector.load %arg5[%c0, %c0_0] : memref<8x64xf32, #tpu.memory_space<vmem>>, vector<8x64xf32>
    %1 = vector.extract_strided_slice %0 {offsets = [0, 0], sizes = [1, 32], strides = [1, 1]} : vector<8x64xf32> to vector<1x32xf32>
    %2 = vector.extract_strided_slice %0 {offsets = [1, 0], sizes = [1, 32], strides = [1, 1]} : vector<8x64xf32> to vector<1x32xf32>
    %3 = vector.extract_strided_slice %0 {offsets = [2, 0], sizes = [1, 32], strides = [1, 1]} : vector<8x64xf32> to vector<1x32xf32>
    %4 = vector.extract_strided_slice %0 {offsets = [3, 0], sizes = [1, 64], strides = [1, 1]} : vector<8x64xf32> to vector<1x64xf32>
    %5 = vector.extract_strided_slice %0 {offsets = [4, 0], sizes = [1, 32], strides = [1, 1]} : vector<8x64xf32> to vector<1x32xf32>
    %6 = vector.extract_strided_slice %0 {offsets = [4, 32], sizes = [1, 32], strides = [1, 1]} : vector<8x64xf32> to vector<1x32xf32>
    %7 = vector.extract_strided_slice %0 {offsets = [5, 0], sizes = [1, 1], strides = [1, 1]} : vector<8x64xf32> to vector<1x1xf32>
    %c0_1 = arith.constant 0 : index
    %c0_2 = arith.constant 0 : index
    %8 = vector.load %arg0[%c0_1, %c0_2] : memref<80x32xf32, #tpu.memory_space<vmem>>, vector<80x32xf32>
    %c0_3 = arith.constant 0 : index
    %c0_4 = arith.constant 0 : index
    %9 = vector.load %arg1[%c0_3, %c0_4] : memref<80x16xf32, #tpu.memory_space<vmem>>, vector<80x16xf32>
    %c0_5 = arith.constant 0 : index
    %c0_6 = arith.constant 0 : index
    %10 = vector.load %arg2[%c0_5, %c0_6] : memref<16x32xf32, #tpu.memory_space<vmem>>, vector<16x32xf32>
    %cst = arith.constant dense<0.000000e+00> : vector<80x32xf32>
    %11 = tpu.matmul %9, %10, %cst {dimension_numbers = #tpu.dot_dimension_numbers<[1], [0], [0], [1], [0, 0, 1, 1], [], []>} : vector<80x16xf32>, vector<16x32xf32>, vector<80x32xf32> -> vector<80x32xf32>
    %12 = vector.broadcast %1 : vector<1x32xf32> to vector<80x32xf32>
    %13 = arith.addf %11, %12 : vector<80x32xf32>
    %c0_7 = arith.constant 0 : index
    %c0_8 = arith.constant 0 : index
    %14 = vector.load %arg6[%c0_7, %c0_8] : memref<80x80xf32, #tpu.memory_space<vmem>>, vector<80x80xf32>
    %c0_9 = arith.constant 0 : index
    %c0_10 = arith.constant 0 : index
    %15 = vector.load %arg7[%c0_9, %c0_10] : memref<80x80xf32, #tpu.memory_space<vmem>>, vector<80x80xf32>
    %cst_11 = arith.constant 1.000000e+00 : f32
    %16 = vector.broadcast %cst_11 : f32 to vector<80x80xf32>
    %17 = arith.subf %14, %16 : vector<80x80xf32>
    %cst_12 = arith.constant 1.000000e+30 : f32
    %18 = vector.broadcast %cst_12 : f32 to vector<80x80xf32>
    %19 = arith.mulf %17, %18 : vector<80x80xf32>
    %cst_13 = arith.constant 1.000000e+00 : f32
    %20 = vector.broadcast %cst_13 : f32 to vector<80x80xf32>
    %21 = arith.subf %15, %20 : vector<80x80xf32>
    %cst_14 = arith.constant 1.000000e+30 : f32
    %22 = vector.broadcast %cst_14 : f32 to vector<80x80xf32>
    %23 = arith.mulf %21, %22 : vector<80x80xf32>
    %cst_15 = arith.constant 0.000000e+00 : f32
    %24 = vector.broadcast %cst_15 : f32 to vector<80x80xf32>
    %c0_16 = arith.constant 0 : index
    %c0_17 = arith.constant 0 : index
    %c0_18 = arith.constant 0 : index
    %25 = vector.load %arg3[%c0_16, %c0_17, %c0_18] : memref<2x32x32xf32, #tpu.memory_space<vmem>>, vector<1x32x32xf32>
    %26 = vector.shape_cast %25 : vector<1x32x32xf32> to vector<32x32xf32>
    %cst_19 = arith.constant 0.176776692 : f32
    %27 = vector.broadcast %cst_19 : f32 to vector<32x32xf32>
    %28 = arith.mulf %26, %27 : vector<32x32xf32>
    %cst_20 = arith.constant dense<0.000000e+00> : vector<80x32xf32>
    %29 = tpu.matmul %8, %28, %cst_20 {dimension_numbers = #tpu.dot_dimension_numbers<[1], [0], [0], [1], [0, 0, 1, 1], [], []>} : vector<80x32xf32>, vector<32x32xf32>, vector<80x32xf32> -> vector<80x32xf32>
    %cst_21 = arith.constant dense<0.000000e+00> : vector<80x80xf32>
    %30 = tpu.matmul %29, %13, %cst_21 {dimension_numbers = #tpu.dot_dimension_numbers<[1], [1], [0], [0], [0, 0, 1, 0], [], []>} : vector<80x32xf32>, vector<80x32xf32>, vector<80x80xf32> -> vector<80x80xf32>
    %cst_22 = arith.constant dense<0.000000e+00> : vector<80x80xf32>
    %31 = tpu.matmul %13, %29, %cst_22 {dimension_numbers = #tpu.dot_dimension_numbers<[1], [1], [0], [0], [0, 0, 1, 0], [], []>} : vector<80x32xf32>, vector<80x32xf32>, vector<80x80xf32> -> vector<80x80xf32>
    %32 = arith.addf %30, %19 : vector<80x80xf32>
    %cst_23 = arith.constant dense<0xFF800000> : vector<80xf32>
    %33 = vector.multi_reduction <maximumf>, %32, %cst_23 [1] : vector<80x80xf32> to vector<80xf32>
    %34 = vector.shape_cast %33 : vector<80xf32> to vector<80x1xf32>
    %35 = vector.broadcast %34 : vector<80x1xf32> to vector<80x80xf32>
    %36 = arith.subf %32, %35 : vector<80x80xf32>
    %37 = math.exp %36 : vector<80x80xf32>
    %cst_24 = arith.constant dense<0.000000e+00> : vector<80xf32>
    %38 = vector.multi_reduction <add>, %37, %cst_24 [1] : vector<80x80xf32> to vector<80xf32>
    %39 = vector.shape_cast %38 : vector<80xf32> to vector<80x1xf32>
    %40 = tpu.reciprocal %39 {approx = true} : vector<80x1xf32> -> vector<80x1xf32>
    %41 = vector.broadcast %40 : vector<80x1xf32> to vector<80x80xf32>
    %42 = arith.mulf %37, %41 : vector<80x80xf32>
    %43 = arith.addf %31, %23 : vector<80x80xf32>
    %cst_25 = arith.constant dense<0xFF800000> : vector<80xf32>
    %44 = vector.multi_reduction <maximumf>, %43, %cst_25 [1] : vector<80x80xf32> to vector<80xf32>
    %45 = vector.shape_cast %44 : vector<80xf32> to vector<80x1xf32>
    %46 = vector.broadcast %45 : vector<80x1xf32> to vector<80x80xf32>
    %47 = arith.subf %43, %46 : vector<80x80xf32>
    %48 = math.exp %47 : vector<80x80xf32>
    %cst_26 = arith.constant dense<0.000000e+00> : vector<80xf32>
    %49 = vector.multi_reduction <add>, %48, %cst_26 [1] : vector<80x80xf32> to vector<80xf32>
    %50 = vector.shape_cast %49 : vector<80xf32> to vector<80x1xf32>
    %51 = tpu.reciprocal %50 {approx = true} : vector<80x1xf32> -> vector<80x1xf32>
    %52 = vector.broadcast %51 : vector<80x1xf32> to vector<80x80xf32>
    %53 = arith.mulf %48, %52 : vector<80x80xf32>
    %cst_27 = arith.constant dense<0.000000e+00> : vector<80x32xf32>
    %54 = tpu.matmul %42, %13, %cst_27 {dimension_numbers = #tpu.dot_dimension_numbers<[1], [0], [0], [1], [0, 0, 1, 1], [], []>} : vector<80x80xf32>, vector<80x32xf32>, vector<80x32xf32> -> vector<80x32xf32>
    %cst_28 = arith.constant dense<0.000000e+00> : vector<80x32xf32>
    %55 = tpu.matmul %53, %8, %cst_28 {dimension_numbers = #tpu.dot_dimension_numbers<[1], [0], [0], [1], [0, 0, 1, 1], [], []>} : vector<80x80xf32>, vector<80x32xf32>, vector<80x32xf32> -> vector<80x32xf32>
    %56 = arith.mulf %30, %14 : vector<80x80xf32>
    %57 = arith.mulf %56, %56 : vector<80x80xf32>
    %58 = arith.addf %24, %57 : vector<80x80xf32>
    %c1 = arith.constant 1 : index
    %c0_29 = arith.constant 0 : index
    %c0_30 = arith.constant 0 : index
    %59 = vector.load %arg3[%c1, %c0_29, %c0_30] : memref<2x32x32xf32, #tpu.memory_space<vmem>>, vector<1x32x32xf32>
    %60 = vector.shape_cast %59 : vector<1x32x32xf32> to vector<32x32xf32>
    %cst_31 = arith.constant 0.176776692 : f32
    %61 = vector.broadcast %cst_31 : f32 to vector<32x32xf32>
    %62 = arith.mulf %60, %61 : vector<32x32xf32>
    %cst_32 = arith.constant dense<0.000000e+00> : vector<80x32xf32>
    %63 = tpu.matmul %54, %62, %cst_32 {dimension_numbers = #tpu.dot_dimension_numbers<[1], [0], [0], [1], [0, 0, 1, 1], [], []>} : vector<80x32xf32>, vector<32x32xf32>, vector<80x32xf32> -> vector<80x32xf32>
    %cst_33 = arith.constant dense<0.000000e+00> : vector<80x80xf32>
    %64 = tpu.matmul %63, %55, %cst_33 {dimension_numbers = #tpu.dot_dimension_numbers<[1], [1], [0], [0], [0, 0, 1, 0], [], []>} : vector<80x32xf32>, vector<80x32xf32>, vector<80x80xf32> -> vector<80x80xf32>
    %cst_34 = arith.constant dense<0.000000e+00> : vector<80x80xf32>
    %65 = tpu.matmul %55, %63, %cst_34 {dimension_numbers = #tpu.dot_dimension_numbers<[1], [1], [0], [0], [0, 0, 1, 0], [], []>} : vector<80x32xf32>, vector<80x32xf32>, vector<80x80xf32> -> vector<80x80xf32>
    %66 = arith.addf %64, %19 : vector<80x80xf32>
    %cst_35 = arith.constant dense<0xFF800000> : vector<80xf32>
    %67 = vector.multi_reduction <maximumf>, %66, %cst_35 [1] : vector<80x80xf32> to vector<80xf32>
    %68 = vector.shape_cast %67 : vector<80xf32> to vector<80x1xf32>
    %69 = vector.broadcast %68 : vector<80x1xf32> to vector<80x80xf32>
    %70 = arith.subf %66, %69 : vector<80x80xf32>
    %71 = math.exp %70 : vector<80x80xf32>
    %cst_36 = arith.constant dense<0.000000e+00> : vector<80xf32>
    %72 = vector.multi_reduction <add>, %71, %cst_36 [1] : vector<80x80xf32> to vector<80xf32>
    %73 = vector.shape_cast %72 : vector<80xf32> to vector<80x1xf32>
    %74 = tpu.reciprocal %73 {approx = true} : vector<80x1xf32> -> vector<80x1xf32>
    %75 = vector.broadcast %74 : vector<80x1xf32> to vector<80x80xf32>
    %76 = arith.mulf %71, %75 : vector<80x80xf32>
    %77 = arith.addf %65, %23 : vector<80x80xf32>
    %cst_37 = arith.constant dense<0xFF800000> : vector<80xf32>
    %78 = vector.multi_reduction <maximumf>, %77, %cst_37 [1] : vector<80x80xf32> to vector<80xf32>
    %79 = vector.shape_cast %78 : vector<80xf32> to vector<80x1xf32>
    %80 = vector.broadcast %79 : vector<80x1xf32> to vector<80x80xf32>
    %81 = arith.subf %77, %80 : vector<80x80xf32>
    %82 = math.exp %81 : vector<80x80xf32>
    %cst_38 = arith.constant dense<0.000000e+00> : vector<80xf32>
    %83 = vector.multi_reduction <add>, %82, %cst_38 [1] : vector<80x80xf32> to vector<80xf32>
    %84 = vector.shape_cast %83 : vector<80xf32> to vector<80x1xf32>
    %85 = tpu.reciprocal %84 {approx = true} : vector<80x1xf32> -> vector<80x1xf32>
    %86 = vector.broadcast %85 : vector<80x1xf32> to vector<80x80xf32>
    %87 = arith.mulf %82, %86 : vector<80x80xf32>
    %cst_39 = arith.constant dense<0.000000e+00> : vector<80x32xf32>
    %88 = tpu.matmul %76, %55, %cst_39 {dimension_numbers = #tpu.dot_dimension_numbers<[1], [0], [0], [1], [0, 0, 1, 1], [], []>} : vector<80x80xf32>, vector<80x32xf32>, vector<80x32xf32> -> vector<80x32xf32>
    %cst_40 = arith.constant dense<0.000000e+00> : vector<80x32xf32>
    %89 = tpu.matmul %87, %54, %cst_40 {dimension_numbers = #tpu.dot_dimension_numbers<[1], [0], [0], [1], [0, 0, 1, 1], [], []>} : vector<80x80xf32>, vector<80x32xf32>, vector<80x32xf32> -> vector<80x32xf32>
    %90 = arith.mulf %64, %14 : vector<80x80xf32>
    %91 = arith.mulf %90, %90 : vector<80x80xf32>
    %92 = arith.addf %58, %91 : vector<80x80xf32>
    %93 = vector.shape_cast %8 : vector<80x32xf32> to vector<10x8x32xf32>
    %94 = vector.shape_cast %88 : vector<80x32xf32> to vector<10x8x32xf32>
    %95 = arith.addf %93, %94 : vector<10x8x32xf32>
    %96 = vector.shape_cast %2 : vector<1x32xf32> to vector<1x1x32xf32>
    %97 = vector.broadcast %96 : vector<1x1x32xf32> to vector<10x8x32xf32>
    %98 = arith.mulf %95, %97 : vector<10x8x32xf32>
    %cst_41 = arith.constant dense<0.000000e+00> : vector<10x8xf32>
    %99 = vector.multi_reduction <add>, %98, %cst_41 [2] : vector<10x8x32xf32> to vector<10x8xf32>
    %cst_42 = arith.constant dense<0xFF800000> : vector<10xf32>
    %100 = vector.multi_reduction <maximumf>, %99, %cst_42 [1] : vector<10x8xf32> to vector<10xf32>
    %101 = vector.shape_cast %100 : vector<10xf32> to vector<10x1xf32>
    %102 = vector.broadcast %101 : vector<10x1xf32> to vector<10x8xf32>
    %103 = arith.subf %99, %102 : vector<10x8xf32>
    %104 = math.exp %103 : vector<10x8xf32>
    %cst_43 = arith.constant dense<0.000000e+00> : vector<10xf32>
    %105 = vector.multi_reduction <add>, %104, %cst_43 [1] : vector<10x8xf32> to vector<10xf32>
    %106 = vector.shape_cast %105 : vector<10xf32> to vector<10x1xf32>
    %107 = tpu.reciprocal %106 {approx = true} : vector<10x1xf32> -> vector<10x1xf32>
    %108 = vector.broadcast %107 : vector<10x1xf32> to vector<10x8xf32>
    %109 = arith.mulf %104, %108 : vector<10x8xf32>
    %110 = vector.shape_cast %109 : vector<10x8xf32> to vector<10x8x1xf32>
    %111 = vector.broadcast %110 : vector<10x8x1xf32> to vector<10x8x32xf32>
    %112 = arith.mulf %111, %94 : vector<10x8x32xf32>
    %cst_44 = arith.constant dense<0.000000e+00> : vector<10x32xf32>
    %113 = vector.multi_reduction <add>, %112, %cst_44 [1] : vector<10x8x32xf32> to vector<10x32xf32>
    %114 = vector.shape_cast %13 : vector<80x32xf32> to vector<10x8x32xf32>
    %115 = vector.shape_cast %89 : vector<80x32xf32> to vector<10x8x32xf32>
    %116 = arith.addf %114, %115 : vector<10x8x32xf32>
    %117 = vector.shape_cast %3 : vector<1x32xf32> to vector<1x1x32xf32>
    %118 = vector.broadcast %117 : vector<1x1x32xf32> to vector<10x8x32xf32>
    %119 = arith.mulf %116, %118 : vector<10x8x32xf32>
    %cst_45 = arith.constant dense<0.000000e+00> : vector<10x8xf32>
    %120 = vector.multi_reduction <add>, %119, %cst_45 [2] : vector<10x8x32xf32> to vector<10x8xf32>
    %cst_46 = arith.constant dense<0xFF800000> : vector<10xf32>
    %121 = vector.multi_reduction <maximumf>, %120, %cst_46 [1] : vector<10x8xf32> to vector<10xf32>
    %122 = vector.shape_cast %121 : vector<10xf32> to vector<10x1xf32>
    %123 = vector.broadcast %122 : vector<10x1xf32> to vector<10x8xf32>
    %124 = arith.subf %120, %123 : vector<10x8xf32>
    %125 = math.exp %124 : vector<10x8xf32>
    %cst_47 = arith.constant dense<0.000000e+00> : vector<10xf32>
    %126 = vector.multi_reduction <add>, %125, %cst_47 [1] : vector<10x8xf32> to vector<10xf32>
    %127 = vector.shape_cast %126 : vector<10xf32> to vector<10x1xf32>
    %128 = tpu.reciprocal %127 {approx = true} : vector<10x1xf32> -> vector<10x1xf32>
    %129 = vector.broadcast %128 : vector<10x1xf32> to vector<10x8xf32>
    %130 = arith.mulf %125, %129 : vector<10x8xf32>
    %131 = vector.shape_cast %130 : vector<10x8xf32> to vector<10x8x1xf32>
    %132 = vector.broadcast %131 : vector<10x8x1xf32> to vector<10x8x32xf32>
    %133 = arith.mulf %132, %115 : vector<10x8x32xf32>
    %cst_48 = arith.constant dense<0.000000e+00> : vector<10x32xf32>
    %134 = vector.multi_reduction <add>, %133, %cst_48 [1] : vector<10x8x32xf32> to vector<10x32xf32>
    %c0_49 = arith.constant 0 : index
    %c0_50 = arith.constant 0 : index
    %c0_51 = arith.constant 0 : index
    %135 = vector.load %arg4[%c0_49, %c0_50, %c0_51] : memref<2x32x64xf32, #tpu.memory_space<vmem>>, vector<1x32x64xf32>
    %136 = vector.shape_cast %135 : vector<1x32x64xf32> to vector<32x64xf32>
    %cst_52 = arith.constant dense<0.000000e+00> : vector<10x64xf32>
    %137 = tpu.matmul %113, %136, %cst_52 {dimension_numbers = #tpu.dot_dimension_numbers<[1], [0], [0], [1], [0, 0, 1, 1], [], []>} : vector<10x32xf32>, vector<32x64xf32>, vector<10x64xf32> -> vector<10x64xf32>
    %c1_53 = arith.constant 1 : index
    %c0_54 = arith.constant 0 : index
    %c0_55 = arith.constant 0 : index
    %138 = vector.load %arg4[%c1_53, %c0_54, %c0_55] : memref<2x32x64xf32, #tpu.memory_space<vmem>>, vector<1x32x64xf32>
    %139 = vector.shape_cast %138 : vector<1x32x64xf32> to vector<32x64xf32>
    %cst_56 = arith.constant dense<0.000000e+00> : vector<10x64xf32>
    %140 = tpu.matmul %134, %139, %cst_56 {dimension_numbers = #tpu.dot_dimension_numbers<[1], [0], [0], [1], [0, 0, 1, 1], [], []>} : vector<10x32xf32>, vector<32x64xf32>, vector<10x64xf32> -> vector<10x64xf32>
    %141 = arith.addf %137, %140 : vector<10x64xf32>
    %142 = vector.broadcast %4 : vector<1x64xf32> to vector<10x64xf32>
    %143 = arith.addf %141, %142 : vector<10x64xf32>
    %144 = arith.negf %143 : vector<10x64xf32>
    %145 = math.exp %144 : vector<10x64xf32>
    %cst_57 = arith.constant 1.000000e+00 : f32
    %146 = vector.broadcast %cst_57 : f32 to vector<10x64xf32>
    %147 = arith.addf %146, %145 : vector<10x64xf32>
    %148 = arith.divf %146, %147 : vector<10x64xf32>
    %149 = vector.extract_strided_slice %148 {offsets = [0, 0], sizes = [10, 32], strides = [1, 1]} : vector<10x64xf32> to vector<10x32xf32>
    %150 = arith.mulf %149, %113 : vector<10x32xf32>
    %151 = vector.extract_strided_slice %148 {offsets = [0, 32], sizes = [10, 32], strides = [1, 1]} : vector<10x64xf32> to vector<10x32xf32>
    %152 = arith.mulf %151, %134 : vector<10x32xf32>
    %cst_58 = arith.constant dense<0.000000e+00> : vector<1x10xf32>
    %153 = tpu.matmul %5, %150, %cst_58 {dimension_numbers = #tpu.dot_dimension_numbers<[1], [1], [0], [0], [0, 0, 1, 0], [], []>} : vector<1x32xf32>, vector<10x32xf32>, vector<1x10xf32> -> vector<1x10xf32>
    %cst_59 = arith.constant dense<0.000000e+00> : vector<1x10xf32>
    %154 = tpu.matmul %6, %152, %cst_59 {dimension_numbers = #tpu.dot_dimension_numbers<[1], [1], [0], [0], [0, 0, 1, 0], [], []>} : vector<1x32xf32>, vector<10x32xf32>, vector<1x10xf32> -> vector<1x10xf32>
    %155 = arith.addf %153, %154 : vector<1x10xf32>
    %156 = vector.broadcast %7 : vector<1x1xf32> to vector<1x10xf32>
    %157 = arith.addf %155, %156 : vector<1x10xf32>
    %c0_60 = arith.constant 0 : index
    %c0_61 = arith.constant 0 : index
    %158 = vector.load %arg8[%c0_60, %c0_61] : memref<1x10xf32, #tpu.memory_space<vmem>>, vector<1x10xf32>
    tpu.vector_store %arg8[%c0_60, %c0_61], %157 {strides = array<i32>} : memref<1x10xf32, #tpu.memory_space<vmem>>, vector<1x10xf32>,
    %159 = vector.shape_cast %92 : vector<80x80xf32> to vector<1x80x80xf32>
    %cst_62 = arith.constant dense<0.000000e+00> : vector<1xf32>
    %160 = vector.multi_reduction <add>, %159, %cst_62 [1, 2] : vector<1x80x80xf32> to vector<1xf32>
    %161 = vector.shape_cast %160 : vector<1xf32> to vector<1x1x1xf32>
    %162 = vector.extract %161[0, 0, 0] : f32 from vector<1x1x1xf32>
    %cst_63 = arith.constant 1.562500e-03 : f32
    %163 = arith.mulf %162, %cst_63 : f32
    %cst_64 = arith.constant 1.000000e+00 : f32
    %164 = vector.broadcast %cst_64 : f32 to vector<1x1xf32>
    %165 = vector.broadcast %163 : f32 to vector<1x1xf32>
    %166 = arith.mulf %165, %164 : vector<1x1xf32>
    %c0_65 = arith.constant 0 : index
    %c0_66 = arith.constant 0 : index
    %167 = vector.load %arg9[%c0_65, %c0_66] : memref<1x1xf32, #tpu.memory_space<vmem>>, vector<1x1xf32>
    tpu.vector_store %arg9[%c0_65, %c0_66], %166 {strides = array<i32>} : memref<1x1xf32, #tpu.memory_space<vmem>>, vector<1x1xf32>,
    return
  }
}

</mosaic_0001>

<llo_original>
// kernel: eq.8
$region0: #{eq.8}
  %s0 = inlined_call_operand.vmem [shape: s32[10,8], index: 0, kind: input, shape index: {}]
  %s1 = inlined_call_operand.vmem [shape: s32[80], index: 1, kind: output, shape index: {}]
  $region1: #{eq.8} parent=0
    #allocation0 [shape = 'u8[4096]{0}', space=vmem, size = 0x1000, scoped, tag = 'scoped mem for output reshape']
    %v2 = vld [vmem:[%s0] sm:$0x1]
    %vm3 = vcmask 64512
    %4 = vst.msk [vmem:[#allocation0] sm:$0x1] %vm3, %v2
    %s5 = scalar_lea.vmem %s0, 9
    %v6 = vld [vmem:[%s5] sm:$0x1]
    %7 = vrot.lane.b32.xlu0 %v6, 72
    %v8 = vpop.permute.xlu0 %7
    %vm9 = vcmask 654912
    %10 = vst.msk [vmem:[#allocation0] sm:$0x1] %vm9, %v8
    %s11 = scalar_lea.vmem %s0, 8
    %v12 = vld [vmem:[%s11] sm:$0x1]
    %13 = vrot.lane.b32.xlu0 %v12, 64
    %v14 = vpop.permute.xlu0 %13
    %vm15 = vcmask 589312
    %16 = vst.msk [vmem:[#allocation0] sm:$0x1] %vm15, %v14
    %s17 = scalar_lea.vmem %s0, 7
    %v18 = vld [vmem:[%s17] sm:$0x1]
    %19 = vrot.lane.b32.xlu0 %v18, 56
    %v20 = vpop.permute.xlu0 %19
    %vm21 = vcmask 523712
    %22 = vst.msk [vmem:[#allocation0] sm:$0x1] %vm21, %v20
    %s23 = scalar_lea.vmem %s0, 6
    %v24 = vld [vmem:[%s23] sm:$0x1]
    %25 = vrot.lane.b32.xlu0 %v24, 48
    %v26 = vpop.permute.xlu0 %25
    %vm27 = vcmask 458112
    %28 = vst.msk [vmem:[#allocation0] sm:$0x1] %vm27, %v26
    %s29 = scalar_lea.vmem %s0, 5
    %v30 = vld [vmem:[%s29] sm:$0x1]
    %31 = vrot.lane.b32.xlu0 %v30, 40
    %v32 = vpop.permute.xlu0 %31
    %vm33 = vcmask 392512
    %34 = vst.msk [vmem:[#allocation0] sm:$0x1] %vm33, %v32
    %s35 = scalar_lea.vmem %s0, 4
    %v36 = vld [vmem:[%s35] sm:$0x1]
    %37 = vrot.lane.b32.xlu0 %v36, 32
    %v38 = vpop.permute.xlu0 %37
    %vm39 = vcmask 326912
    %40 = vst.msk [vmem:[#allocation0] sm:$0x1] %vm39, %v38
    %s41 = scalar_lea.vmem %s0, 3
    %v42 = vld [vmem:[%s41] sm:$0x1]
    %43 = vrot.lane.b32.xlu0 %v42, 24
    %v44 = vpop.permute.xlu0 %43
    %vm45 = vcmask 261312
    %46 = vst.msk [vmem:[#allocation0] sm:$0x1] %vm45, %v44
    %s47 = scalar_lea.vmem %s0, 2
    %v48 = vld [vmem:[%s47] sm:$0x1]
    %49 = vrot.lane.b32.xlu0 %v48, 16
    %v50 = vpop.permute.xlu0 %49
    %vm51 = vcmask 195712
    %52 = vst.msk [vmem:[#allocation0] sm:$0x1] %vm51, %v50
    %s53 = scalar_lea.vmem %s0, 1
    %v54 = vld [vmem:[%s53] sm:$0x1]
    %55 = vrot.lane.b32.xlu0 %v54, 8
    %v56 = vpop.permute.xlu0 %55
    %vm57 = vcmask 130112
    %58 = vst.msk [vmem:[#allocation0] sm:$0x1] %vm57, %v56
    %s60 = sshllo.u32 0, 1
    %v62 = vld [vmem:[#allocation0] sm:%s60]
    %s63 = sshllo.u32 0, 1
    %64 = vst [vmem:[%s1] sm:%s63] %v62

// kernel: trans_model_forward.1
$region0: #{trans_model_forward.1}
  #allocation0 [shape = 'u32[]', space=smem, size = 0x4, offset = 0x4, fixed_abs, tag = 'smem constant byte address 0x4 - core index']
  #allocation1 [shape = 'u32[144,128]{1,0:T(1,128)}', space=vmem, size = 0x12000, scoped, tag = 'internal scratch']
  %s0 = inlined_call_operand.vmem [shape: f32[80,32], index: 0, kind: input, shape index: {}]
  %s1 = inlined_call_operand.vmem [shape: f32[80,16], index: 1, kind: input, shape index: {}]
  %s2 = inlined_call_operand.vmem [shape: f32[16,32], index: 2, kind: input, shape index: {}]
  %s3 = inlined_call_operand.vmem [shape: f32[2,32,32], index: 3, kind: input, shape index: {}]
  %s4 = inlined_call_operand.vmem [shape: f32[2,32,64], index: 4, kind: input, shape index: {}]
  %s5 = inlined_call_operand.vmem [shape: f32[8,64], index: 5, kind: input, shape index: {}]
  %s6 = inlined_call_operand.vmem [shape: f32[80,80], index: 6, kind: input, shape index: {}]
  %s7 = inlined_call_operand.vmem [shape: f32[80,80], index: 7, kind: input, shape index: {}]
  %s8 = inlined_call_operand.vmem [shape: f32[1,10], index: 8, kind: output, shape index: {0}]
  %s9 = inlined_call_operand.hbm [shape: f32[1,1], index: 9, kind: output, shape index: {1}]
  %10 = xla_tuple %s8, %s9
  %s11 = sld [smem:[#allocation0]]
  $region50: #{trans_model_forward.1} parent=0
    _
  %s13 = ssub.s32 1, %s11
  %s14 = scalar_select 0, %s13, %s11
  $region1: #{trans_model_forward.1} parent=0
    #allocation2 [shape = 'u8[512]{0}', space=vmem, size = 0x400, scoped, tag = 'output window, operand 1, single buffered']
    #allocation3 [shape = 's32[1]{0}', space=sflag, size = 0x4, scoped, tag = 'scoped memory for trans_model_forward.1']
    %15 = vsyncpa [#allocation3], 0
    // Predicated region
    $region2: #{trans_model_forward.1} parent=1 // pred_check
      _
    $region3: #{trans_model_forward.1} parent=1 // pred_check_branch
      %17 = sbr.rel (0) target = $region5
    $region4: #{trans_model_forward.1} parent=1 // pred_region
      _
    $region5: #{trans_model_forward.1} parent=1 // pred_fallthru
      _
    // Predicated region
    $region6: #{trans_model_forward.1} parent=1 // pred_check
      _
    $region7: #{trans_model_forward.1} parent=1 // pred_check_branch
      %19 = sbr.rel (0) target = $region9
    $region8: #{trans_model_forward.1} parent=1 // pred_region
      _
    $region9: #{trans_model_forward.1} parent=1 // pred_fallthru
      _
    // Predicated region
    $region10: #{trans_model_forward.1} parent=1 // pred_check
      _
    $region11: #{trans_model_forward.1} parent=1 // pred_check_branch
      %21 = sbr.rel (0) target = $region13
    $region12: #{trans_model_forward.1} parent=1 // pred_region
      _
    $region13: #{trans_model_forward.1} parent=1 // pred_fallthru
      _
    // Predicated region
    $region14: #{trans_model_forward.1} parent=1 // pred_check
      _
    $region15: #{trans_model_forward.1} parent=1 // pred_check_branch
      %23 = sbr.rel (0) target = $region17
    $region16: #{trans_model_forward.1} parent=1 // pred_region
      _
    $region17: #{trans_model_forward.1} parent=1 // pred_fallthru
      _
    // Predicated region
    $region18: #{trans_model_forward.1} parent=1 // pred_check
      _
    $region19: #{trans_model_forward.1} parent=1 // pred_check_branch
      %25 = sbr.rel (0) target = $region21
    $region20: #{trans_model_forward.1} parent=1 // pred_region
      _
    $region21: #{trans_model_forward.1} parent=1 // pred_fallthru
      _
    // Predicated region
    $region22: #{trans_model_forward.1} parent=1 // pred_check
      _
    $region23: #{trans_model_forward.1} parent=1 // pred_check_branch
      %27 = sbr.rel (0) target = $region25
    $region24: #{trans_model_forward.1} parent=1 // pred_region
      _
    $region25: #{trans_model_forward.1} parent=1 // pred_fallthru
      _
    // Predicated region
    $region26: #{trans_model_forward.1} parent=1 // pred_check
      _
    $region27: #{trans_model_forward.1} parent=1 // pred_check_branch
      %29 = sbr.rel (0) target = $region29
    $region28: #{trans_model_forward.1} parent=1 // pred_region
      _
    $region29: #{trans_model_forward.1} parent=1 // pred_fallthru
      _
    // Predicated region
    $region30: #{trans_model_forward.1} parent=1 // pred_check
      _
    $region31: #{trans_model_forward.1} parent=1 // pred_check_branch
      %31 = sbr.rel (0) target = $region33
    $region32: #{trans_model_forward.1} parent=1 // pred_region
      _
    $region33: #{trans_model_forward.1} parent=1 // pred_fallthru
      _
    %v32 = vld [vmem:[%s5] sm:$0xff]
    %v33 = vld [vmem:[%s0] sm:$0xff]
    %v34 = vld [vmem:[%s0 + $0x8] sm:$0xff]
    %v35 = vld [vmem:[%s0 + $0x10] sm:$0xff]
    %v36 = vld [vmem:[%s0 + $0x18] sm:$0xff]
    %v37 = vld [vmem:[%s0 + $0x20] sm:$0xff]
    %v38 = vld [vmem:[%s0 + $0x28] sm:$0xff]
    %v39 = vld [vmem:[%s0 + $0x30] sm:$0xff]
    %v40 = vld [vmem:[%s0 + $0x38] sm:$0xff]
    %v41 = vld [vmem:[%s0 + $0x40] sm:$0xff]
    %v42 = vld [vmem:[%s0 + $0x48] sm:$0xff]
    %v43 = vld [vmem:[%s1] sm:$0xff]
    %v44 = vld [vmem:[%s1 + $0x8] sm:$0xff]
    %v45 = vld [vmem:[%s1 + $0x10] sm:$0xff]
    %v46 = vld [vmem:[%s1 + $0x18] sm:$0xff]
    %v47 = vld [vmem:[%s1 + $0x20] sm:$0xff]
    %v48 = vld [vmem:[%s1 + $0x28] sm:$0xff]
    %v49 = vld [vmem:[%s1 + $0x30] sm:$0xff]
    %v50 = vld [vmem:[%s1 + $0x38] sm:$0xff]
    %v51 = vld [vmem:[%s1 + $0x40] sm:$0xff]
    %v52 = vld [vmem:[%s1 + $0x48] sm:$0xff]
    %v53 = vld [vmem:[%s2] sm:$0xff]
    %v54 = vld [vmem:[%s2 + $0x8] sm:$0xff]
    %v55 = vlaneseq
    %v56 = vshrl.u32 %v55, 7
    %v57 = vsub.s32 0, %v56
    %v58 = vrot.slane %v32, %v57
    %vm59 = vcmask 130048
    %v61 = vsel %vm59, %v43, 0
    %v64 = vsel %vm59, %v44, 0
    %v67 = vsel %vm59, %v45, 0
    %v70 = vsel %vm59, %v46, 0
    %v73 = vsel %vm59, %v47, 0
    %v76 = vsel %vm59, %v48, 0
    %v79 = vsel %vm59, %v49, 0
    %v82 = vsel %vm59, %v50, 0
    %v85 = vsel %vm59, %v51, 0
    %v88 = vsel %vm59, %v52, 0
    %90 = vmatprep.subr.mxu0 0.0
    %91 = vmatpush1.msra.mxu0 %v53
    %92 = vmatprep.subr.mxu0 0.0
    %93 = vmatpush1.msra.mxu0 %v54
    %94 = vmatprep.subr.mxu0 0.0
    %95 = vmatpush1.msra.mxu0 0.0
    %96 = vmatprep.subr.mxu0 0.0
    %97 = vmatpush1.msra.mxu0 0.0
    %98 = vmatprep.subr.mxu0 0.0
    %99 = vmatpush1.msra.mxu0 0.0
    %100 = vmatprep.subr.mxu0 0.0
    %101 = vmatpush1.msra.mxu0 0.0
    %102 = vmatprep.subr.mxu0 0.0
    %103 = vmatpush1.msra.mxu0 0.0
    %104 = vmatprep.subr.mxu0 0.0
    %105 = vmatpush1.msra.mxu0 0.0
    %106 = vmatprep.subr.mxu0 0.0
    %107 = vmatpush1.msra.mxu0 0.0
    %108 = vmatprep.subr.mxu0 0.0
    %109 = vmatpush1.msra.mxu0 0.0
    %110 = vmatprep.subr.mxu0 0.0
    %111 = vmatpush1.msra.mxu0 0.0
    %112 = vmatprep.subr.mxu0 0.0
    %113 = vmatpush1.msra.mxu0 0.0
    %114 = vmatprep.subr.mxu0 0.0
    %115 = vmatpush1.msra.mxu0 0.0
    %116 = vmatprep.subr.mxu0 0.0
    %117 = vmatpush1.msra.mxu0 0.0
    %118 = vmatprep.subr.mxu0 0.0
    %119 = vmatpush1.msra.mxu0 0.0
    %120 = vmatprep.subr.mxu0 0.0
    %121 = vmatpush1.msra.mxu0 0.0
    %122 = vmatprep.subr.mxu0 0.0
    %123 = vmatpush1.msra.mxu0 0.0
    %124 = vmatprep.subr.mxu0 0.0
    %125 = vmatpush1.msra.mxu0 0.0
    %126 = vmatprep.subr.mxu0 0.0
    %127 = vmatpush1.msra.mxu0 0.0
    %128 = vmatprep.subr.mxu0 0.0
    %129 = vmatpush1.msra.mxu0 0.0
    %130 = vmatprep.subr.mxu0 0.0
    %131 = vmatpush1.msra.mxu0 0.0
    %132 = vmatprep.subr.mxu0 0.0
    %133 = vmatpush1.msra.mxu0 0.0
    %134 = vmatprep.subr.mxu0 0.0
    %135 = vmatpush1.msra.mxu0 0.0
    %136 = vmatprep.subr.mxu0 0.0
    %137 = vmatpush1.msra.mxu0 0.0
    %138 = vmatprep.subr.mxu0 0.0
    %139 = vmatpush1.msra.mxu0 0.0
    %140 = vmatprep.subr.mxu0 0.0
    %141 = vmatpush1.msra.mxu0 0.0
    %142 = vmatprep.subr.mxu0 0.0
    %143 = vmatpush1.msra.mxu0 0.0
    %144 = vmatprep.subr.mxu0 0.0
    %145 = vmatpush1.msra.mxu0 0.0
    %146 = vmatprep.subr.mxu0 0.0
    %147 = vmatpush1.msra.mxu0 0.0
    %148 = vmatprep.subr.mxu0 0.0
    %149 = vmatpush1.msra.mxu0 0.0
    %150 = vmatprep.subr.mxu0 0.0
    %151 = vmatpush1.msra.mxu0 0.0
    %152 = vmatprep.subr.mxu0 0.0
    %153 = vmatpush1.msra.mxu0 0.0
    %154 = vmatprep.mubr.f32.mxu0 0.0
    %155 = vmatmul.mubr.f32.gmra.mrb[0].mxu0 %v61
    %v156 = vpop.f32.mrb[0].mxu0
    %v157 = vadd.f32 %v58, %v156
    %v158 = vpop.f32.mrb[0].mxu0
    %159 = vmatprep.mubr.f32.mxu0 0.0
    %160 = vmatmul.mubr.f32.gmra.mrb[0].mxu0 %v64
    %v161 = vpop.f32.mrb[0].mxu0
    %v162 = vadd.f32 %v58, %v161
    %v163 = vpop.f32.mrb[0].mxu0
    %164 = vmatprep.mubr.f32.mxu0 0.0
    %165 = vmatmul.mubr.f32.gmra.mrb[0].mxu0 %v67
    %v166 = vpop.f32.mrb[0].mxu0
    %v167 = vadd.f32 %v58, %v166
    %v168 = vpop.f32.mrb[0].mxu0
    %169 = vmatprep.mubr.f32.mxu0 0.0
    %170 = vmatmul.mubr.f32.gmra.mrb[0].mxu0 %v70
    %v171 = vpop.f32.mrb[0].mxu0
    %v172 = vadd.f32 %v58, %v171
    %v173 = vpop.f32.mrb[0].mxu0
    %174 = vmatprep.mubr.f32.mxu0 0.0
    %175 = vmatmul.mubr.f32.gmra.mrb[0].mxu0 %v73
    %v176 = vpop.f32.mrb[0].mxu0
    %v177 = vadd.f32 %v58, %v176
    %v178 = vpop.f32.mrb[0].mxu0
    %179 = vmatprep.mubr.f32.mxu0 0.0
    %180 = vmatmul.mubr.f32.gmra.mrb[0].mxu0 %v76
    %v181 = vpop.f32.mrb[0].mxu0
    %v182 = vadd.f32 %v58, %v181
    %v183 = vpop.f32.mrb[0].mxu0
    %184 = vmatprep.mubr.f32.mxu0 0.0
    %185 = vmatmul.mubr.f32.gmra.mrb[0].mxu0 %v79
    %v186 = vpop.f32.mrb[0].mxu0
    %v187 = vadd.f32 %v58, %v186
    %v188 = vpop.f32.mrb[0].mxu0
    %189 = vmatprep.mubr.f32.mxu0 0.0
    %190 = vmatmul.mubr.f32.gmra.mrb[0].mxu0 %v82
    %v191 = vpop.f32.mrb[0].mxu0
    %v192 = vadd.f32 %v58, %v191
    %v193 = vpop.f32.mrb[0].mxu0
    %194 = vmatprep.mubr.f32.mxu0 0.0
    %195 = vmatmul.mubr.f32.gmra.mrb[0].mxu0 %v85
    %v196 = vpop.f32.mrb[0].mxu0
    %v197 = vadd.f32 %v58, %v196
    %v198 = vpop.f32.mrb[0].mxu0
    %199 = vmatprep.mubr.f32.mxu0 0.0
    %200 = vmatmul.mubr.f32.gmra.mrb[0].mxu0 %v88
    %v201 = vpop.f32.mrb[0].mxu0
    %v202 = vadd.f32 %v58, %v201
    %v203 = vpop.f32.mrb[0].mxu0
    %204 = vdwg.mxu0
    %v205 = vld [vmem:[%s6] sm:$0xff]
    %v206 = vld [vmem:[%s6 + $0x8] sm:$0xff]
    %v207 = vld [vmem:[%s6 + $0x10] sm:$0xff]
    %v208 = vld [vmem:[%s6 + $0x18] sm:$0xff]
    %v209 = vld [vmem:[%s6 + $0x20] sm:$0xff]
    %v210 = vld [vmem:[%s6 + $0x28] sm:$0xff]
    %v211 = vld [vmem:[%s6 + $0x30] sm:$0xff]
    %v212 = vld [vmem:[%s6 + $0x38] sm:$0xff]
    %v213 = vld [vmem:[%s6 + $0x40] sm:$0xff]
    %v214 = vld [vmem:[%s6 + $0x48] sm:$0xff]
    %v215 = vld [vmem:[%s7] sm:$0xff]
    %v216 = vld [vmem:[%s7 + $0x8] sm:$0xff]
    %v217 = vld [vmem:[%s7 + $0x10] sm:$0xff]
    %v218 = vld [vmem:[%s7 + $0x18] sm:$0xff]
    %v219 = vld [vmem:[%s7 + $0x20] sm:$0xff]
    %v220 = vld [vmem:[%s7 + $0x28] sm:$0xff]
    %v221 = vld [vmem:[%s7 + $0x30] sm:$0xff]
    %v222 = vld [vmem:[%s7 + $0x38] sm:$0xff]
    %v223 = vld [vmem:[%s7 + $0x40] sm:$0xff]
    %v224 = vld [vmem:[%s7 + $0x48] sm:$0xff]
    %v225 = vsub.f32 %v205, 1.0
    %v226 = vsub.f32 %v206, 1.0
    %v227 = vsub.f32 %v207, 1.0
    %v228 = vsub.f32 %v208, 1.0
    %v229 = vsub.f32 %v209, 1.0
    %v230 = vsub.f32 %v210, 1.0
    %v231 = vsub.f32 %v211, 1.0
    %v232 = vsub.f32 %v212, 1.0
    %v233 = vsub.f32 %v213, 1.0
    %v234 = vsub.f32 %v214, 1.0
    %v235 = vmul.f32 %v225, 1e+30
    %v236 = vmul.f32 %v226, 1e+30
    %v237 = vmul.f32 %v227, 1e+30
    %v238 = vmul.f32 %v228, 1e+30
    %v239 = vmul.f32 %v229, 1e+30
    %v240 = vmul.f32 %v230, 1e+30
    %v241 = vmul.f32 %v231, 1e+30
    %v242 = vmul.f32 %v232, 1e+30
    %v243 = vmul.f32 %v233, 1e+30
    %v244 = vmul.f32 %v234, 1e+30
    %v245 = vsub.f32 %v215, 1.0
    %v246 = vsub.f32 %v216, 1.0
    %v247 = vsub.f32 %v217, 1.0
    %v248 = vsub.f32 %v218, 1.0
    %v249 = vsub.f32 %v219, 1.0
    %v250 = vsub.f32 %v220, 1.0
    %v251 = vsub.f32 %v221, 1.0
    %v252 = vsub.f32 %v222, 1.0
    %v253 = vsub.f32 %v223, 1.0
    %v254 = vsub.f32 %v224, 1.0
    %v255 = vmul.f32 %v245, 1e+30
    %v256 = vmul.f32 %v246, 1e+30
    %v257 = vmul.f32 %v247, 1e+30
    %v258 = vmul.f32 %v248, 1e+30
    %v259 = vmul.f32 %v249, 1e+30
    %v260 = vmul.f32 %v250, 1e+30
    %v261 = vmul.f32 %v251, 1e+30
    %v262 = vmul.f32 %v252, 1e+30
    %v263 = vmul.f32 %v253, 1e+30
    %v264 = vmul.f32 %v254, 1e+30
    %v265 = vld [vmem:[%s3] sm:$0xff]
    %v266 = vld [vmem:[%s3 + $0x8] sm:$0xff]
    %v267 = vld [vmem:[%s3 + $0x10] sm:$0xff]
    %v268 = vld [vmem:[%s3 + $0x18] sm:$0xff]
    %v269 = vmul.f32 %v265, 0.17677669
    %v270 = vmul.f32 %v266, 0.17677669
    %v271 = vmul.f32 %v267, 0.17677669
    %v272 = vmul.f32 %v268, 0.17677669
    %vm273 = vcmask 261120
    %v275 = vsel %vm273, %v33, 0
    %v278 = vsel %vm273, %v34, 0
    %v281 = vsel %vm273, %v35, 0
    %v284 = vsel %vm273, %v36, 0
    %v287 = vsel %vm273, %v37, 0
    %v290 = vsel %vm273, %v38, 0
    %v293 = vsel %vm273, %v39, 0
    %v296 = vsel %vm273, %v40, 0
    %v299 = vsel %vm273, %v41, 0
    %v302 = vsel %vm273, %v42, 0
    %304 = vmatprep.subr.mxu0 0.0
    %305 = vmatpush1.msra.mxu0 %v269
    %306 = vmatprep.subr.mxu0 0.0
    %307 = vmatpush1.msra.mxu0 %v270
    %308 = vmatprep.subr.mxu0 0.0
    %309 = vmatpush1.msra.mxu0 %v271
    %310 = vmatprep.subr.mxu0 0.0
    %311 = vmatpush1.msra.mxu0 %v272
    %312 = vmatprep.subr.mxu0 0.0
    %313 = vmatpush1.msra.mxu0 0.0
    %314 = vmatprep.subr.mxu0 0.0
    %315 = vmatpush1.msra.mxu0 0.0
    %316 = vmatprep.subr.mxu0 0.0
    %317 = vmatpush1.msra.mxu0 0.0
    %318 = vmatprep.subr.mxu0 0.0
    %319 = vmatpush1.msra.mxu0 0.0
    %320 = vmatprep.subr.mxu0 0.0
    %321 = vmatpush1.msra.mxu0 0.0
    %322 = vmatprep.subr.mxu0 0.0
    %323 = vmatpush1.msra.mxu0 0.0
    %324 = vmatprep.subr.mxu0 0.0
    %325 = vmatpush1.msra.mxu0 0.0
    %326 = vmatprep.subr.mxu0 0.0
    %327 = vmatpush1.msra.mxu0 0.0
    %328 = vmatprep.subr.mxu0 0.0
    %329 = vmatpush1.msra.mxu0 0.0
    %330 = vmatprep.subr.mxu0 0.0
    %331 = vmatpush1.msra.mxu0 0.0
    %332 = vmatprep.subr.mxu0 0.0
    %333 = vmatpush1.msra.mxu0 0.0
    %334 = vmatprep.subr.mxu0 0.0
    %335 = vmatpush1.msra.mxu0 0.0
    %336 = vmatprep.subr.mxu0 0.0
    %337 = vmatpush1.msra.mxu0 0.0
    %338 = vmatprep.subr.mxu0 0.0
    %339 = vmatpush1.msra.mxu0 0.0
    %340 = vmatprep.subr.mxu0 0.0
    %341 = vmatpush1.msra.mxu0 0.0
    %342 = vmatprep.subr.mxu0 0.0
    %343 = vmatpush1.msra.mxu0 0.0
    %344 = vmatprep.subr.mxu0 0.0
    %345 = vmatpush1.msra.mxu0 0.0
    %346 = vmatprep.subr.mxu0 0.0
    %347 = vmatpush1.msra.mxu0 0.0
    %348 = vmatprep.subr.mxu0 0.0
    %349 = vmatpush1.msra.mxu0 0.0
    %350 = vmatprep.subr.mxu0 0.0
    %351 = vmatpush1.msra.mxu0 0.0
    %352 = vmatprep.subr.mxu0 0.0
    %353 = vmatpush1.msra.mxu0 0.0
    %354 = vmatprep.subr.mxu0 0.0
    %355 = vmatpush1.msra.mxu0 0.0
    %356 = vmatprep.subr.mxu0 0.0
    %357 = vmatpush1.msra.mxu0 0.0
    %358 = vmatprep.subr.mxu0 0.0
    %359 = vmatpush1.msra.mxu0 0.0
    %360 = vmatprep.subr.mxu0 0.0
    %361 = vmatpush1.msra.mxu0 0.0
    %362 = vmatprep.subr.mxu0 0.0
    %363 = vmatpush1.msra.mxu0 0.0
    %364 = vmatprep.subr.mxu0 0.0
    %365 = vmatpush1.msra.mxu0 0.0
    %366 = vmatprep.subr.mxu0 0.0
    %367 = vmatpush1.msra.mxu0 0.0
    %368 = vmatprep.mubr.f32.mxu0 0.0
    %369 = vmatmul.mubr.f32.gmra.mrb[0].mxu0 %v275
    %v370 = vpop.f32.mrb[0].mxu0
    %v371 = vadd.f32 0.0, %v370
    %v372 = vpop.f32.mrb[0].mxu0
    %373 = vmatprep.mubr.f32.mxu0 0.0
    %374 = vmatmul.mubr.f32.gmra.mrb[0].mxu0 %v278
    %v375 = vpop.f32.mrb[0].mxu0
    %v376 = vadd.f32 0.0, %v375
    %v377 = vpop.f32.mrb[0].mxu0
    %378 = vmatprep.mubr.f32.mxu0 0.0
    %379 = vmatmul.mubr.f32.gmra.mrb[0].mxu0 %v281
    %v380 = vpop.f32.mrb[0].mxu0
    %v381 = vadd.f32 0.0, %v380
    %v382 = vpop.f32.mrb[0].mxu0
    %383 = vmatprep.mubr.f32.mxu0 0.0
    %384 = vmatmul.mubr.f32.gmra.mrb[0].mxu0 %v284
    %v385 = vpop.f32.mrb[0].mxu0
    %v386 = vadd.f32 0.0, %v385
    %v387 = vpop.f32.mrb[0].mxu0
    %388 = vmatprep.mubr.f32.mxu0 0.0
    %389 = vmatmul.mubr.f32.gmra.mrb[0].mxu0 %v287
    %v390 = vpop.f32.mrb[0].mxu0
    %v391 = vadd.f32 0.0, %v390
    %v392 = vpop.f32.mrb[0].mxu0
    %393 = vmatprep.mubr.f32.mxu0 0.0
    %394 = vmatmul.mubr.f32.gmra.mrb[0].mxu0 %v290
    %v395 = vpop.f32.mrb[0].mxu0
    %v396 = vadd.f32 0.0, %v395
    %v397 = vpop.f32.mrb[0].mxu0
    %398 = vmatprep.mubr.f32.mxu0 0.0
    %399 = vmatmul.mubr.f32.gmra.mrb[0].mxu0 %v293
    %v400 = vpop.f32.mrb[0].mxu0
    %v401 = vadd.f32 0.0, %v400
    %v402 = vpop.f32.mrb[0].mxu0
    %403 = vmatprep.mubr.f32.mxu0 0.0
    %404 = vmatmul.mubr.f32.gmra.mrb[0].mxu0 %v296
    %v405 = vpop.f32.mrb[0].mxu0
    %v406 = vadd.f32 0.0, %v405
    %v407 = vpop.f32.mrb[0].mxu0
    %408 = vmatprep.mubr.f32.mxu0 0.0
    %409 = vmatmul.mubr.f32.gmra.mrb[0].mxu0 %v299
    %v410 = vpop.f32.mrb[0].mxu0
    %v411 = vadd.f32 0.0, %v410
    %v412 = vpop.f32.mrb[0].mxu0
    %413 = vmatprep.mubr.f32.mxu0 0.0
    %414 = vmatmul.mubr.f32.gmra.mrb[0].mxu0 %v302
    %v415 = vpop.f32.mrb[0].mxu0
    %v416 = vadd.f32 0.0, %v415
    %v417 = vpop.f32.mrb[0].mxu0
    %418 = vdwg.mxu0
    %v420 = vsel %vm273, %v371, 0
    %v423 = vsel %vm273, %v376, 0
    %v426 = vsel %vm273, %v381, 0
    %v429 = vsel %vm273, %v386, 0
    %v432 = vsel %vm273, %v391, 0
    %v435 = vsel %vm273, %v396, 0
    %v438 = vsel %vm273, %v401, 0
    %v441 = vsel %vm273, %v406, 0
    %v444 = vsel %vm273, %v411, 0
    %v447 = vsel %vm273, %v416, 0
    %v450 = vsel %vm273, %v157, 0
    %v453 = vsel %vm273, %v162, 0
    %v456 = vsel %vm273, %v167, 0
    %v459 = vsel %vm273, %v172, 0
    %v462 = vsel %vm273, %v177, 0
    %v465 = vsel %vm273, %v182, 0
    %v468 = vsel %vm273, %v187, 0
    %v471 = vsel %vm273, %v192, 0
    %v474 = vsel %vm273, %v197, 0
    %v477 = vsel %vm273, %v202, 0
    %479 = vmatprep.subr.mxu0 0.0
    %480 = vmatpush1.xpose.msra.mxu0 %v450
    %481 = vmatprep.subr.mxu0 0.0
    %482 = vmatpush1.xpose.msra.mxu0 %v453
    %483 = vmatprep.subr.mxu0 0.0
    %484 = vmatpush1.xpose.msra.mxu0 %v456
    %485 = vmatprep.subr.mxu0 0.0
    %486 = vmatpush1.xpose.msra.mxu0 %v459
    %487 = vmatprep.subr.mxu0 0.0
    %488 = vmatpush1.xpose.msra.mxu0 %v462
    %489 = vmatprep.subr.mxu0 0.0
    %490 = vmatpush1.xpose.msra.mxu0 %v465
    %491 = vmatprep.subr.mxu0 0.0
    %492 = vmatpush1.xpose.msra.mxu0 %v468
    %493 = vmatprep.subr.mxu0 0.0
    %494 = vmatpush1.xpose.msra.mxu0 %v471
    %495 = vmatprep.subr.mxu0 0.0
    %496 = vmatpush1.xpose.msra.mxu0 %v474
    %497 = vmatprep.subr.mxu0 0.0
    %498 = vmatpush1.xpose.msra.mxu0 %v477
    %499 = vmatprep.subr.mxu0 0.0
    %500 = vmatpush1.xpose.msra.mxu0 0.0
    %501 = vmatprep.subr.mxu0 0.0
    %502 = vmatpush1.xpose.msra.mxu0 0.0
    %503 = vmatprep.subr.mxu0 0.0
    %504 = vmatpush1.xpose.msra.mxu0 0.0
    %505 = vmatprep.subr.mxu0 0.0
    %506 = vmatpush1.xpose.msra.mxu0 0.0
    %507 = vmatprep.subr.mxu0 0.0
    %508 = vmatpush1.xpose.msra.mxu0 0.0
    %509 = vmatprep.subr.mxu0 0.0
    %510 = vmatpush1.xpose.msra.mxu0 0.0
    %511 = vmatprep.subr.mxu0 0.0
    %512 = vmatpush1.xpose.msra.mxu0 0.0
    %513 = vmatprep.subr.mxu0 0.0
    %514 = vmatpush1.xpose.msra.mxu0 0.0
    %515 = vmatprep.subr.mxu0 0.0
    %516 = vmatpush1.xpose.msra.mxu0 0.0
    %517 = vmatprep.subr.mxu0 0.0
    %518 = vmatpush1.xpose.msra.mxu0 0.0
    %519 = vmatprep.subr.mxu0 0.0
    %520 = vmatpush1.xpose.msra.mxu0 0.0
    %521 = vmatprep.subr.mxu0 0.0
    %522 = vmatpush1.xpose.msra.mxu0 0.0
    %523 = vmatprep.subr.mxu0 0.0
    %524 = vmatpush1.xpose.msra.mxu0 0.0
    %525 = vmatprep.subr.mxu0 0.0
    %526 = vmatpush1.xpose.msra.mxu0 0.0
    %527 = vmatprep.subr.mxu0 0.0
    %528 = vmatpush1.xpose.msra.mxu0 0.0
    %529 = vmatprep.subr.mxu0 0.0
    %530 = vmatpush1.xpose.msra.mxu0 0.0
    %531 = vmatprep.subr.mxu0 0.0
    %532 = vmatpush1.xpose.msra.mxu0 0.0
    %533 = vmatprep.subr.mxu0 0.0
    %534 = vmatpush1.xpose.msra.mxu0 0.0
    %535 = vmatprep.subr.mxu0 0.0
    %536 = vmatpush1.xpose.msra.mxu0 0.0
    %537 = vmatprep.subr.mxu0 0.0
    %538 = vmatpush1.xpose.msra.mxu0 0.0
    %539 = vmatprep.subr.mxu0 0.0
    %540 = vmatpush1.xpose.msra.mxu0 0.0
    %541 = vmatprep.subr.mxu0 0.0
    %542 = vmatpush1.xpose.msra.mxu0 0.0
    %543 = vmatprep.mubr.f32.mxu0 0.0
    %544 = vmatmul.mubr.f32.gmra.mrb[0].mxu0 %v420
    %v545 = vpop.f32.mrb[0].mxu0
    %v546 = vadd.f32 0.0, %v545
    %v547 = vpop.f32.mrb[0].mxu0
    %548 = vmatprep.mubr.f32.mxu0 0.0
    %549 = vmatmul.mubr.f32.gmra.mrb[0].mxu0 %v423
    %v550 = vpop.f32.mrb[0].mxu0
    %v551 = vadd.f32 0.0, %v550
    %v552 = vpop.f32.mrb[0].mxu0
    %553 = vmatprep.mubr.f32.mxu0 0.0
    %554 = vmatmul.mubr.f32.gmra.mrb[0].mxu0 %v426
    %v555 = vpop.f32.mrb[0].mxu0
    %v556 = vadd.f32 0.0, %v555
    %v557 = vpop.f32.mrb[0].mxu0
    %558 = vmatprep.mubr.f32.mxu0 0.0
    %559 = vmatmul.mubr.f32.gmra.mrb[0].mxu0 %v429
    %v560 = vpop.f32.mrb[0].mxu0
    %v561 = vadd.f32 0.0, %v560
    %v562 = vpop.f32.mrb[0].mxu0
    %563 = vmatprep.mubr.f32.mxu0 0.0
    %564 = vmatmul.mubr.f32.gmra.mrb[0].mxu0 %v432
    %v565 = vpop.f32.mrb[0].mxu0
    %v566 = vadd.f32 0.0, %v565
    %v567 = vpop.f32.mrb[0].mxu0
    %568 = vmatprep.mubr.f32.mxu0 0.0
    %569 = vmatmul.mubr.f32.gmra.mrb[0].mxu0 %v435
    %v570 = vpop.f32.mrb[0].mxu0
    %v571 = vadd.f32 0.0, %v570
    %v572 = vpop.f32.mrb[0].mxu0
    %573 = vmatprep.mubr.f32.mxu0 0.0
    %574 = vmatmul.mubr.f32.gmra.mrb[0].mxu0 %v438
    %v575 = vpop.f32.mrb[0].mxu0
    %v576 = vadd.f32 0.0, %v575
    %v577 = vpop.f32.mrb[0].mxu0
    %578 = vmatprep.mubr.f32.mxu0 0.0
    %579 = vmatmul.mubr.f32.gmra.mrb[0].mxu0 %v441
    %v580 = vpop.f32.mrb[0].mxu0
    %v581 = vadd.f32 0.0, %v580
    %v582 = vpop.f32.mrb[0].mxu0
    %583 = vmatprep.mubr.f32.mxu0 0.0
    %584 = vmatmul.mubr.f32.gmra.mrb[0].mxu0 %v444
    %v585 = vpop.f32.mrb[0].mxu0
    %v586 = vadd.f32 0.0, %v585
    %v587 = vpop.f32.mrb[0].mxu0
    %588 = vmatprep.mubr.f32.mxu0 0.0
    %589 = vmatmul.mubr.f32.gmra.mrb[0].mxu0 %v447
    %v590 = vpop.f32.mrb[0].mxu0
    %v591 = vadd.f32 0.0, %v590
    %v592 = vpop.f32.mrb[0].mxu0
    %593 = vdwg.mxu0
    %v594 = vadd.f32 %v546, %v235
    %v595 = vadd.f32 %v551, %v236
    %v596 = vadd.f32 %v556, %v237
    %v597 = vadd.f32 %v561, %v238
    %v598 = vadd.f32 %v566, %v239
    %v599 = vadd.f32 %v571, %v240
    %v600 = vadd.f32 %v576, %v241
    %v601 = vadd.f32 %v581, %v242
    %v602 = vadd.f32 %v586, %v243
    %v603 = vadd.f32 %v591, %v244
    %vm604 = vcmask 654336
    %v605 = vsel %vm604, %v594, -inf
    %606 = vmax.xlane.f32.xlu0 %v605
    %v607 = vpop.xlane.xlu0 %606
    %v608 = vsel %vm604, %v595, -inf
    %609 = vmax.xlane.f32.xlu0 %v608
    %v610 = vpop.xlane.xlu0 %609
    %v611 = vsel %vm604, %v596, -inf
    %612 = vmax.xlane.f32.xlu0 %v611
    %v613 = vpop.xlane.xlu0 %612
    %v614 = vsel %vm604, %v597, -inf
    %615 = vmax.xlane.f32.xlu0 %v614
    %v616 = vpop.xlane.xlu0 %615
    %v617 = vsel %vm604, %v598, -inf
    %618 = vmax.xlane.f32.xlu0 %v617
    %v619 = vpop.xlane.xlu0 %618
    %v620 = vsel %vm604, %v599, -inf
    %621 = vmax.xlane.f32.xlu0 %v620
    %v622 = vpop.xlane.xlu0 %621
    %v623 = vsel %vm604, %v600, -inf
    %624 = vmax.xlane.f32.xlu0 %v623
    %v625 = vpop.xlane.xlu0 %624
    %v626 = vsel %vm604, %v601, -inf
    %627 = vmax.xlane.f32.xlu0 %v626
    %v628 = vpop.xlane.xlu0 %627
    %v629 = vsel %vm604, %v602, -inf
    %630 = vmax.xlane.f32.xlu0 %v629
    %v631 = vpop.xlane.xlu0 %630
    %v632 = vsel %vm604, %v603, -inf
    %633 = vmax.xlane.f32.xlu0 %v632
    %v634 = vpop.xlane.xlu0 %633
    %v635 = vsub.f32 %v594, %v607
    %v636 = vsub.f32 %v595, %v610
    %v637 = vsub.f32 %v596, %v613
    %v638 = vsub.f32 %v597, %v616
    %v639 = vsub.f32 %v598, %v619
    %v640 = vsub.f32 %v599, %v622
    %v641 = vsub.f32 %v600, %v625
    %v642 = vsub.f32 %v601, %v628
    %v643 = vsub.f32 %v602, %v631
    %v644 = vsub.f32 %v603, %v634
    %v645 = vmul.f32 %v635, 1.442695
    %v646 = vpow.pop %v645
    %v647 = vmul.f32 %v636, 1.442695
    %v648 = vpow.pop %v647
    %v649 = vmul.f32 %v637, 1.442695
    %v650 = vpow.pop %v649
    %v651 = vmul.f32 %v638, 1.442695
    %v652 = vpow.pop %v651
    %v653 = vmul.f32 %v639, 1.442695
    %v654 = vpow.pop %v653
    %v655 = vmul.f32 %v640, 1.442695
    %v656 = vpow.pop %v655
    %v657 = vmul.f32 %v641, 1.442695
    %v658 = vpow.pop %v657
    %v659 = vmul.f32 %v642, 1.442695
    %v660 = vpow.pop %v659
    %v661 = vmul.f32 %v643, 1.442695
    %v662 = vpow.pop %v661
    %v663 = vmul.f32 %v644, 1.442695
    %v664 = vpow.pop %v663
    %v665 = vsel %vm604, %v646, 0.0
    %666 = vadd.xlane.f32.xlu0 %v665
    %v667 = vpop.xlane.xlu0 %666
    %v668 = vsel %vm604, %v648, 0.0
    %669 = vadd.xlane.f32.xlu0 %v668
    %v670 = vpop.xlane.xlu0 %669
    %v671 = vsel %vm604, %v650, 0.0
    %672 = vadd.xlane.f32.xlu0 %v671
    %v673 = vpop.xlane.xlu0 %672
    %v674 = vsel %vm604, %v652, 0.0
    %675 = vadd.xlane.f32.xlu0 %v674
    %v676 = vpop.xlane.xlu0 %675
    %v677 = vsel %vm604, %v654, 0.0
    %678 = vadd.xlane.f32.xlu0 %v677
    %v679 = vpop.xlane.xlu0 %678
    %v680 = vsel %vm604, %v656, 0.0
    %681 = vadd.xlane.f32.xlu0 %v680
    %v682 = vpop.xlane.xlu0 %681
    %v683 = vsel %vm604, %v658, 0.0
    %684 = vadd.xlane.f32.xlu0 %v683
    %v685 = vpop.xlane.xlu0 %684
    %v686 = vsel %vm604, %v660, 0.0
    %687 = vadd.xlane.f32.xlu0 %v686
    %v688 = vpop.xlane.xlu0 %687
    %v689 = vsel %vm604, %v662, 0.0
    %690 = vadd.xlane.f32.xlu0 %v689
    %v691 = vpop.xlane.xlu0 %690
    %v692 = vsel %vm604, %v664, 0.0
    %693 = vadd.xlane.f32.xlu0 %v692
    %v694 = vpop.xlane.xlu0 %693
    %v695 = vrcp.pop %v667
    %v696 = vrcp.pop %v670
    %v697 = vrcp.pop %v673
    %v698 = vrcp.pop %v676
    %v699 = vrcp.pop %v679
    %v700 = vrcp.pop %v682
    %v701 = vrcp.pop %v685
    %v702 = vrcp.pop %v688
    %v703 = vrcp.pop %v691
    %v704 = vrcp.pop %v694
    %v705 = vmul.f32 %v646, %v695
    %v706 = vmul.f32 %v648, %v696
    %v707 = vmul.f32 %v650, %v697
    %v708 = vmul.f32 %v652, %v698
    %v709 = vmul.f32 %v654, %v699
    %v710 = vmul.f32 %v656, %v700
    %v711 = vmul.f32 %v658, %v701
    %v712 = vmul.f32 %v660, %v702
    %v713 = vmul.f32 %v662, %v703
    %v714 = vmul.f32 %v664, %v704
    %715 = vmatprep.subr.mxu0 0.0
    %716 = vmatpush1.xpose.msra.mxu0 %v420
    %717 = vmatprep.subr.mxu0 0.0
    %718 = vmatpush1.xpose.msra.mxu0 %v423
    %719 = vmatprep.subr.mxu0 0.0
    %720 = vmatpush1.xpose.msra.mxu0 %v426
    %721 = vmatprep.subr.mxu0 0.0
    %722 = vmatpush1.xpose.msra.mxu0 %v429
    %723 = vmatprep.subr.mxu0 0.0
    %724 = vmatpush1.xpose.msra.mxu0 %v432
    %725 = vmatprep.subr.mxu0 0.0
    %726 = vmatpush1.xpose.msra.mxu0 %v435
    %727 = vmatprep.subr.mxu0 0.0
    %728 = vmatpush1.xpose.msra.mxu0 %v438
    %729 = vmatprep.subr.mxu0 0.0
    %730 = vmatpush1.xpose.msra.mxu0 %v441
    %731 = vmatprep.subr.mxu0 0.0
    %732 = vmatpush1.xpose.msra.mxu0 %v444
    %733 = vmatprep.subr.mxu0 0.0
    %734 = vmatpush1.xpose.msra.mxu0 %v447
    %735 = vmatprep.subr.mxu0 0.0
    %736 = vmatpush1.xpose.msra.mxu0 0.0
    %737 = vmatprep.subr.mxu0 0.0
    %738 = vmatpush1.xpose.msra.mxu0 0.0
    %739 = vmatprep.subr.mxu0 0.0
    %740 = vmatpush1.xpose.msra.mxu0 0.0
    %741 = vmatprep.subr.mxu0 0.0
    %742 = vmatpush1.xpose.msra.mxu0 0.0
    %743 = vmatprep.subr.mxu0 0.0
    %744 = vmatpush1.xpose.msra.mxu0 0.0
    %745 = vmatprep.subr.mxu0 0.0
    %746 = vmatpush1.xpose.msra.mxu0 0.0
    %747 = vmatprep.subr.mxu0 0.0
    %748 = vmatpush1.xpose.msra.mxu0 0.0
    %749 = vmatprep.subr.mxu0 0.0
    %750 = vmatpush1.xpose.msra.mxu0 0.0
    %751 = vmatprep.subr.mxu0 0.0
    %752 = vmatpush1.xpose.msra.mxu0 0.0
    %753 = vmatprep.subr.mxu0 0.0
    %754 = vmatpush1.xpose.msra.mxu0 0.0
    %755 = vmatprep.subr.mxu0 0.0
    %756 = vmatpush1.xpose.msra.mxu0 0.0
    %757 = vmatprep.subr.mxu0 0.0
    %758 = vmatpush1.xpose.msra.mxu0 0.0
    %759 = vmatprep.subr.mxu0 0.0
    %760 = vmatpush1.xpose.msra.mxu0 0.0
    %761 = vmatprep.subr.mxu0 0.0
    %762 = vmatpush1.xpose.msra.mxu0 0.0
    %763 = vmatprep.subr.mxu0 0.0
    %764 = vmatpush1.xpose.msra.mxu0 0.0
    %765 = vmatprep.subr.mxu0 0.0
    %766 = vmatpush1.xpose.msra.mxu0 0.0
    %767 = vmatprep.subr.mxu0 0.0
    %768 = vmatpush1.xpose.msra.mxu0 0.0
    %769 = vmatprep.subr.mxu0 0.0
    %770 = vmatpush1.xpose.msra.mxu0 0.0
    %771 = vmatprep.subr.mxu0 0.0
    %772 = vmatpush1.xpose.msra.mxu0 0.0
    %773 = vmatprep.subr.mxu0 0.0
    %774 = vmatpush1.xpose.msra.mxu0 0.0
    %775 = vmatprep.subr.mxu0 0.0
    %776 = vmatpush1.xpose.msra.mxu0 0.0
    %777 = vmatprep.subr.mxu0 0.0
    %778 = vmatpush1.xpose.msra.mxu0 0.0
    %779 = vmatprep.mubr.f32.mxu0 0.0
    %780 = vmatmul.mubr.f32.gmra.mrb[0].mxu0 %v450
    %v781 = vpop.f32.mrb[0].mxu0
    %v782 = vadd.f32 %v255, %v781
    %v783 = vpop.f32.mrb[0].mxu0
    %784 = vmatprep.mubr.f32.mxu0 0.0
    %785 = vmatmul.mubr.f32.gmra.mrb[0].mxu0 %v453
    %v786 = vpop.f32.mrb[0].mxu0
    %v787 = vadd.f32 %v256, %v786
    %v788 = vpop.f32.mrb[0].mxu0
    %789 = vmatprep.mubr.f32.mxu0 0.0
    %790 = vmatmul.mubr.f32.gmra.mrb[0].mxu0 %v456
    %v791 = vpop.f32.mrb[0].mxu0
    %v792 = vadd.f32 %v257, %v791
    %v793 = vpop.f32.mrb[0].mxu0
    %794 = vmatprep.mubr.f32.mxu0 0.0
    %795 = vmatmul.mubr.f32.gmra.mrb[0].mxu0 %v459
    %v796 = vpop.f32.mrb[0].mxu0
    %v797 = vadd.f32 %v258, %v796
    %v798 = vpop.f32.mrb[0].mxu0
    %799 = vmatprep.mubr.f32.mxu0 0.0
    %800 = vmatmul.mubr.f32.gmra.mrb[0].mxu0 %v462
    %v801 = vpop.f32.mrb[0].mxu0
    %v802 = vadd.f32 %v259, %v801
    %v803 = vpop.f32.mrb[0].mxu0
    %804 = vmatprep.mubr.f32.mxu0 0.0
    %805 = vmatmul.mubr.f32.gmra.mrb[0].mxu0 %v465
    %v806 = vpop.f32.mrb[0].mxu0
    %v807 = vadd.f32 %v260, %v806
    %v808 = vpop.f32.mrb[0].mxu0
    %809 = vmatprep.mubr.f32.mxu0 0.0
    %810 = vmatmul.mubr.f32.gmra.mrb[0].mxu0 %v468
    %v811 = vpop.f32.mrb[0].mxu0
    %v812 = vadd.f32 %v261, %v811
    %v813 = vpop.f32.mrb[0].mxu0
    %814 = vmatprep.mubr.f32.mxu0 0.0
    %815 = vmatmul.mubr.f32.gmra.mrb[0].mxu0 %v471
    %v816 = vpop.f32.mrb[0].mxu0
    %v817 = vadd.f32 %v262, %v816
    %v818 = vpop.f32.mrb[0].mxu0
    %819 = vmatprep.mubr.f32.mxu0 0.0
    %820 = vmatmul.mubr.f32.gmra.mrb[0].mxu0 %v474
    %v821 = vpop.f32.mrb[0].mxu0
    %v822 = vadd.f32 %v263, %v821
    %v823 = vpop.f32.mrb[0].mxu0
    %824 = vmatprep.mubr.f32.mxu0 0.0
    %825 = vmatmul.mubr.f32.gmra.mrb[0].mxu0 %v477
    %v826 = vpop.f32.mrb[0].mxu0
    %v827 = vadd.f32 %v264, %v826
    %v828 = vpop.f32.mrb[0].mxu0
    %829 = vdwg.mxu0
    %v830 = vsel %vm604, %v782, -inf
    %831 = vmax.xlane.f32.xlu0 %v830
    %v832 = vpop.xlane.xlu0 %831
    %v833 = vsel %vm604, %v787, -inf
    %834 = vmax.xlane.f32.xlu0 %v833
    %v835 = vpop.xlane.xlu0 %834
    %v836 = vsel %vm604, %v792, -inf
    %837 = vmax.xlane.f32.xlu0 %v836
    %v838 = vpop.xlane.xlu0 %837
    %v839 = vsel %vm604, %v797, -inf
    %840 = vmax.xlane.f32.xlu0 %v839
    %v841 = vpop.xlane.xlu0 %840
    %v842 = vsel %vm604, %v802, -inf
    %843 = vmax.xlane.f32.xlu0 %v842
    %v844 = vpop.xlane.xlu0 %843
    %v845 = vsel %vm604, %v807, -inf
    %846 = vmax.xlane.f32.xlu0 %v845
    %v847 = vpop.xlane.xlu0 %846
    %v848 = vsel %vm604, %v812, -inf
    %849 = vmax.xlane.f32.xlu0 %v848
    %v850 = vpop.xlane.xlu0 %849
    %v851 = vsel %vm604, %v817, -inf
    %852 = vmax.xlane.f32.xlu0 %v851
    %v853 = vpop.xlane.xlu0 %852
    %v854 = vsel %vm604, %v822, -inf
    %855 = vmax.xlane.f32.xlu0 %v854
    %v856 = vpop.xlane.xlu0 %855
    %v857 = vsel %vm604, %v827, -inf
    %858 = vmax.xlane.f32.xlu0 %v857
    %v859 = vpop.xlane.xlu0 %858
    %v860 = vsub.f32 %v782, %v832
    %v861 = vsub.f32 %v787, %v835
    %v862 = vsub.f32 %v792, %v838
    %v863 = vsub.f32 %v797, %v841
    %v864 = vsub.f32 %v802, %v844
    %v865 = vsub.f32 %v807, %v847
    %v866 = vsub.f32 %v812, %v850
    %v867 = vsub.f32 %v817, %v853
    %v868 = vsub.f32 %v822, %v856
    %v869 = vsub.f32 %v827, %v859
    %v870 = vmul.f32 %v860, 1.442695
    %v871 = vpow.pop %v870
    %v872 = vmul.f32 %v861, 1.442695
    %v873 = vpow.pop %v872
    %v874 = vmul.f32 %v862, 1.442695
    %v875 = vpow.pop %v874
    %v876 = vmul.f32 %v863, 1.442695
    %v877 = vpow.pop %v876
    %v878 = vmul.f32 %v864, 1.442695
    %v879 = vpow.pop %v878
    %v880 = vmul.f32 %v865, 1.442695
    %v881 = vpow.pop %v880
    %v882 = vmul.f32 %v866, 1.442695
    %v883 = vpow.pop %v882
    %v884 = vmul.f32 %v867, 1.442695
    %v885 = vpow.pop %v884
    %v886 = vmul.f32 %v868, 1.442695
    %v887 = vpow.pop %v886
    %v888 = vmul.f32 %v869, 1.442695
    %v889 = vpow.pop %v888
    %v890 = vsel %vm604, %v871, 0.0
    %891 = vadd.xlane.f32.xlu0 %v890
    %v892 = vpop.xlane.xlu0 %891
    %v893 = vsel %vm604, %v873, 0.0
    %894 = vadd.xlane.f32.xlu0 %v893
    %v895 = vpop.xlane.xlu0 %894
    %v896 = vsel %vm604, %v875, 0.0
    %897 = vadd.xlane.f32.xlu0 %v896
    %v898 = vpop.xlane.xlu0 %897
    %v899 = vsel %vm604, %v877, 0.0
    %900 = vadd.xlane.f32.xlu0 %v899
    %v901 = vpop.xlane.xlu0 %900
    %v902 = vsel %vm604, %v879, 0.0
    %903 = vadd.xlane.f32.xlu0 %v902
    %v904 = vpop.xlane.xlu0 %903
    %v905 = vsel %vm604, %v881, 0.0
    %906 = vadd.xlane.f32.xlu0 %v905
    %v907 = vpop.xlane.xlu0 %906
    %v908 = vsel %vm604, %v883, 0.0
    %909 = vadd.xlane.f32.xlu0 %v908
    %v910 = vpop.xlane.xlu0 %909
    %v911 = vsel %vm604, %v885, 0.0
    %912 = vadd.xlane.f32.xlu0 %v911
    %v913 = vpop.xlane.xlu0 %912
    %v914 = vsel %vm604, %v887, 0.0
    %915 = vadd.xlane.f32.xlu0 %v914
    %v916 = vpop.xlane.xlu0 %915
    %v917 = vsel %vm604, %v889, 0.0
    %918 = vadd.xlane.f32.xlu0 %v917
    %v919 = vpop.xlane.xlu0 %918
    %v920 = vrcp.pop %v892
    %v921 = vrcp.pop %v895
    %v922 = vrcp.pop %v898
    %v923 = vrcp.pop %v901
    %v924 = vrcp.pop %v904
    %v925 = vrcp.pop %v907
    %v926 = vrcp.pop %v910
    %v927 = vrcp.pop %v913
    %v928 = vrcp.pop %v916
    %v929 = vrcp.pop %v919
    %v930 = vmul.f32 %v871, %v920
    %v931 = vmul.f32 %v873, %v921
    %v932 = vmul.f32 %v875, %v922
    %v933 = vmul.f32 %v877, %v923
    %v934 = vmul.f32 %v879, %v924
    %v935 = vmul.f32 %v881, %v925
    %v936 = vmul.f32 %v883, %v926
    %v937 = vmul.f32 %v885, %v927
    %v938 = vmul.f32 %v887, %v928
    %v939 = vmul.f32 %v889, %v929
    %v941 = vsel %vm604, %v705, 0
    %v944 = vsel %vm604, %v706, 0
    %v947 = vsel %vm604, %v707, 0
    %v950 = vsel %vm604, %v708, 0
    %v953 = vsel %vm604, %v709, 0
    %v956 = vsel %vm604, %v710, 0
    %v959 = vsel %vm604, %v711, 0
    %v962 = vsel %vm604, %v712, 0
    %v965 = vsel %vm604, %v713, 0
    %v968 = vsel %vm604, %v714, 0
    %970 = vmatprep.subr.mxu0 0.0
    %971 = vmatpush1.msra.mxu0 %v157
    %972 = vmatprep.subr.mxu0 0.0
    %973 = vmatpush1.msra.mxu0 %v162
    %974 = vmatprep.subr.mxu0 0.0
    %975 = vmatpush1.msra.mxu0 %v167
    %976 = vmatprep.subr.mxu0 0.0
    %977 = vmatpush1.msra.mxu0 %v172
    %978 = vmatprep.subr.mxu0 0.0
    %979 = vmatpush1.msra.mxu0 %v177
    %980 = vmatprep.subr.mxu0 0.0
    %981 = vmatpush1.msra.mxu0 %v182
    %982 = vmatprep.subr.mxu0 0.0
    %983 = vmatpush1.msra.mxu0 %v187
    %984 = vmatprep.subr.mxu0 0.0
    %985 = vmatpush1.msra.mxu0 %v192
    %986 = vmatprep.subr.mxu0 0.0
    %987 = vmatpush1.msra.mxu0 %v197
    %988 = vmatprep.subr.mxu0 0.0
    %989 = vmatpush1.msra.mxu0 %v202
    %990 = vmatprep.subr.mxu0 0.0
    %991 = vmatpush1.msra.mxu0 0.0
    %992 = vmatprep.subr.mxu0 0.0
    %993 = vmatpush1.msra.mxu0 0.0
    %994 = vmatprep.subr.mxu0 0.0
    %995 = vmatpush1.msra.mxu0 0.0
    %996 = vmatprep.subr.mxu0 0.0
    %997 = vmatpush1.msra.mxu0 0.0
    %998 = vmatprep.subr.mxu0 0.0
    %999 = vmatpush1.msra.mxu0 0.0
    %1000 = vmatprep.subr.mxu0 0.0
    %1001 = vmatpush1.msra.mxu0 0.0
    %1002 = vmatprep.subr.mxu0 0.0
    %1003 = vmatpush1.msra.mxu0 0.0
    %1004 = vmatprep.subr.mxu0 0.0
    %1005 = vmatpush1.msra.mxu0 0.0
    %1006 = vmatprep.subr.mxu0 0.0
    %1007 = vmatpush1.msra.mxu0 0.0
    %1008 = vmatprep.subr.mxu0 0.0
    %1009 = vmatpush1.msra.mxu0 0.0
    %1010 = vmatprep.subr.mxu0 0.0
    %1011 = vmatpush1.msra.mxu0 0.0
    %1012 = vmatprep.subr.mxu0 0.0
    %1013 = vmatpush1.msra.mxu0 0.0
    %1014 = vmatprep.subr.mxu0 0.0
    %1015 = vmatpush1.msra.mxu0 0.0
    %1016 = vmatprep.subr.mxu0 0.0
    %1017 = vmatpush1.msra.mxu0 0.0
    %1018 = vmatprep.subr.mxu0 0.0
    %1019 = vmatpush1.msra.mxu0 0.0
    %1020 = vmatprep.subr.mxu0 0.0
    %1021 = vmatpush1.msra.mxu0 0.0
    %1022 = vmatprep.subr.mxu0 0.0
    %1023 = vmatpush1.msra.mxu0 0.0
    %1024 = vmatprep.subr.mxu0 0.0
    %1025 = vmatpush1.msra.mxu0 0.0
    %1026 = vmatprep.subr.mxu0 0.0
    %1027 = vmatpush1.msra.mxu0 0.0
    %1028 = vmatprep.subr.mxu0 0.0
    %1029 = vmatpush1.msra.mxu0 0.0
    %1030 = vmatprep.subr.mxu0 0.0
    %1031 = vmatpush1.msra.mxu0 0.0
    %1032 = vmatprep.subr.mxu0 0.0
    %1033 = vmatpush1.msra.mxu0 0.0
    %1034 = vmatprep.mubr.f32.mxu0 0.0
    %1035 = vmatmul.mubr.f32.gmra.mrb[0].mxu0 %v941
    %v1036 = vpop.f32.mrb[0].mxu0
    %v1037 = vadd.f32 0.0, %v1036
    %v1038 = vpop.f32.mrb[0].mxu0
    %1039 = vmatprep.mubr.f32.mxu0 0.0
    %1040 = vmatmul.mubr.f32.gmra.mrb[0].mxu0 %v944
    %v1041 = vpop.f32.mrb[0].mxu0
    %v1042 = vadd.f32 0.0, %v1041
    %v1043 = vpop.f32.mrb[0].mxu0
    %1044 = vmatprep.mubr.f32.mxu0 0.0
    %1045 = vmatmul.mubr.f32.gmra.mrb[0].mxu0 %v947
    %v1046 = vpop.f32.mrb[0].mxu0
    %v1047 = vadd.f32 0.0, %v1046
    %v1048 = vpop.f32.mrb[0].mxu0
    %1049 = vmatprep.mubr.f32.mxu0 0.0
    %1050 = vmatmul.mubr.f32.gmra.mrb[0].mxu0 %v950
    %v1051 = vpop.f32.mrb[0].mxu0
    %v1052 = vadd.f32 0.0, %v1051
    %v1053 = vpop.f32.mrb[0].mxu0
    %1054 = vmatprep.mubr.f32.mxu0 0.0
    %1055 = vmatmul.mubr.f32.gmra.mrb[0].mxu0 %v953
    %v1056 = vpop.f32.mrb[0].mxu0
    %v1057 = vadd.f32 0.0, %v1056
    %v1058 = vpop.f32.mrb[0].mxu0
    %1059 = vmatprep.mubr.f32.mxu0 0.0
    %1060 = vmatmul.mubr.f32.gmra.mrb[0].mxu0 %v956
    %v1061 = vpop.f32.mrb[0].mxu0
    %v1062 = vadd.f32 0.0, %v1061
    %v1063 = vpop.f32.mrb[0].mxu0
    %1064 = vmatprep.mubr.f32.mxu0 0.0
    %1065 = vmatmul.mubr.f32.gmra.mrb[0].mxu0 %v959
    %v1066 = vpop.f32.mrb[0].mxu0
    %v1067 = vadd.f32 0.0, %v1066
    %v1068 = vpop.f32.mrb[0].mxu0
    %1069 = vmatprep.mubr.f32.mxu0 0.0
    %1070 = vmatmul.mubr.f32.gmra.mrb[0].mxu0 %v962
    %v1071 = vpop.f32.mrb[0].mxu0
    %v1072 = vadd.f32 0.0, %v1071
    %v1073 = vpop.f32.mrb[0].mxu0
    %1074 = vmatprep.mubr.f32.mxu0 0.0
    %1075 = vmatmul.mubr.f32.gmra.mrb[0].mxu0 %v965
    %v1076 = vpop.f32.mrb[0].mxu0
    %v1077 = vadd.f32 0.0, %v1076
    %v1078 = vpop.f32.mrb[0].mxu0
    %1079 = vmatprep.mubr.f32.mxu0 0.0
    %1080 = vmatmul.mubr.f32.gmra.mrb[0].mxu0 %v968
    %v1081 = vpop.f32.mrb[0].mxu0
    %v1082 = vadd.f32 0.0, %v1081
    %v1083 = vpop.f32.mrb[0].mxu0
    %1084 = vdwg.mxu0
    %v1086 = vsel %vm604, %v930, 0
    %v1089 = vsel %vm604, %v931, 0
    %v1092 = vsel %vm604, %v932, 0
    %v1095 = vsel %vm604, %v933, 0
    %v1098 = vsel %vm604, %v934, 0
    %v1101 = vsel %vm604, %v935, 0
    %v1104 = vsel %vm604, %v936, 0
    %v1107 = vsel %vm604, %v937, 0
    %v1110 = vsel %vm604, %v938, 0
    %v1113 = vsel %vm604, %v939, 0
    %1115 = vmatprep.subr.mxu0 0.0
    %1116 = vmatpush1.msra.mxu0 %v33
    %1117 = vmatprep.subr.mxu0 0.0
    %1118 = vmatpush1.msra.mxu0 %v34
    %1119 = vmatprep.subr.mxu0 0.0
    %1120 = vmatpush1.msra.mxu0 %v35
    %1121 = vmatprep.subr.mxu0 0.0
    %1122 = vmatpush1.msra.mxu0 %v36
    %1123 = vmatprep.subr.mxu0 0.0
    %1124 = vmatpush1.msra.mxu0 %v37
    %1125 = vmatprep.subr.mxu0 0.0
    %1126 = vmatpush1.msra.mxu0 %v38
    %1127 = vmatprep.subr.mxu0 0.0
    %1128 = vmatpush1.msra.mxu0 %v39
    %1129 = vmatprep.subr.mxu0 0.0
    %1130 = vmatpush1.msra.mxu0 %v40
    %1131 = vmatprep.subr.mxu0 0.0
    %1132 = vmatpush1.msra.mxu0 %v41
    %1133 = vmatprep.subr.mxu0 0.0
    %1134 = vmatpush1.msra.mxu0 %v42
    %1135 = vmatprep.subr.mxu0 0.0
    %1136 = vmatpush1.msra.mxu0 0.0
    %1137 = vmatprep.subr.mxu0 0.0
    %1138 = vmatpush1.msra.mxu0 0.0
    %1139 = vmatprep.subr.mxu0 0.0
    %1140 = vmatpush1.msra.mxu0 0.0
    %1141 = vmatprep.subr.mxu0 0.0
    %1142 = vmatpush1.msra.mxu0 0.0
    %1143 = vmatprep.subr.mxu0 0.0
    %1144 = vmatpush1.msra.mxu0 0.0
    %1145 = vmatprep.subr.mxu0 0.0
    %1146 = vmatpush1.msra.mxu0 0.0
    %1147 = vmatprep.subr.mxu0 0.0
    %1148 = vmatpush1.msra.mxu0 0.0
    %1149 = vmatprep.subr.mxu0 0.0
    %1150 = vmatpush1.msra.mxu0 0.0
    %1151 = vmatprep.subr.mxu0 0.0
    %1152 = vmatpush1.msra.mxu0 0.0
    %1153 = vmatprep.subr.mxu0 0.0
    %1154 = vmatpush1.msra.mxu0 0.0
    %1155 = vmatprep.subr.mxu0 0.0
    %1156 = vmatpush1.msra.mxu0 0.0
    %1157 = vmatprep.subr.mxu0 0.0
    %1158 = vmatpush1.msra.mxu0 0.0
    %1159 = vmatprep.subr.mxu0 0.0
    %1160 = vmatpush1.msra.mxu0 0.0
    %1161 = vmatprep.subr.mxu0 0.0
    %1162 = vmatpush1.msra.mxu0 0.0
    %1163 = vmatprep.subr.mxu0 0.0
    %1164 = vmatpush1.msra.mxu0 0.0
    %1165 = vmatprep.subr.mxu0 0.0
    %1166 = vmatpush1.msra.mxu0 0.0
    %1167 = vmatprep.subr.mxu0 0.0
    %1168 = vmatpush1.msra.mxu0 0.0
    %1169 = vmatprep.subr.mxu0 0.0
    %1170 = vmatpush1.msra.mxu0 0.0
    %1171 = vmatprep.subr.mxu0 0.0
    %1172 = vmatpush1.msra.mxu0 0.0
    %1173 = vmatprep.subr.mxu0 0.0
    %1174 = vmatpush1.msra.mxu0 0.0
    %1175 = vmatprep.subr.mxu0 0.0
    %1176 = vmatpush1.msra.mxu0 0.0
    %1177 = vmatprep.subr.mxu0 0.0
    %1178 = vmatpush1.msra.mxu0 0.0
    %1179 = vmatprep.mubr.f32.mxu0 0.0
    %1180 = vmatmul.mubr.f32.gmra.mrb[0].mxu0 %v1086
    %v1181 = vpop.f32.mrb[0].mxu0
    %v1182 = vadd.f32 0.0, %v1181
    %v1183 = vpop.f32.mrb[0].mxu0
    %1184 = vmatprep.mubr.f32.mxu0 0.0
    %1185 = vmatmul.mubr.f32.gmra.mrb[0].mxu0 %v1089
    %v1186 = vpop.f32.mrb[0].mxu0
    %v1187 = vadd.f32 0.0, %v1186
    %v1188 = vpop.f32.mrb[0].mxu0
    %1189 = vmatprep.mubr.f32.mxu0 0.0
    %1190 = vmatmul.mubr.f32.gmra.mrb[0].mxu0 %v1092
    %v1191 = vpop.f32.mrb[0].mxu0
    %v1192 = vadd.f32 0.0, %v1191
    %v1193 = vpop.f32.mrb[0].mxu0
    %1194 = vmatprep.mubr.f32.mxu0 0.0
    %1195 = vmatmul.mubr.f32.gmra.mrb[0].mxu0 %v1095
    %v1196 = vpop.f32.mrb[0].mxu0
    %v1197 = vadd.f32 0.0, %v1196
    %v1198 = vpop.f32.mrb[0].mxu0
    %1199 = vmatprep.mubr.f32.mxu0 0.0
    %1200 = vmatmul.mubr.f32.gmra.mrb[0].mxu0 %v1098
    %v1201 = vpop.f32.mrb[0].mxu0
    %v1202 = vadd.f32 0.0, %v1201
    %v1203 = vpop.f32.mrb[0].mxu0
    %1204 = vmatprep.mubr.f32.mxu0 0.0
    %1205 = vmatmul.mubr.f32.gmra.mrb[0].mxu0 %v1101
    %v1206 = vpop.f32.mrb[0].mxu0
    %v1207 = vadd.f32 0.0, %v1206
    %v1208 = vpop.f32.mrb[0].mxu0
    %1209 = vmatprep.mubr.f32.mxu0 0.0
    %1210 = vmatmul.mubr.f32.gmra.mrb[0].mxu0 %v1104
    %v1211 = vpop.f32.mrb[0].mxu0
    %v1212 = vadd.f32 0.0, %v1211
    %v1213 = vpop.f32.mrb[0].mxu0
    %1214 = vmatprep.mubr.f32.mxu0 0.0
    %1215 = vmatmul.mubr.f32.gmra.mrb[0].mxu0 %v1107
    %v1216 = vpop.f32.mrb[0].mxu0
    %v1217 = vadd.f32 0.0, %v1216
    %v1218 = vpop.f32.mrb[0].mxu0
    %1219 = vmatprep.mubr.f32.mxu0 0.0
    %1220 = vmatmul.mubr.f32.gmra.mrb[0].mxu0 %v1110
    %v1221 = vpop.f32.mrb[0].mxu0
    %v1222 = vadd.f32 0.0, %v1221
    %v1223 = vpop.f32.mrb[0].mxu0
    %1224 = vmatprep.mubr.f32.mxu0 0.0
    %1225 = vmatmul.mubr.f32.gmra.mrb[0].mxu0 %v1113
    %v1226 = vpop.f32.mrb[0].mxu0
    %v1227 = vadd.f32 0.0, %v1226
    %v1228 = vpop.f32.mrb[0].mxu0
    %1229 = vdwg.mxu0
    %v1230 = vmul.f32 %v546, %v205
    %v1231 = vmul.f32 %v551, %v206
    %v1232 = vmul.f32 %v556, %v207
    %v1233 = vmul.f32 %v561, %v208
    %v1234 = vmul.f32 %v566, %v209
    %v1235 = vmul.f32 %v571, %v210
    %v1236 = vmul.f32 %v576, %v211
    %v1237 = vmul.f32 %v581, %v212
    %v1238 = vmul.f32 %v586, %v213
    %v1239 = vmul.f32 %v591, %v214
    %v1240 = vmul.f32 %v1230, %v1230
    %v1241 = vmul.f32 %v1231, %v1231
    %v1242 = vmul.f32 %v1232, %v1232
    %v1243 = vmul.f32 %v1233, %v1233
    %v1244 = vmul.f32 %v1234, %v1234
    %v1245 = vmul.f32 %v1235, %v1235
    %v1246 = vmul.f32 %v1236, %v1236
    %v1247 = vmul.f32 %v1237, %v1237
    %v1248 = vmul.f32 %v1238, %v1238
    %v1249 = vmul.f32 %v1239, %v1239
    %v1250 = vadd.f32 %v1240, 0.0
    %v1251 = vadd.f32 %v1241, 0.0
    %v1252 = vadd.f32 %v1242, 0.0
    %v1253 = vadd.f32 %v1243, 0.0
    %v1254 = vadd.f32 %v1244, 0.0
    %v1255 = vadd.f32 %v1245, 0.0
    %v1256 = vadd.f32 %v1246, 0.0
    %v1257 = vadd.f32 %v1247, 0.0
    %v1258 = vadd.f32 %v1248, 0.0
    %v1259 = vadd.f32 %v1249, 0.0
    %s1260 = scalar_lea.vmem %s3, 32
    %v1261 = vld [vmem:[%s1260] sm:$0xff]
    %v1262 = vld [vmem:[%s1260 + $0x8] sm:$0xff]
    %v1263 = vld [vmem:[%s1260 + $0x10] sm:$0xff]
    %v1264 = vld [vmem:[%s1260 + $0x18] sm:$0xff]
    %v1265 = vmul.f32 %v1261, 0.17677669
    %v1266 = vmul.f32 %v1262, 0.17677669
    %v1267 = vmul.f32 %v1263, 0.17677669
    %v1268 = vmul.f32 %v1264, 0.17677669
    %v1270 = vsel %vm273, %v1037, 0
    %v1273 = vsel %vm273, %v1042, 0
    %v1276 = vsel %vm273, %v1047, 0
    %v1279 = vsel %vm273, %v1052, 0
    %v1282 = vsel %vm273, %v1057, 0
    %v1285 = vsel %vm273, %v1062, 0
    %v1288 = vsel %vm273, %v1067, 0
    %v1291 = vsel %vm273, %v1072, 0
    %v1294 = vsel %vm273, %v1077, 0
    %v1297 = vsel %vm273, %v1082, 0
    %1299 = vmatprep.subr.mxu0 0.0
    %1300 = vmatpush1.msra.mxu0 %v1265
    %1301 = vmatprep.subr.mxu0 0.0
    %1302 = vmatpush1.msra.mxu0 %v1266
    %1303 = vmatprep.subr.mxu0 0.0
    %1304 = vmatpush1.msra.mxu0 %v1267
    %1305 = vmatprep.subr.mxu0 0.0
    %1306 = vmatpush1.msra.mxu0 %v1268
    %1307 = vmatprep.subr.mxu0 0.0
    %1308 = vmatpush1.msra.mxu0 0.0
    %1309 = vmatprep.subr.mxu0 0.0
    %1310 = vmatpush1.msra.mxu0 0.0
    %1311 = vmatprep.subr.mxu0 0.0
    %1312 = vmatpush1.msra.mxu0 0.0
    %1313 = vmatprep.subr.mxu0 0.0
    %1314 = vmatpush1.msra.mxu0 0.0
    %1315 = vmatprep.subr.mxu0 0.0
    %1316 = vmatpush1.msra.mxu0 0.0
    %1317 = vmatprep.subr.mxu0 0.0
    %1318 = vmatpush1.msra.mxu0 0.0
    %1319 = vmatprep.subr.mxu0 0.0
    %1320 = vmatpush1.msra.mxu0 0.0
    %1321 = vmatprep.subr.mxu0 0.0
    %1322 = vmatpush1.msra.mxu0 0.0
    %1323 = vmatprep.subr.mxu0 0.0
    %1324 = vmatpush1.msra.mxu0 0.0
    %1325 = vmatprep.subr.mxu0 0.0
    %1326 = vmatpush1.msra.mxu0 0.0
    %1327 = vmatprep.subr.mxu0 0.0
    %1328 = vmatpush1.msra.mxu0 0.0
    %1329 = vmatprep.subr.mxu0 0.0
    %1330 = vmatpush1.msra.mxu0 0.0
    %1331 = vmatprep.subr.mxu0 0.0
    %1332 = vmatpush1.msra.mxu0 0.0
    %1333 = vmatprep.subr.mxu0 0.0
    %1334 = vmatpush1.msra.mxu0 0.0
    %1335 = vmatprep.subr.mxu0 0.0
    %1336 = vmatpush1.msra.mxu0 0.0
    %1337 = vmatprep.subr.mxu0 0.0
    %1338 = vmatpush1.msra.mxu0 0.0
    %1339 = vmatprep.subr.mxu0 0.0
    %1340 = vmatpush1.msra.mxu0 0.0
    %1341 = vmatprep.subr.mxu0 0.0
    %1342 = vmatpush1.msra.mxu0 0.0
    %1343 = vmatprep.subr.mxu0 0.0
    %1344 = vmatpush1.msra.mxu0 0.0
    %1345 = vmatprep.subr.mxu0 0.0
    %1346 = vmatpush1.msra.mxu0 0.0
    %1347 = vmatprep.subr.mxu0 0.0
    %1348 = vmatpush1.msra.mxu0 0.0
    %1349 = vmatprep.subr.mxu0 0.0
    %1350 = vmatpush1.msra.mxu0 0.0
    %1351 = vmatprep.subr.mxu0 0.0
    %1352 = vmatpush1.msra.mxu0 0.0
    %1353 = vmatprep.subr.mxu0 0.0
    %1354 = vmatpush1.msra.mxu0 0.0
    %1355 = vmatprep.subr.mxu0 0.0
    %1356 = vmatpush1.msra.mxu0 0.0
    %1357 = vmatprep.subr.mxu0 0.0
    %1358 = vmatpush1.msra.mxu0 0.0
    %1359 = vmatprep.subr.mxu0 0.0
    %1360 = vmatpush1.msra.mxu0 0.0
    %1361 = vmatprep.subr.mxu0 0.0
    %1362 = vmatpush1.msra.mxu0 0.0
    %1363 = vmatprep.mubr.f32.mxu0 0.0
    %1364 = vmatmul.mubr.f32.gmra.mrb[0].mxu0 %v1270
    %v1365 = vpop.f32.mrb[0].mxu0
    %v1366 = vadd.f32 0.0, %v1365
    %v1367 = vpop.f32.mrb[0].mxu0
    %1368 = vmatprep.mubr.f32.mxu0 0.0
    %1369 = vmatmul.mubr.f32.gmra.mrb[0].mxu0 %v1273
    %v1370 = vpop.f32.mrb[0].mxu0
    %v1371 = vadd.f32 0.0, %v1370
    %v1372 = vpop.f32.mrb[0].mxu0
    %1373 = vmatprep.mubr.f32.mxu0 0.0
    %1374 = vmatmul.mubr.f32.gmra.mrb[0].mxu0 %v1276
    %v1375 = vpop.f32.mrb[0].mxu0
    %v1376 = vadd.f32 0.0, %v1375
    %v1377 = vpop.f32.mrb[0].mxu0
    %1378 = vmatprep.mubr.f32.mxu0 0.0
    %1379 = vmatmul.mubr.f32.gmra.mrb[0].mxu0 %v1279
    %v1380 = vpop.f32.mrb[0].mxu0
    %v1381 = vadd.f32 0.0, %v1380
    %v1382 = vpop.f32.mrb[0].mxu0
    %1383 = vmatprep.mubr.f32.mxu0 0.0
    %1384 = vmatmul.mubr.f32.gmra.mrb[0].mxu0 %v1282
    %v1385 = vpop.f32.mrb[0].mxu0
    %v1386 = vadd.f32 0.0, %v1385
    %v1387 = vpop.f32.mrb[0].mxu0
    %1388 = vmatprep.mubr.f32.mxu0 0.0
    %1389 = vmatmul.mubr.f32.gmra.mrb[0].mxu0 %v1285
    %v1390 = vpop.f32.mrb[0].mxu0
    %v1391 = vadd.f32 0.0, %v1390
    %v1392 = vpop.f32.mrb[0].mxu0
    %1393 = vmatprep.mubr.f32.mxu0 0.0
    %1394 = vmatmul.mubr.f32.gmra.mrb[0].mxu0 %v1288
    %v1395 = vpop.f32.mrb[0].mxu0
    %v1396 = vadd.f32 0.0, %v1395
    %v1397 = vpop.f32.mrb[0].mxu0
    %1398 = vmatprep.mubr.f32.mxu0 0.0
    %1399 = vmatmul.mubr.f32.gmra.mrb[0].mxu0 %v1291
    %v1400 = vpop.f32.mrb[0].mxu0
    %v1401 = vadd.f32 0.0, %v1400
    %v1402 = vpop.f32.mrb[0].mxu0
    %1403 = vmatprep.mubr.f32.mxu0 0.0
    %1404 = vmatmul.mubr.f32.gmra.mrb[0].mxu0 %v1294
    %v1405 = vpop.f32.mrb[0].mxu0
    %v1406 = vadd.f32 0.0, %v1405
    %v1407 = vpop.f32.mrb[0].mxu0
    %1408 = vmatprep.mubr.f32.mxu0 0.0
    %1409 = vmatmul.mubr.f32.gmra.mrb[0].mxu0 %v1297
    %v1410 = vpop.f32.mrb[0].mxu0
    %v1411 = vadd.f32 0.0, %v1410
    %v1412 = vpop.f32.mrb[0].mxu0
    %1413 = vdwg.mxu0
    %v1415 = vsel %vm273, %v1366, 0
    %v1418 = vsel %vm273, %v1371, 0
    %v1421 = vsel %vm273, %v1376, 0
    %v1424 = vsel %vm273, %v1381, 0
    %v1427 = vsel %vm273, %v1386, 0
    %v1430 = vsel %vm273, %v1391, 0
    %v1433 = vsel %vm273, %v1396, 0
    %v1436 = vsel %vm273, %v1401, 0
    %v1439 = vsel %vm273, %v1406, 0
    %v1442 = vsel %vm273, %v1411, 0
    %v1445 = vsel %vm273, %v1182, 0
    %v1448 = vsel %vm273, %v1187, 0
    %v1451 = vsel %vm273, %v1192, 0
    %v1454 = vsel %vm273, %v1197, 0
    %v1457 = vsel %vm273, %v1202, 0
    %v1460 = vsel %vm273, %v1207, 0
    %v1463 = vsel %vm273, %v1212, 0
    %v1466 = vsel %vm273, %v1217, 0
    %v1469 = vsel %vm273, %v1222, 0
    %v1472 = vsel %vm273, %v1227, 0
    %1474 = vmatprep.subr.mxu0 0.0
    %1475 = vmatpush1.xpose.msra.mxu0 %v1445
    %1476 = vmatprep.subr.mxu0 0.0
    %1477 = vmatpush1.xpose.msra.mxu0 %v1448
    %1478 = vmatprep.subr.mxu0 0.0
    %1479 = vmatpush1.xpose.msra.mxu0 %v1451
    %1480 = vmatprep.subr.mxu0 0.0
    %1481 = vmatpush1.xpose.msra.mxu0 %v1454
    %1482 = vmatprep.subr.mxu0 0.0
    %1483 = vmatpush1.xpose.msra.mxu0 %v1457
    %1484 = vmatprep.subr.mxu0 0.0
    %1485 = vmatpush1.xpose.msra.mxu0 %v1460
    %1486 = vmatprep.subr.mxu0 0.0
    %1487 = vmatpush1.xpose.msra.mxu0 %v1463
    %1488 = vmatprep.subr.mxu0 0.0
    %1489 = vmatpush1.xpose.msra.mxu0 %v1466
    %1490 = vmatprep.subr.mxu0 0.0
    %1491 = vmatpush1.xpose.msra.mxu0 %v1469
    %1492 = vmatprep.subr.mxu0 0.0
    %1493 = vmatpush1.xpose.msra.mxu0 %v1472
    %1494 = vmatprep.subr.mxu0 0.0
    %1495 = vmatpush1.xpose.msra.mxu0 0.0
    %1496 = vmatprep.subr.mxu0 0.0
    %1497 = vmatpush1.xpose.msra.mxu0 0.0
    %1498 = vmatprep.subr.mxu0 0.0
    %1499 = vmatpush1.xpose.msra.mxu0 0.0
    %1500 = vmatprep.subr.mxu0 0.0
    %1501 = vmatpush1.xpose.msra.mxu0 0.0
    %1502 = vmatprep.subr.mxu0 0.0
    %1503 = vmatpush1.xpose.msra.mxu0 0.0
    %1504 = vmatprep.subr.mxu0 0.0
    %1505 = vmatpush1.xpose.msra.mxu0 0.0
    %1506 = vmatprep.subr.mxu0 0.0
    %1507 = vmatpush1.xpose.msra.mxu0 0.0
    %1508 = vmatprep.subr.mxu0 0.0
    %1509 = vmatpush1.xpose.msra.mxu0 0.0
    %1510 = vmatprep.subr.mxu0 0.0
    %1511 = vmatpush1.xpose.msra.mxu0 0.0
    %1512 = vmatprep.subr.mxu0 0.0
    %1513 = vmatpush1.xpose.msra.mxu0 0.0
    %1514 = vmatprep.subr.mxu0 0.0
    %1515 = vmatpush1.xpose.msra.mxu0 0.0
    %1516 = vmatprep.subr.mxu0 0.0
    %1517 = vmatpush1.xpose.msra.mxu0 0.0
    %1518 = vmatprep.subr.mxu0 0.0
    %1519 = vmatpush1.xpose.msra.mxu0 0.0
    %1520 = vmatprep.subr.mxu0 0.0
    %1521 = vmatpush1.xpose.msra.mxu0 0.0
    %1522 = vmatprep.subr.mxu0 0.0
    %1523 = vmatpush1.xpose.msra.mxu0 0.0
    %1524 = vmatprep.subr.mxu0 0.0
    %1525 = vmatpush1.xpose.msra.mxu0 0.0
    %1526 = vmatprep.subr.mxu0 0.0
    %1527 = vmatpush1.xpose.msra.mxu0 0.0
    %1528 = vmatprep.subr.mxu0 0.0
    %1529 = vmatpush1.xpose.msra.mxu0 0.0
    %1530 = vmatprep.subr.mxu0 0.0
    %1531 = vmatpush1.xpose.msra.mxu0 0.0
    %1532 = vmatprep.subr.mxu0 0.0
    %1533 = vmatpush1.xpose.msra.mxu0 0.0
    %1534 = vmatprep.subr.mxu0 0.0
    %1535 = vmatpush1.xpose.msra.mxu0 0.0
    %1536 = vmatprep.subr.mxu0 0.0
    %1537 = vmatpush1.xpose.msra.mxu0 0.0
    %1538 = vmatprep.mubr.f32.mxu0 0.0
    %1539 = vmatmul.mubr.f32.gmra.mrb[0].mxu0 %v1415
    %v1540 = vpop.f32.mrb[0].mxu0
    %v1541 = vadd.f32 0.0, %v1540
    %v1542 = vpop.f32.mrb[0].mxu0
    %1543 = vmatprep.mubr.f32.mxu0 0.0
    %1544 = vmatmul.mubr.f32.gmra.mrb[0].mxu0 %v1418
    %v1545 = vpop.f32.mrb[0].mxu0
    %v1546 = vadd.f32 0.0, %v1545
    %v1547 = vpop.f32.mrb[0].mxu0
    %1548 = vmatprep.mubr.f32.mxu0 0.0
    %1549 = vmatmul.mubr.f32.gmra.mrb[0].mxu0 %v1421
    %v1550 = vpop.f32.mrb[0].mxu0
    %v1551 = vadd.f32 0.0, %v1550
    %v1552 = vpop.f32.mrb[0].mxu0
    %1553 = vmatprep.mubr.f32.mxu0 0.0
    %1554 = vmatmul.mubr.f32.gmra.mrb[0].mxu0 %v1424
    %v1555 = vpop.f32.mrb[0].mxu0
    %v1556 = vadd.f32 0.0, %v1555
    %v1557 = vpop.f32.mrb[0].mxu0
    %1558 = vmatprep.mubr.f32.mxu0 0.0
    %1559 = vmatmul.mubr.f32.gmra.mrb[0].mxu0 %v1427
    %v1560 = vpop.f32.mrb[0].mxu0
    %v1561 = vadd.f32 0.0, %v1560
    %v1562 = vpop.f32.mrb[0].mxu0
    %1563 = vmatprep.mubr.f32.mxu0 0.0
    %1564 = vmatmul.mubr.f32.gmra.mrb[0].mxu0 %v1430
    %v1565 = vpop.f32.mrb[0].mxu0
    %v1566 = vadd.f32 0.0, %v1565
    %v1567 = vpop.f32.mrb[0].mxu0
    %1568 = vmatprep.mubr.f32.mxu0 0.0
    %1569 = vmatmul.mubr.f32.gmra.mrb[0].mxu0 %v1433
    %v1570 = vpop.f32.mrb[0].mxu0
    %v1571 = vadd.f32 0.0, %v1570
    %v1572 = vpop.f32.mrb[0].mxu0
    %1573 = vmatprep.mubr.f32.mxu0 0.0
    %1574 = vmatmul.mubr.f32.gmra.mrb[0].mxu0 %v1436
    %v1575 = vpop.f32.mrb[0].mxu0
    %v1576 = vadd.f32 0.0, %v1575
    %v1577 = vpop.f32.mrb[0].mxu0
    %1578 = vmatprep.mubr.f32.mxu0 0.0
    %1579 = vmatmul.mubr.f32.gmra.mrb[0].mxu0 %v1439
    %v1580 = vpop.f32.mrb[0].mxu0
    %v1581 = vadd.f32 0.0, %v1580
    %v1582 = vpop.f32.mrb[0].mxu0
    %1583 = vmatprep.mubr.f32.mxu0 0.0
    %1584 = vmatmul.mubr.f32.gmra.mrb[0].mxu0 %v1442
    %v1585 = vpop.f32.mrb[0].mxu0
    %v1586 = vadd.f32 0.0, %v1585
    %v1587 = vpop.f32.mrb[0].mxu0
    %1588 = vdwg.mxu0
    %v1589 = vadd.f32 %v1541, %v235
    %v1590 = vadd.f32 %v1546, %v236
    %v1591 = vadd.f32 %v1551, %v237
    %v1592 = vadd.f32 %v1556, %v238
    %v1593 = vadd.f32 %v1561, %v239
    %v1594 = vadd.f32 %v1566, %v240
    %v1595 = vadd.f32 %v1571, %v241
    %v1596 = vadd.f32 %v1576, %v242
    %v1597 = vadd.f32 %v1581, %v243
    %v1598 = vadd.f32 %v1586, %v244
    %v1599 = vsel %vm604, %v1589, -inf
    %1600 = vmax.xlane.f32.xlu0 %v1599
    %v1601 = vpop.xlane.xlu0 %1600
    %v1602 = vsel %vm604, %v1590, -inf
    %1603 = vmax.xlane.f32.xlu0 %v1602
    %v1604 = vpop.xlane.xlu0 %1603
    %v1605 = vsel %vm604, %v1591, -inf
    %1606 = vmax.xlane.f32.xlu0 %v1605
    %v1607 = vpop.xlane.xlu0 %1606
    %v1608 = vsel %vm604, %v1592, -inf
    %1609 = vmax.xlane.f32.xlu0 %v1608
    %v1610 = vpop.xlane.xlu0 %1609
    %v1611 = vsel %vm604, %v1593, -inf
    %1612 = vmax.xlane.f32.xlu0 %v1611
    %v1613 = vpop.xlane.xlu0 %1612
    %v1614 = vsel %vm604, %v1594, -inf
    %1615 = vmax.xlane.f32.xlu0 %v1614
    %v1616 = vpop.xlane.xlu0 %1615
    %v1617 = vsel %vm604, %v1595, -inf
    %1618 = vmax.xlane.f32.xlu0 %v1617
    %v1619 = vpop.xlane.xlu0 %1618
    %v1620 = vsel %vm604, %v1596, -inf
    %1621 = vmax.xlane.f32.xlu0 %v1620
    %v1622 = vpop.xlane.xlu0 %1621
    %v1623 = vsel %vm604, %v1597, -inf
    %1624 = vmax.xlane.f32.xlu0 %v1623
    %v1625 = vpop.xlane.xlu0 %1624
    %v1626 = vsel %vm604, %v1598, -inf
    %1627 = vmax.xlane.f32.xlu0 %v1626
    %v1628 = vpop.xlane.xlu0 %1627
    %v1629 = vsub.f32 %v1589, %v1601
    %v1630 = vsub.f32 %v1590, %v1604
    %v1631 = vsub.f32 %v1591, %v1607
    %v1632 = vsub.f32 %v1592, %v1610
    %v1633 = vsub.f32 %v1593, %v1613
    %v1634 = vsub.f32 %v1594, %v1616
    %v1635 = vsub.f32 %v1595, %v1619
    %v1636 = vsub.f32 %v1596, %v1622
    %v1637 = vsub.f32 %v1597, %v1625
    %v1638 = vsub.f32 %v1598, %v1628
    %v1639 = vmul.f32 %v1629, 1.442695
    %v1640 = vpow.pop %v1639
    %v1641 = vmul.f32 %v1630, 1.442695
    %v1642 = vpow.pop %v1641
    %v1643 = vmul.f32 %v1631, 1.442695
    %v1644 = vpow.pop %v1643
    %v1645 = vmul.f32 %v1632, 1.442695
    %v1646 = vpow.pop %v1645
    %v1647 = vmul.f32 %v1633, 1.442695
    %v1648 = vpow.pop %v1647
    %v1649 = vmul.f32 %v1634, 1.442695
    %v1650 = vpow.pop %v1649
    %v1651 = vmul.f32 %v1635, 1.442695
    %v1652 = vpow.pop %v1651
    %v1653 = vmul.f32 %v1636, 1.442695
    %v1654 = vpow.pop %v1653
    %v1655 = vmul.f32 %v1637, 1.442695
    %v1656 = vpow.pop %v1655
    %v1657 = vmul.f32 %v1638, 1.442695
    %v1658 = vpow.pop %v1657
    %v1659 = vsel %vm604, %v1640, 0.0
    %1660 = vadd.xlane.f32.xlu0 %v1659
    %v1661 = vpop.xlane.xlu0 %1660
    %v1662 = vsel %vm604, %v1642, 0.0
    %1663 = vadd.xlane.f32.xlu0 %v1662
    %v1664 = vpop.xlane.xlu0 %1663
    %v1665 = vsel %vm604, %v1644, 0.0
    %1666 = vadd.xlane.f32.xlu0 %v1665
    %v1667 = vpop.xlane.xlu0 %1666
    %v1668 = vsel %vm604, %v1646, 0.0
    %1669 = vadd.xlane.f32.xlu0 %v1668
    %v1670 = vpop.xlane.xlu0 %1669
    %v1671 = vsel %vm604, %v1648, 0.0
    %1672 = vadd.xlane.f32.xlu0 %v1671
    %v1673 = vpop.xlane.xlu0 %1672
    %v1674 = vsel %vm604, %v1650, 0.0
    %1675 = vadd.xlane.f32.xlu0 %v1674
    %v1676 = vpop.xlane.xlu0 %1675
    %v1677 = vsel %vm604, %v1652, 0.0
    %1678 = vadd.xlane.f32.xlu0 %v1677
    %v1679 = vpop.xlane.xlu0 %1678
    %v1680 = vsel %vm604, %v1654, 0.0
    %1681 = vadd.xlane.f32.xlu0 %v1680
    %v1682 = vpop.xlane.xlu0 %1681
    %v1683 = vsel %vm604, %v1656, 0.0
    %1684 = vadd.xlane.f32.xlu0 %v1683
    %v1685 = vpop.xlane.xlu0 %1684
    %v1686 = vsel %vm604, %v1658, 0.0
    %1687 = vadd.xlane.f32.xlu0 %v1686
    %v1688 = vpop.xlane.xlu0 %1687
    %v1689 = vrcp.pop %v1661
    %v1690 = vrcp.pop %v1664
    %v1691 = vrcp.pop %v1667
    %v1692 = vrcp.pop %v1670
    %v1693 = vrcp.pop %v1673
    %v1694 = vrcp.pop %v1676
    %v1695 = vrcp.pop %v1679
    %v1696 = vrcp.pop %v1682
    %v1697 = vrcp.pop %v1685
    %v1698 = vrcp.pop %v1688
    %v1699 = vmul.f32 %v1640, %v1689
    %v1700 = vmul.f32 %v1642, %v1690
    %v1701 = vmul.f32 %v1644, %v1691
    %v1702 = vmul.f32 %v1646, %v1692
    %v1703 = vmul.f32 %v1648, %v1693
    %v1704 = vmul.f32 %v1650, %v1694
    %v1705 = vmul.f32 %v1652, %v1695
    %v1706 = vmul.f32 %v1654, %v1696
    %v1707 = vmul.f32 %v1656, %v1697
    %v1708 = vmul.f32 %v1658, %v1698
    %1709 = vmatprep.subr.mxu0 0.0
    %1710 = vmatpush1.xpose.msra.mxu0 %v1415
    %1711 = vmatprep.subr.mxu0 0.0
    %1712 = vmatpush1.xpose.msra.mxu0 %v1418
    %1713 = vmatprep.subr.mxu0 0.0
    %1714 = vmatpush1.xpose.msra.mxu0 %v1421
    %1715 = vmatprep.subr.mxu0 0.0
    %1716 = vmatpush1.xpose.msra.mxu0 %v1424
    %1717 = vmatprep.subr.mxu0 0.0
    %1718 = vmatpush1.xpose.msra.mxu0 %v1427
    %1719 = vmatprep.subr.mxu0 0.0
    %1720 = vmatpush1.xpose.msra.mxu0 %v1430
    %1721 = vmatprep.subr.mxu0 0.0
    %1722 = vmatpush1.xpose.msra.mxu0 %v1433
    %1723 = vmatprep.subr.mxu0 0.0
    %1724 = vmatpush1.xpose.msra.mxu0 %v1436
    %1725 = vmatprep.subr.mxu0 0.0
    %1726 = vmatpush1.xpose.msra.mxu0 %v1439
    %1727 = vmatprep.subr.mxu0 0.0
    %1728 = vmatpush1.xpose.msra.mxu0 %v1442
    %1729 = vmatprep.subr.mxu0 0.0
    %1730 = vmatpush1.xpose.msra.mxu0 0.0
    %1731 = vmatprep.subr.mxu0 0.0
    %1732 = vmatpush1.xpose.msra.mxu0 0.0
    %1733 = vmatprep.subr.mxu0 0.0
    %1734 = vmatpush1.xpose.msra.mxu0 0.0
    %1735 = vmatprep.subr.mxu0 0.0
    %1736 = vmatpush1.xpose.msra.mxu0 0.0
    %1737 = vmatprep.subr.mxu0 0.0
    %1738 = vmatpush1.xpose.msra.mxu0 0.0
    %1739 = vmatprep.subr.mxu0 0.0
    %1740 = vmatpush1.xpose.msra.mxu0 0.0
    %1741 = vmatprep.subr.mxu0 0.0
    %1742 = vmatpush1.xpose.msra.mxu0 0.0
    %1743 = vmatprep.subr.mxu0 0.0
    %1744 = vmatpush1.xpose.msra.mxu0 0.0
    %1745 = vmatprep.subr.mxu0 0.0
    %1746 = vmatpush1.xpose.msra.mxu0 0.0
    %1747 = vmatprep.subr.mxu0 0.0
    %1748 = vmatpush1.xpose.msra.mxu0 0.0
    %1749 = vmatprep.subr.mxu0 0.0
    %1750 = vmatpush1.xpose.msra.mxu0 0.0
    %1751 = vmatprep.subr.mxu0 0.0
    %1752 = vmatpush1.xpose.msra.mxu0 0.0
    %1753 = vmatprep.subr.mxu0 0.0
    %1754 = vmatpush1.xpose.msra.mxu0 0.0
    %1755 = vmatprep.subr.mxu0 0.0
    %1756 = vmatpush1.xpose.msra.mxu0 0.0
    %1757 = vmatprep.subr.mxu0 0.0
    %1758 = vmatpush1.xpose.msra.mxu0 0.0
    %1759 = vmatprep.subr.mxu0 0.0
    %1760 = vmatpush1.xpose.msra.mxu0 0.0
    %1761 = vmatprep.subr.mxu0 0.0
    %1762 = vmatpush1.xpose.msra.mxu0 0.0
    %1763 = vmatprep.subr.mxu0 0.0
    %1764 = vmatpush1.xpose.msra.mxu0 0.0
    %1765 = vmatprep.subr.mxu0 0.0
    %1766 = vmatpush1.xpose.msra.mxu0 0.0
    %1767 = vmatprep.subr.mxu0 0.0
    %1768 = vmatpush1.xpose.msra.mxu0 0.0
    %1769 = vmatprep.subr.mxu0 0.0
    %1770 = vmatpush1.xpose.msra.mxu0 0.0
    %1771 = vmatprep.subr.mxu0 0.0
    %1772 = vmatpush1.xpose.msra.mxu0 0.0
    %1773 = vmatprep.mubr.f32.mxu0 0.0
    %1774 = vmatmul.mubr.f32.gmra.mrb[0].mxu0 %v1445
    %v1775 = vpop.f32.mrb[0].mxu0
    %v1776 = vadd.f32 %v255, %v1775
    %v1777 = vpop.f32.mrb[0].mxu0
    %1778 = vmatprep.mubr.f32.mxu0 0.0
    %1779 = vmatmul.mubr.f32.gmra.mrb[0].mxu0 %v1448
    %v1780 = vpop.f32.mrb[0].mxu0
    %v1781 = vadd.f32 %v256, %v1780
    %v1782 = vpop.f32.mrb[0].mxu0
    %1783 = vmatprep.mubr.f32.mxu0 0.0
    %1784 = vmatmul.mubr.f32.gmra.mrb[0].mxu0 %v1451
    %v1785 = vpop.f32.mrb[0].mxu0
    %v1786 = vadd.f32 %v257, %v1785
    %v1787 = vpop.f32.mrb[0].mxu0
    %1788 = vmatprep.mubr.f32.mxu0 0.0
    %1789 = vmatmul.mubr.f32.gmra.mrb[0].mxu0 %v1454
    %v1790 = vpop.f32.mrb[0].mxu0
    %v1791 = vadd.f32 %v258, %v1790
    %v1792 = vpop.f32.mrb[0].mxu0
    %1793 = vmatprep.mubr.f32.mxu0 0.0
    %1794 = vmatmul.mubr.f32.gmra.mrb[0].mxu0 %v1457
    %v1795 = vpop.f32.mrb[0].mxu0
    %v1796 = vadd.f32 %v259, %v1795
    %v1797 = vpop.f32.mrb[0].mxu0
    %1798 = vmatprep.mubr.f32.mxu0 0.0
    %1799 = vmatmul.mubr.f32.gmra.mrb[0].mxu0 %v1460
    %v1800 = vpop.f32.mrb[0].mxu0
    %v1801 = vadd.f32 %v260, %v1800
    %v1802 = vpop.f32.mrb[0].mxu0
    %1803 = vmatprep.mubr.f32.mxu0 0.0
    %1804 = vmatmul.mubr.f32.gmra.mrb[0].mxu0 %v1463
    %v1805 = vpop.f32.mrb[0].mxu0
    %v1806 = vadd.f32 %v261, %v1805
    %v1807 = vpop.f32.mrb[0].mxu0
    %1808 = vmatprep.mubr.f32.mxu0 0.0
    %1809 = vmatmul.mubr.f32.gmra.mrb[0].mxu0 %v1466
    %v1810 = vpop.f32.mrb[0].mxu0
    %v1811 = vadd.f32 %v262, %v1810
    %v1812 = vpop.f32.mrb[0].mxu0
    %1813 = vmatprep.mubr.f32.mxu0 0.0
    %1814 = vmatmul.mubr.f32.gmra.mrb[0].mxu0 %v1469
    %v1815 = vpop.f32.mrb[0].mxu0
    %v1816 = vadd.f32 %v263, %v1815
    %v1817 = vpop.f32.mrb[0].mxu0
    %1818 = vmatprep.mubr.f32.mxu0 0.0
    %1819 = vmatmul.mubr.f32.gmra.mrb[0].mxu0 %v1472
    %v1820 = vpop.f32.mrb[0].mxu0
    %v1821 = vadd.f32 %v264, %v1820
    %v1822 = vpop.f32.mrb[0].mxu0
    %1823 = vdwg.mxu0
    %v1824 = vsel %vm604, %v1776, -inf
    %1825 = vmax.xlane.f32.xlu0 %v1824
    %v1826 = vpop.xlane.xlu0 %1825
    %v1827 = vsel %vm604, %v1781, -inf
    %1828 = vmax.xlane.f32.xlu0 %v1827
    %v1829 = vpop.xlane.xlu0 %1828
    %v1830 = vsel %vm604, %v1786, -inf
    %1831 = vmax.xlane.f32.xlu0 %v1830
    %v1832 = vpop.xlane.xlu0 %1831
    %v1833 = vsel %vm604, %v1791, -inf
    %1834 = vmax.xlane.f32.xlu0 %v1833
    %v1835 = vpop.xlane.xlu0 %1834
    %v1836 = vsel %vm604, %v1796, -inf
    %1837 = vmax.xlane.f32.xlu0 %v1836
    %v1838 = vpop.xlane.xlu0 %1837
    %v1839 = vsel %vm604, %v1801, -inf
    %1840 = vmax.xlane.f32.xlu0 %v1839
    %v1841 = vpop.xlane.xlu0 %1840
    %v1842 = vsel %vm604, %v1806, -inf
    %1843 = vmax.xlane.f32.xlu0 %v1842
    %v1844 = vpop.xlane.xlu0 %1843
    %v1845 = vsel %vm604, %v1811, -inf
    %1846 = vmax.xlane.f32.xlu0 %v1845
    %v1847 = vpop.xlane.xlu0 %1846
    %v1848 = vsel %vm604, %v1816, -inf
    %1849 = vmax.xlane.f32.xlu0 %v1848
    %v1850 = vpop.xlane.xlu0 %1849
    %v1851 = vsel %vm604, %v1821, -inf
    %1852 = vmax.xlane.f32.xlu0 %v1851
    %v1853 = vpop.xlane.xlu0 %1852
    %v1854 = vsub.f32 %v1776, %v1826
    %v1855 = vsub.f32 %v1781, %v1829
    %v1856 = vsub.f32 %v1786, %v1832
    %v1857 = vsub.f32 %v1791, %v1835
    %v1858 = vsub.f32 %v1796, %v1838
    %v1859 = vsub.f32 %v1801, %v1841
    %v1860 = vsub.f32 %v1806, %v1844
    %v1861 = vsub.f32 %v1811, %v1847
    %v1862 = vsub.f32 %v1816, %v1850
    %v1863 = vsub.f32 %v1821, %v1853
    %v1864 = vmul.f32 %v1854, 1.442695
    %v1865 = vpow.pop %v1864
    %v1866 = vmul.f32 %v1855, 1.442695
    %v1867 = vpow.pop %v1866
    %v1868 = vmul.f32 %v1856, 1.442695
    %v1869 = vpow.pop %v1868
    %v1870 = vmul.f32 %v1857, 1.442695
    %v1871 = vpow.pop %v1870
    %v1872 = vmul.f32 %v1858, 1.442695
    %v1873 = vpow.pop %v1872
    %v1874 = vmul.f32 %v1859, 1.442695
    %v1875 = vpow.pop %v1874
    %v1876 = vmul.f32 %v1860, 1.442695
    %v1877 = vpow.pop %v1876
    %v1878 = vmul.f32 %v1861, 1.442695
    %v1879 = vpow.pop %v1878
    %v1880 = vmul.f32 %v1862, 1.442695
    %v1881 = vpow.pop %v1880
    %v1882 = vmul.f32 %v1863, 1.442695
    %v1883 = vpow.pop %v1882
    %v1884 = vsel %vm604, %v1865, 0.0
    %1885 = vadd.xlane.f32.xlu0 %v1884
    %v1886 = vpop.xlane.xlu0 %1885
    %v1887 = vsel %vm604, %v1867, 0.0
    %1888 = vadd.xlane.f32.xlu0 %v1887
    %v1889 = vpop.xlane.xlu0 %1888
    %v1890 = vsel %vm604, %v1869, 0.0
    %1891 = vadd.xlane.f32.xlu0 %v1890
    %v1892 = vpop.xlane.xlu0 %1891
    %v1893 = vsel %vm604, %v1871, 0.0
    %1894 = vadd.xlane.f32.xlu0 %v1893
    %v1895 = vpop.xlane.xlu0 %1894
    %v1896 = vsel %vm604, %v1873, 0.0
    %1897 = vadd.xlane.f32.xlu0 %v1896
    %v1898 = vpop.xlane.xlu0 %1897
    %v1899 = vsel %vm604, %v1875, 0.0
    %1900 = vadd.xlane.f32.xlu0 %v1899
    %v1901 = vpop.xlane.xlu0 %1900
    %v1902 = vsel %vm604, %v1877, 0.0
    %1903 = vadd.xlane.f32.xlu0 %v1902
    %v1904 = vpop.xlane.xlu0 %1903
    %v1905 = vsel %vm604, %v1879, 0.0
    %1906 = vadd.xlane.f32.xlu0 %v1905
    %v1907 = vpop.xlane.xlu0 %1906
    %v1908 = vsel %vm604, %v1881, 0.0
    %1909 = vadd.xlane.f32.xlu0 %v1908
    %v1910 = vpop.xlane.xlu0 %1909
    %v1911 = vsel %vm604, %v1883, 0.0
    %1912 = vadd.xlane.f32.xlu0 %v1911
    %v1913 = vpop.xlane.xlu0 %1912
    %v1914 = vrcp.pop %v1886
    %v1915 = vrcp.pop %v1889
    %v1916 = vrcp.pop %v1892
    %v1917 = vrcp.pop %v1895
    %v1918 = vrcp.pop %v1898
    %v1919 = vrcp.pop %v1901
    %v1920 = vrcp.pop %v1904
    %v1921 = vrcp.pop %v1907
    %v1922 = vrcp.pop %v1910
    %v1923 = vrcp.pop %v1913
    %v1924 = vmul.f32 %v1865, %v1914
    %v1925 = vmul.f32 %v1867, %v1915
    %v1926 = vmul.f32 %v1869, %v1916
    %v1927 = vmul.f32 %v1871, %v1917
    %v1928 = vmul.f32 %v1873, %v1918
    %v1929 = vmul.f32 %v1875, %v1919
    %v1930 = vmul.f32 %v1877, %v1920
    %v1931 = vmul.f32 %v1879, %v1921
    %v1932 = vmul.f32 %v1881, %v1922
    %v1933 = vmul.f32 %v1883, %v1923
    %v1935 = vsel %vm604, %v1699, 0
    %v1938 = vsel %vm604, %v1700, 0
    %v1941 = vsel %vm604, %v1701, 0
    %v1944 = vsel %vm604, %v1702, 0
    %v1947 = vsel %vm604, %v1703, 0
    %v1950 = vsel %vm604, %v1704, 0
    %v1953 = vsel %vm604, %v1705, 0
    %v1956 = vsel %vm604, %v1706, 0
    %v1959 = vsel %vm604, %v1707, 0
    %v1962 = vsel %vm604, %v1708, 0
    %1964 = vmatprep.subr.mxu0 0.0
    %1965 = vmatpush1.msra.mxu0 %v1182
    %1966 = vmatprep.subr.mxu0 0.0
    %1967 = vmatpush1.msra.mxu0 %v1187
    %1968 = vmatprep.subr.mxu0 0.0
    %1969 = vmatpush1.msra.mxu0 %v1192
    %1970 = vmatprep.subr.mxu0 0.0
    %1971 = vmatpush1.msra.mxu0 %v1197
    %1972 = vmatprep.subr.mxu0 0.0
    %1973 = vmatpush1.msra.mxu0 %v1202
    %1974 = vmatprep.subr.mxu0 0.0
    %1975 = vmatpush1.msra.mxu0 %v1207
    %1976 = vmatprep.subr.mxu0 0.0
    %1977 = vmatpush1.msra.mxu0 %v1212
    %1978 = vmatprep.subr.mxu0 0.0
    %1979 = vmatpush1.msra.mxu0 %v1217
    %1980 = vmatprep.subr.mxu0 0.0
    %1981 = vmatpush1.msra.mxu0 %v1222
    %1982 = vmatprep.subr.mxu0 0.0
    %1983 = vmatpush1.msra.mxu0 %v1227
    %1984 = vmatprep.subr.mxu0 0.0
    %1985 = vmatpush1.msra.mxu0 0.0
    %1986 = vmatprep.subr.mxu0 0.0
    %1987 = vmatpush1.msra.mxu0 0.0
    %1988 = vmatprep.subr.mxu0 0.0
    %1989 = vmatpush1.msra.mxu0 0.0
    %1990 = vmatprep.subr.mxu0 0.0
    %1991 = vmatpush1.msra.mxu0 0.0
    %1992 = vmatprep.subr.mxu0 0.0
    %1993 = vmatpush1.msra.mxu0 0.0
    %1994 = vmatprep.subr.mxu0 0.0
    %1995 = vmatpush1.msra.mxu0 0.0
    %1996 = vmatprep.subr.mxu0 0.0
    %1997 = vmatpush1.msra.mxu0 0.0
    %1998 = vmatprep.subr.mxu0 0.0
    %1999 = vmatpush1.msra.mxu0 0.0
    %2000 = vmatprep.subr.mxu0 0.0
    %2001 = vmatpush1.msra.mxu0 0.0
    %2002 = vmatprep.subr.mxu0 0.0
    %2003 = vmatpush1.msra.mxu0 0.0
    %2004 = vmatprep.subr.mxu0 0.0
    %2005 = vmatpush1.msra.mxu0 0.0
    %2006 = vmatprep.subr.mxu0 0.0
    %2007 = vmatpush1.msra.mxu0 0.0
    %2008 = vmatprep.subr.mxu0 0.0
    %2009 = vmatpush1.msra.mxu0 0.0
    %2010 = vmatprep.subr.mxu0 0.0
    %2011 = vmatpush1.msra.mxu0 0.0
    %2012 = vmatprep.subr.mxu0 0.0
    %2013 = vmatpush1.msra.mxu0 0.0
    %2014 = vmatprep.subr.mxu0 0.0
    %2015 = vmatpush1.msra.mxu0 0.0
    %2016 = vmatprep.subr.mxu0 0.0
    %2017 = vmatpush1.msra.mxu0 0.0
    %2018 = vmatprep.subr.mxu0 0.0
    %2019 = vmatpush1.msra.mxu0 0.0
    %2020 = vmatprep.subr.mxu0 0.0
    %2021 = vmatpush1.msra.mxu0 0.0
    %2022 = vmatprep.subr.mxu0 0.0
    %2023 = vmatpush1.msra.mxu0 0.0
    %2024 = vmatprep.subr.mxu0 0.0
    %2025 = vmatpush1.msra.mxu0 0.0
    %2026 = vmatprep.subr.mxu0 0.0
    %2027 = vmatpush1.msra.mxu0 0.0
    %2028 = vmatprep.mubr.f32.mxu0 0.0
    %2029 = vmatmul.mubr.f32.gmra.mrb[0].mxu0 %v1935
    %v2030 = vpop.f32.mrb[0].mxu0
    %v2031 = vadd.f32 0.0, %v2030
    %v2032 = vpop.f32.mrb[0].mxu0
    %2033 = vmatprep.mubr.f32.mxu0 0.0
    %2034 = vmatmul.mubr.f32.gmra.mrb[0].mxu0 %v1938
    %v2035 = vpop.f32.mrb[0].mxu0
    %v2036 = vadd.f32 0.0, %v2035
    %v2037 = vpop.f32.mrb[0].mxu0
    %2038 = vmatprep.mubr.f32.mxu0 0.0
    %2039 = vmatmul.mubr.f32.gmra.mrb[0].mxu0 %v1941
    %v2040 = vpop.f32.mrb[0].mxu0
    %v2041 = vadd.f32 0.0, %v2040
    %v2042 = vpop.f32.mrb[0].mxu0
    %2043 = vmatprep.mubr.f32.mxu0 0.0
    %2044 = vmatmul.mubr.f32.gmra.mrb[0].mxu0 %v1944
    %v2045 = vpop.f32.mrb[0].mxu0
    %v2046 = vadd.f32 0.0, %v2045
    %v2047 = vpop.f32.mrb[0].mxu0
    %2048 = vmatprep.mubr.f32.mxu0 0.0
    %2049 = vmatmul.mubr.f32.gmra.mrb[0].mxu0 %v1947
    %v2050 = vpop.f32.mrb[0].mxu0
    %v2051 = vadd.f32 0.0, %v2050
    %v2052 = vpop.f32.mrb[0].mxu0
    %2053 = vmatprep.mubr.f32.mxu0 0.0
    %2054 = vmatmul.mubr.f32.gmra.mrb[0].mxu0 %v1950
    %v2055 = vpop.f32.mrb[0].mxu0
    %v2056 = vadd.f32 0.0, %v2055
    %v2057 = vpop.f32.mrb[0].mxu0
    %2058 = vmatprep.mubr.f32.mxu0 0.0
    %2059 = vmatmul.mubr.f32.gmra.mrb[0].mxu0 %v1953
    %v2060 = vpop.f32.mrb[0].mxu0
    %v2061 = vadd.f32 0.0, %v2060
    %v2062 = vpop.f32.mrb[0].mxu0
    %2063 = vmatprep.mubr.f32.mxu0 0.0
    %2064 = vmatmul.mubr.f32.gmra.mrb[0].mxu0 %v1956
    %v2065 = vpop.f32.mrb[0].mxu0
    %v2066 = vadd.f32 0.0, %v2065
    %v2067 = vpop.f32.mrb[0].mxu0
    %2068 = vmatprep.mubr.f32.mxu0 0.0
    %2069 = vmatmul.mubr.f32.gmra.mrb[0].mxu0 %v1959
    %v2070 = vpop.f32.mrb[0].mxu0
    %v2071 = vadd.f32 0.0, %v2070
    %v2072 = vpop.f32.mrb[0].mxu0
    %2073 = vmatprep.mubr.f32.mxu0 0.0
    %2074 = vmatmul.mubr.f32.gmra.mrb[0].mxu0 %v1962
    %v2075 = vpop.f32.mrb[0].mxu0
    %v2076 = vadd.f32 0.0, %v2075
    %v2077 = vpop.f32.mrb[0].mxu0
    %2078 = vdwg.mxu0
    %v2080 = vsel %vm604, %v1924, 0
    %v2083 = vsel %vm604, %v1925, 0
    %v2086 = vsel %vm604, %v1926, 0
    %v2089 = vsel %vm604, %v1927, 0
    %v2092 = vsel %vm604, %v1928, 0
    %v2095 = vsel %vm604, %v1929, 0
    %v2098 = vsel %vm604, %v1930, 0
    %v2101 = vsel %vm604, %v1931, 0
    %v2104 = vsel %vm604, %v1932, 0
    %v2107 = vsel %vm604, %v1933, 0
    %2109 = vmatprep.subr.mxu0 0.0
    %2110 = vmatpush1.msra.mxu0 %v1037
    %2111 = vmatprep.subr.mxu0 0.0
    %2112 = vmatpush1.msra.mxu0 %v1042
    %2113 = vmatprep.subr.mxu0 0.0
    %2114 = vmatpush1.msra.mxu0 %v1047
    %2115 = vmatprep.subr.mxu0 0.0
    %2116 = vmatpush1.msra.mxu0 %v1052
    %2117 = vmatprep.subr.mxu0 0.0
    %2118 = vmatpush1.msra.mxu0 %v1057
    %2119 = vmatprep.subr.mxu0 0.0
    %2120 = vmatpush1.msra.mxu0 %v1062
    %2121 = vmatprep.subr.mxu0 0.0
    %2122 = vmatpush1.msra.mxu0 %v1067
    %2123 = vmatprep.subr.mxu0 0.0
    %2124 = vmatpush1.msra.mxu0 %v1072
    %2125 = vmatprep.subr.mxu0 0.0
    %2126 = vmatpush1.msra.mxu0 %v1077
    %2127 = vmatprep.subr.mxu0 0.0
    %2128 = vmatpush1.msra.mxu0 %v1082
    %2129 = vmatprep.subr.mxu0 0.0
    %2130 = vmatpush1.msra.mxu0 0.0
    %2131 = vmatprep.subr.mxu0 0.0
    %2132 = vmatpush1.msra.mxu0 0.0
    %2133 = vmatprep.subr.mxu0 0.0
    %2134 = vmatpush1.msra.mxu0 0.0
    %2135 = vmatprep.subr.mxu0 0.0
    %2136 = vmatpush1.msra.mxu0 0.0
    %2137 = vmatprep.subr.mxu0 0.0
    %2138 = vmatpush1.msra.mxu0 0.0
    %2139 = vmatprep.subr.mxu0 0.0
    %2140 = vmatpush1.msra.mxu0 0.0
    %2141 = vmatprep.subr.mxu0 0.0
    %2142 = vmatpush1.msra.mxu0 0.0
    %2143 = vmatprep.subr.mxu0 0.0
    %2144 = vmatpush1.msra.mxu0 0.0
    %2145 = vmatprep.subr.mxu0 0.0
    %2146 = vmatpush1.msra.mxu0 0.0
    %2147 = vmatprep.subr.mxu0 0.0
    %2148 = vmatpush1.msra.mxu0 0.0
    %2149 = vmatprep.subr.mxu0 0.0
    %2150 = vmatpush1.msra.mxu0 0.0
    %2151 = vmatprep.subr.mxu0 0.0
    %2152 = vmatpush1.msra.mxu0 0.0
    %2153 = vmatprep.subr.mxu0 0.0
    %2154 = vmatpush1.msra.mxu0 0.0
    %2155 = vmatprep.subr.mxu0 0.0
    %2156 = vmatpush1.msra.mxu0 0.0
    %2157 = vmatprep.subr.mxu0 0.0
    %2158 = vmatpush1.msra.mxu0 0.0
    %2159 = vmatprep.subr.mxu0 0.0
    %2160 = vmatpush1.msra.mxu0 0.0
    %2161 = vmatprep.subr.mxu0 0.0
    %2162 = vmatpush1.msra.mxu0 0.0
    %2163 = vmatprep.subr.mxu0 0.0
    %2164 = vmatpush1.msra.mxu0 0.0
    %2165 = vmatprep.subr.mxu0 0.0
    %2166 = vmatpush1.msra.mxu0 0.0
    %2167 = vmatprep.subr.mxu0 0.0
    %2168 = vmatpush1.msra.mxu0 0.0
    %2169 = vmatprep.subr.mxu0 0.0
    %2170 = vmatpush1.msra.mxu0 0.0
    %2171 = vmatprep.subr.mxu0 0.0
    %2172 = vmatpush1.msra.mxu0 0.0
    %2173 = vmatprep.mubr.f32.mxu0 0.0
    %2174 = vmatmul.mubr.f32.gmra.mrb[0].mxu0 %v2080
    %v2175 = vpop.f32.mrb[0].mxu0
    %v2176 = vadd.f32 0.0, %v2175
    %v2177 = vpop.f32.mrb[0].mxu0
    %2178 = vmatprep.mubr.f32.mxu0 0.0
    %2179 = vmatmul.mubr.f32.gmra.mrb[0].mxu0 %v2083
    %v2180 = vpop.f32.mrb[0].mxu0
    %v2181 = vadd.f32 0.0, %v2180
    %v2182 = vpop.f32.mrb[0].mxu0
    %2183 = vmatprep.mubr.f32.mxu0 0.0
    %2184 = vmatmul.mubr.f32.gmra.mrb[0].mxu0 %v2086
    %v2185 = vpop.f32.mrb[0].mxu0
    %v2186 = vadd.f32 0.0, %v2185
    %v2187 = vpop.f32.mrb[0].mxu0
    %2188 = vmatprep.mubr.f32.mxu0 0.0
    %2189 = vmatmul.mubr.f32.gmra.mrb[0].mxu0 %v2089
    %v2190 = vpop.f32.mrb[0].mxu0
    %v2191 = vadd.f32 0.0, %v2190
    %v2192 = vpop.f32.mrb[0].mxu0
    %2193 = vmatprep.mubr.f32.mxu0 0.0
    %2194 = vmatmul.mubr.f32.gmra.mrb[0].mxu0 %v2092
    %v2195 = vpop.f32.mrb[0].mxu0
    %v2196 = vadd.f32 0.0, %v2195
    %v2197 = vpop.f32.mrb[0].mxu0
    %2198 = vmatprep.mubr.f32.mxu0 0.0
    %2199 = vmatmul.mubr.f32.gmra.mrb[0].mxu0 %v2095
    %v2200 = vpop.f32.mrb[0].mxu0
    %v2201 = vadd.f32 0.0, %v2200
    %v2202 = vpop.f32.mrb[0].mxu0
    %2203 = vmatprep.mubr.f32.mxu0 0.0
    %2204 = vmatmul.mubr.f32.gmra.mrb[0].mxu0 %v2098
    %v2205 = vpop.f32.mrb[0].mxu0
    %v2206 = vadd.f32 0.0, %v2205
    %v2207 = vpop.f32.mrb[0].mxu0
    %2208 = vmatprep.mubr.f32.mxu0 0.0
    %2209 = vmatmul.mubr.f32.gmra.mrb[0].mxu0 %v2101
    %v2210 = vpop.f32.mrb[0].mxu0
    %v2211 = vadd.f32 0.0, %v2210
    %v2212 = vpop.f32.mrb[0].mxu0
    %2213 = vmatprep.mubr.f32.mxu0 0.0
    %2214 = vmatmul.mubr.f32.gmra.mrb[0].mxu0 %v2104
    %v2215 = vpop.f32.mrb[0].mxu0
    %v2216 = vadd.f32 0.0, %v2215
    %v2217 = vpop.f32.mrb[0].mxu0
    %2218 = vmatprep.mubr.f32.mxu0 0.0
    %2219 = vmatmul.mubr.f32.gmra.mrb[0].mxu0 %v2107
    %v2220 = vpop.f32.mrb[0].mxu0
    %v2221 = vadd.f32 0.0, %v2220
    %v2222 = vpop.f32.mrb[0].mxu0
    %2223 = vdwg.mxu0
    %v2224 = vmul.f32 %v1541, %v205
    %v2225 = vmul.f32 %v1546, %v206
    %v2226 = vmul.f32 %v1551, %v207
    %v2227 = vmul.f32 %v1556, %v208
    %v2228 = vmul.f32 %v1561, %v209
    %v2229 = vmul.f32 %v1566, %v210
    %v2230 = vmul.f32 %v1571, %v211
    %v2231 = vmul.f32 %v1576, %v212
    %v2232 = vmul.f32 %v1581, %v213
    %v2233 = vmul.f32 %v1586, %v214
    %v2234 = vmul.f32 %v2224, %v2224
    %v2235 = vmul.f32 %v2225, %v2225
    %v2236 = vmul.f32 %v2226, %v2226
    %v2237 = vmul.f32 %v2227, %v2227
    %v2238 = vmul.f32 %v2228, %v2228
    %v2239 = vmul.f32 %v2229, %v2229
    %v2240 = vmul.f32 %v2230, %v2230
    %v2241 = vmul.f32 %v2231, %v2231
    %v2242 = vmul.f32 %v2232, %v2232
    %v2243 = vmul.f32 %v2233, %v2233
    %v2244 = vadd.f32 %v1250, %v2234
    %v2245 = vadd.f32 %v1251, %v2235
    %v2246 = vadd.f32 %v1252, %v2236
    %v2247 = vadd.f32 %v1253, %v2237
    %v2248 = vadd.f32 %v1254, %v2238
    %v2249 = vadd.f32 %v1255, %v2239
    %v2250 = vadd.f32 %v1256, %v2240
    %v2251 = vadd.f32 %v1257, %v2241
    %v2252 = vadd.f32 %v1258, %v2242
    %v2253 = vadd.f32 %v1259, %v2243
    %v2254 = vadd.f32 %v33, %v2031
    %v2255 = vadd.f32 %v34, %v2036
    %v2256 = vadd.f32 %v35, %v2041
    %v2257 = vadd.f32 %v36, %v2046
    %v2258 = vadd.f32 %v37, %v2051
    %v2259 = vadd.f32 %v38, %v2056
    %v2260 = vadd.f32 %v39, %v2061
    %v2261 = vadd.f32 %v40, %v2066
    %v2262 = vadd.f32 %v41, %v2071
    %v2263 = vadd.f32 %v42, %v2076
    %v2264 = vlaneseq
    %v2265 = vshrl.u32 %v2264, 7
    %v2266 = vsub.s32 1, %v2265
    %v2267 = vrot.slane %v32, %v2266
    %v2268 = vmul.f32 %v2254, %v2267
    %v2269 = vmul.f32 %v2255, %v2267
    %v2270 = vmul.f32 %v2256, %v2267
    %v2271 = vmul.f32 %v2257, %v2267
    %v2272 = vmul.f32 %v2258, %v2267
    %v2273 = vmul.f32 %v2259, %v2267
    %v2274 = vmul.f32 %v2260, %v2267
    %v2275 = vmul.f32 %v2261, %v2267
    %v2276 = vmul.f32 %v2262, %v2267
    %v2277 = vmul.f32 %v2263, %v2267
    %v2278 = vsel %vm273, %v2268, 0.0
    %2279 = vadd.xlane.f32.xlu0 %v2278
    %v2280 = vpop.xlane.xlu0 %2279
    %v2281 = vsel %vm273, %v2269, 0.0
    %2282 = vadd.xlane.f32.xlu0 %v2281
    %v2283 = vpop.xlane.xlu0 %2282
    %v2284 = vsel %vm273, %v2270, 0.0
    %2285 = vadd.xlane.f32.xlu0 %v2284
    %v2286 = vpop.xlane.xlu0 %2285
    %v2287 = vsel %vm273, %v2271, 0.0
    %2288 = vadd.xlane.f32.xlu0 %v2287
    %v2289 = vpop.xlane.xlu0 %2288
    %v2290 = vsel %vm273, %v2272, 0.0
    %2291 = vadd.xlane.f32.xlu0 %v2290
    %v2292 = vpop.xlane.xlu0 %2291
    %v2293 = vsel %vm273, %v2273, 0.0
    %2294 = vadd.xlane.f32.xlu0 %v2293
    %v2295 = vpop.xlane.xlu0 %2294
    %v2296 = vsel %vm273, %v2274, 0.0
    %2297 = vadd.xlane.f32.xlu0 %v2296
    %v2298 = vpop.xlane.xlu0 %2297
    %v2299 = vsel %vm273, %v2275, 0.0
    %2300 = vadd.xlane.f32.xlu0 %v2299
    %v2301 = vpop.xlane.xlu0 %2300
    %v2302 = vsel %vm273, %v2276, 0.0
    %2303 = vadd.xlane.f32.xlu0 %v2302
    %v2304 = vpop.xlane.xlu0 %2303
    %v2305 = vsel %vm273, %v2277, 0.0
    %2306 = vadd.xlane.f32.xlu0 %v2305
    %v2307 = vpop.xlane.xlu0 %2306
    %v2318 = vlaneseq
    %v2319 = vand.u32 %v2318, 127
    %v2320 = vlaneseq
    %v2321 = vshrl.u32 %v2320, 7
    %v2322 = vsub.s32 %v2319, %v2321
    %v2323 = vrot.slane %v2280, %v2322
    %v2324 = vlaneseq
    %v2325 = vshrl.u32 %v2324, 7
    %v2326 = vsub.s32 %v2319, %v2325
    %v2327 = vrot.slane %v2283, %v2326
    %v2328 = vlaneseq
    %v2329 = vshrl.u32 %v2328, 7
    %v2330 = vsub.s32 %v2319, %v2329
    %v2331 = vrot.slane %v2286, %v2330
    %v2332 = vlaneseq
    %v2333 = vshrl.u32 %v2332, 7
    %v2334 = vsub.s32 %v2319, %v2333
    %v2335 = vrot.slane %v2289, %v2334
    %v2336 = vlaneseq
    %v2337 = vshrl.u32 %v2336, 7
    %v2338 = vsub.s32 %v2319, %v2337
    %v2339 = vrot.slane %v2292, %v2338
    %v2340 = vlaneseq
    %v2341 = vshrl.u32 %v2340, 7
    %v2342 = vsub.s32 %v2319, %v2341
    %v2343 = vrot.slane %v2295, %v2342
    %v2344 = vlaneseq
    %v2345 = vshrl.u32 %v2344, 7
    %v2346 = vsub.s32 %v2319, %v2345
    %v2347 = vrot.slane %v2298, %v2346
    %v2348 = vlaneseq
    %v2349 = vshrl.u32 %v2348, 7
    %v2350 = vsub.s32 %v2319, %v2349
    %v2351 = vrot.slane %v2301, %v2350
    %v2352 = vlaneseq
    %v2353 = vshrl.u32 %v2352, 7
    %v2354 = vsub.s32 %v2319, %v2353
    %v2355 = vrot.slane %v2304, %v2354
    %v2356 = vlaneseq
    %v2357 = vshrl.u32 %v2356, 7
    %v2358 = vsub.s32 %v2319, %v2357
    %v2359 = vrot.slane %v2307, %v2358
    %vm2360 = vcmask 1041409
    %v2361 = vsel %vm2360, %v2327, %v2323
    %vm2362 = vcmask 1042434
    %v2363 = vsel %vm2362, %v2331, %v2361
    %vm2364 = vcmask 1043459
    %v2365 = vsel %vm2364, %v2335, %v2363
    %vm2366 = vcmask 1044484
    %v2367 = vsel %vm2366, %v2339, %v2365
    %vm2368 = vcmask 1045509
    %v2369 = vsel %vm2368, %v2343, %v2367
    %vm2370 = vcmask 1046534
    %v2371 = vsel %vm2370, %v2347, %v2369
    %vm2372 = vcmask 1047559
    %v2373 = vsel %vm2372, %v2351, %v2371
    %v2374 = vsel %vm2360, %v2359, %v2355
    %vm2377 = vcmask 64512
    %v2378 = vsel %vm2377, %v2373, -inf
    %2379 = vmax.xlane.f32.xlu0 %v2378
    %v2380 = vpop.xlane.xlu0 %2379
    %vm2381 = vcmask 58368
    %v2382 = vsel %vm2381, %v2374, -inf
    %2383 = vmax.xlane.f32.xlu0 %v2382
    %v2384 = vpop.xlane.xlu0 %2383
    %v2387 = vlaneseq
    %v2388 = vshrl.u32 %v2387, 7
    %v2389 = vsub.s32 0, %v2388
    %v2390 = vrot.slane %v2380, %v2389
    %v2391 = vlaneseq
    %v2392 = vshrl.u32 %v2391, 7
    %v2393 = vsub.s32 1, %v2392
    %v2394 = vrot.slane %v2380, %v2393
    %v2395 = vlaneseq
    %v2396 = vshrl.u32 %v2395, 7
    %v2397 = vsub.s32 2, %v2396
    %v2398 = vrot.slane %v2380, %v2397
    %v2399 = vlaneseq
    %v2400 = vshrl.u32 %v2399, 7
    %v2401 = vsub.s32 3, %v2400
    %v2402 = vrot.slane %v2380, %v2401
    %v2403 = vlaneseq
    %v2404 = vshrl.u32 %v2403, 7
    %v2405 = vsub.s32 4, %v2404
    %v2406 = vrot.slane %v2380, %v2405
    %v2407 = vlaneseq
    %v2408 = vshrl.u32 %v2407, 7
    %v2409 = vsub.s32 5, %v2408
    %v2410 = vrot.slane %v2380, %v2409
    %v2411 = vlaneseq
    %v2412 = vshrl.u32 %v2411, 7
    %v2413 = vsub.s32 6, %v2412
    %v2414 = vrot.slane %v2380, %v2413
    %v2415 = vlaneseq
    %v2416 = vshrl.u32 %v2415, 7
    %v2417 = vsub.s32 7, %v2416
    %v2418 = vrot.slane %v2380, %v2417
    %v2419 = vlaneseq
    %v2420 = vshrl.u32 %v2419, 7
    %v2421 = vsub.s32 0, %v2420
    %v2422 = vrot.slane %v2384, %v2421
    %v2423 = vlaneseq
    %v2424 = vshrl.u32 %v2423, 7
    %v2425 = vsub.s32 1, %v2424
    %v2426 = vrot.slane %v2384, %v2425
    %v2437 = vsub.f32 %v2280, %v2390
    %v2438 = vsub.f32 %v2283, %v2394
    %v2439 = vsub.f32 %v2286, %v2398
    %v2440 = vsub.f32 %v2289, %v2402
    %v2441 = vsub.f32 %v2292, %v2406
    %v2442 = vsub.f32 %v2295, %v2410
    %v2443 = vsub.f32 %v2298, %v2414
    %v2444 = vsub.f32 %v2301, %v2418
    %v2445 = vsub.f32 %v2304, %v2422
    %v2446 = vsub.f32 %v2307, %v2426
    %v2447 = vmul.f32 %v2437, 1.442695
    %v2448 = vpow.pop %v2447
    %v2449 = vmul.f32 %v2438, 1.442695
    %v2450 = vpow.pop %v2449
    %v2451 = vmul.f32 %v2439, 1.442695
    %v2452 = vpow.pop %v2451
    %v2453 = vmul.f32 %v2440, 1.442695
    %v2454 = vpow.pop %v2453
    %v2455 = vmul.f32 %v2441, 1.442695
    %v2456 = vpow.pop %v2455
    %v2457 = vmul.f32 %v2442, 1.442695
    %v2458 = vpow.pop %v2457
    %v2459 = vmul.f32 %v2443, 1.442695
    %v2460 = vpow.pop %v2459
    %v2461 = vmul.f32 %v2444, 1.442695
    %v2462 = vpow.pop %v2461
    %v2463 = vmul.f32 %v2445, 1.442695
    %v2464 = vpow.pop %v2463
    %v2465 = vmul.f32 %v2446, 1.442695
    %v2466 = vpow.pop %v2465
    %2477 = vset.pattern.permute.xlu0 0
    %2478 = vperm.xlu0 %2477, %v2448
    %v2479 = vpop.permute.xlu0 %2478
    %2480 = vset.pattern.permute.xlu0 0
    %2481 = vperm.xlu0 %2480, %v2450
    %v2482 = vpop.permute.xlu0 %2481
    %2483 = vset.pattern.permute.xlu0 0
    %2484 = vperm.xlu0 %2483, %v2452
    %v2485 = vpop.permute.xlu0 %2484
    %2486 = vset.pattern.permute.xlu0 0
    %2487 = vperm.xlu0 %2486, %v2454
    %v2488 = vpop.permute.xlu0 %2487
    %2489 = vset.pattern.permute.xlu0 0
    %2490 = vperm.xlu0 %2489, %v2456
    %v2491 = vpop.permute.xlu0 %2490
    %2492 = vset.pattern.permute.xlu0 0
    %2493 = vperm.xlu0 %2492, %v2458
    %v2494 = vpop.permute.xlu0 %2493
    %2495 = vset.pattern.permute.xlu0 0
    %2496 = vperm.xlu0 %2495, %v2460
    %v2497 = vpop.permute.xlu0 %2496
    %2498 = vset.pattern.permute.xlu0 0
    %2499 = vperm.xlu0 %2498, %v2462
    %v2500 = vpop.permute.xlu0 %2499
    %2501 = vset.pattern.permute.xlu0 0
    %2502 = vperm.xlu0 %2501, %v2464
    %v2503 = vpop.permute.xlu0 %2502
    %2504 = vset.pattern.permute.xlu0 0
    %2505 = vperm.xlu0 %2504, %v2466
    %v2506 = vpop.permute.xlu0 %2505
    %v2507 = vlaneseq
    %v2508 = vshrl.u32 %v2507, 7
    %v2509 = vsub.s32 %v2319, %v2508
    %v2510 = vrot.slane %v2479, %v2509
    %v2511 = vlaneseq
    %v2512 = vshrl.u32 %v2511, 7
    %v2513 = vsub.s32 %v2319, %v2512
    %v2514 = vrot.slane %v2482, %v2513
    %v2515 = vlaneseq
    %v2516 = vshrl.u32 %v2515, 7
    %v2517 = vsub.s32 %v2319, %v2516
    %v2518 = vrot.slane %v2485, %v2517
    %v2519 = vlaneseq
    %v2520 = vshrl.u32 %v2519, 7
    %v2521 = vsub.s32 %v2319, %v2520
    %v2522 = vrot.slane %v2488, %v2521
    %v2523 = vlaneseq
    %v2524 = vshrl.u32 %v2523, 7
    %v2525 = vsub.s32 %v2319, %v2524
    %v2526 = vrot.slane %v2491, %v2525
    %v2527 = vlaneseq
    %v2528 = vshrl.u32 %v2527, 7
    %v2529 = vsub.s32 %v2319, %v2528
    %v2530 = vrot.slane %v2494, %v2529
    %v2531 = vlaneseq
    %v2532 = vshrl.u32 %v2531, 7
    %v2533 = vsub.s32 %v2319, %v2532
    %v2534 = vrot.slane %v2497, %v2533
    %v2535 = vlaneseq
    %v2536 = vshrl.u32 %v2535, 7
    %v2537 = vsub.s32 %v2319, %v2536
    %v2538 = vrot.slane %v2500, %v2537
    %v2539 = vlaneseq
    %v2540 = vshrl.u32 %v2539, 7
    %v2541 = vsub.s32 %v2319, %v2540
    %v2542 = vrot.slane %v2503, %v2541
    %v2543 = vlaneseq
    %v2544 = vshrl.u32 %v2543, 7
    %v2545 = vsub.s32 %v2319, %v2544
    %v2546 = vrot.slane %v2506, %v2545
    %v2547 = vsel %vm2360, %v2514, %v2510
    %v2548 = vsel %vm2362, %v2518, %v2547
    %v2549 = vsel %vm2364, %v2522, %v2548
    %v2550 = vsel %vm2366, %v2526, %v2549
    %v2551 = vsel %vm2368, %v2530, %v2550
    %v2552 = vsel %vm2370, %v2534, %v2551
    %v2553 = vsel %vm2372, %v2538, %v2552
    %v2554 = vsel %vm2360, %v2546, %v2542
    %v2557 = vsel %vm2377, %v2553, 0.0
    %2558 = vadd.xlane.f32.xlu0 %v2557
    %v2559 = vpop.xlane.xlu0 %2558
    %v2560 = vsel %vm2381, %v2554, 0.0
    %2561 = vadd.xlane.f32.xlu0 %v2560
    %v2562 = vpop.xlane.xlu0 %2561
    %v2563 = vrcp.pop %v2559
    %v2564 = vrcp.pop %v2562
    %v2567 = vlaneseq
    %v2568 = vshrl.u32 %v2567, 7
    %v2569 = vsub.s32 0, %v2568
    %v2570 = vrot.slane %v2563, %v2569
    %v2571 = vlaneseq
    %v2572 = vshrl.u32 %v2571, 7
    %v2573 = vsub.s32 1, %v2572
    %v2574 = vrot.slane %v2563, %v2573
    %v2575 = vlaneseq
    %v2576 = vshrl.u32 %v2575, 7
    %v2577 = vsub.s32 2, %v2576
    %v2578 = vrot.slane %v2563, %v2577
    %v2579 = vlaneseq
    %v2580 = vshrl.u32 %v2579, 7
    %v2581 = vsub.s32 3, %v2580
    %v2582 = vrot.slane %v2563, %v2581
    %v2583 = vlaneseq
    %v2584 = vshrl.u32 %v2583, 7
    %v2585 = vsub.s32 4, %v2584
    %v2586 = vrot.slane %v2563, %v2585
    %v2587 = vlaneseq
    %v2588 = vshrl.u32 %v2587, 7
    %v2589 = vsub.s32 5, %v2588
    %v2590 = vrot.slane %v2563, %v2589
    %v2591 = vlaneseq
    %v2592 = vshrl.u32 %v2591, 7
    %v2593 = vsub.s32 6, %v2592
    %v2594 = vrot.slane %v2563, %v2593
    %v2595 = vlaneseq
    %v2596 = vshrl.u32 %v2595, 7
    %v2597 = vsub.s32 7, %v2596
    %v2598 = vrot.slane %v2563, %v2597
    %v2599 = vlaneseq
    %v2600 = vshrl.u32 %v2599, 7
    %v2601 = vsub.s32 0, %v2600
    %v2602 = vrot.slane %v2564, %v2601
    %v2603 = vlaneseq
    %v2604 = vshrl.u32 %v2603, 7
    %v2605 = vsub.s32 1, %v2604
    %v2606 = vrot.slane %v2564, %v2605
    %v2617 = vmul.f32 %v2448, %v2570
    %v2618 = vmul.f32 %v2450, %v2574
    %v2619 = vmul.f32 %v2452, %v2578
    %v2620 = vmul.f32 %v2454, %v2582
    %v2621 = vmul.f32 %v2456, %v2586
    %v2622 = vmul.f32 %v2458, %v2590
    %v2623 = vmul.f32 %v2460, %v2594
    %v2624 = vmul.f32 %v2462, %v2598
    %v2625 = vmul.f32 %v2464, %v2602
    %v2626 = vmul.f32 %v2466, %v2606
    %2628 = vset.pattern.permute.xlu0 0
    %2629 = vperm.xlu0 %2628, %v2617
    %v2630 = vpop.permute.xlu0 %2629
    %2633 = vset.pattern.permute.xlu0 0
    %2634 = vperm.xlu0 %2633, %v2618
    %v2635 = vpop.permute.xlu0 %2634
    %2638 = vset.pattern.permute.xlu0 0
    %2639 = vperm.xlu0 %2638, %v2619
    %v2640 = vpop.permute.xlu0 %2639
    %2643 = vset.pattern.permute.xlu0 0
    %2644 = vperm.xlu0 %2643, %v2620
    %v2645 = vpop.permute.xlu0 %2644
    %2648 = vset.pattern.permute.xlu0 0
    %2649 = vperm.xlu0 %2648, %v2621
    %v2650 = vpop.permute.xlu0 %2649
    %2653 = vset.pattern.permute.xlu0 0
    %2654 = vperm.xlu0 %2653, %v2622
    %v2655 = vpop.permute.xlu0 %2654
    %2658 = vset.pattern.permute.xlu0 0
    %2659 = vperm.xlu0 %2658, %v2623
    %v2660 = vpop.permute.xlu0 %2659
    %2663 = vset.pattern.permute.xlu0 0
    %2664 = vperm.xlu0 %2663, %v2624
    %v2665 = vpop.permute.xlu0 %2664
    %2668 = vset.pattern.permute.xlu0 0
    %2669 = vperm.xlu0 %2668, %v2625
    %v2670 = vpop.permute.xlu0 %2669
    %2673 = vset.pattern.permute.xlu0 0
    %2674 = vperm.xlu0 %2673, %v2626
    %v2675 = vpop.permute.xlu0 %2674
    %v2677 = vmul.f32 %v2630, %v2031
    %v2678 = vmul.f32 %v2635, %v2036
    %v2679 = vmul.f32 %v2640, %v2041
    %v2680 = vmul.f32 %v2645, %v2046
    %v2681 = vmul.f32 %v2650, %v2051
    %v2682 = vmul.f32 %v2655, %v2056
    %v2683 = vmul.f32 %v2660, %v2061
    %v2684 = vmul.f32 %v2665, %v2066
    %v2685 = vmul.f32 %v2670, %v2071
    %v2686 = vmul.f32 %v2675, %v2076
    %v2687 = vsel %vm273, %v2677, 0.0
    %v2688 = vrot.slane %v2687, 4
    %v2689 = vadd.f32 %v2687, %v2688
    %v2690 = vrot.slane %v2689, 2
    %v2691 = vadd.f32 %v2689, %v2690
    %v2692 = vrot.slane %v2691, 1
    %v2693 = vadd.f32 %v2691, %v2692
    %v2694 = vsel %vm273, %v2678, 0.0
    %v2695 = vrot.slane %v2694, 4
    %v2696 = vadd.f32 %v2694, %v2695
    %v2697 = vrot.slane %v2696, 2
    %v2698 = vadd.f32 %v2696, %v2697
    %v2699 = vrot.slane %v2698, 1
    %v2700 = vadd.f32 %v2698, %v2699
    %v2701 = vsel %vm273, %v2679, 0.0
    %v2702 = vrot.slane %v2701, 4
    %v2703 = vadd.f32 %v2701, %v2702
    %v2704 = vrot.slane %v2703, 2
    %v2705 = vadd.f32 %v2703, %v2704
    %v2706 = vrot.slane %v2705, 1
    %v2707 = vadd.f32 %v2705, %v2706
    %v2708 = vsel %vm273, %v2680, 0.0
    %v2709 = vrot.slane %v2708, 4
    %v2710 = vadd.f32 %v2708, %v2709
    %v2711 = vrot.slane %v2710, 2
    %v2712 = vadd.f32 %v2710, %v2711
    %v2713 = vrot.slane %v2712, 1
    %v2714 = vadd.f32 %v2712, %v2713
    %v2715 = vsel %vm273, %v2681, 0.0
    %v2716 = vrot.slane %v2715, 4
    %v2717 = vadd.f32 %v2715, %v2716
    %v2718 = vrot.slane %v2717, 2
    %v2719 = vadd.f32 %v2717, %v2718
    %v2720 = vrot.slane %v2719, 1
    %v2721 = vadd.f32 %v2719, %v2720
    %v2722 = vsel %vm273, %v2682, 0.0
    %v2723 = vrot.slane %v2722, 4
    %v2724 = vadd.f32 %v2722, %v2723
    %v2725 = vrot.slane %v2724, 2
    %v2726 = vadd.f32 %v2724, %v2725
    %v2727 = vrot.slane %v2726, 1
    %v2728 = vadd.f32 %v2726, %v2727
    %v2729 = vsel %vm273, %v2683, 0.0
    %v2730 = vrot.slane %v2729, 4
    %v2731 = vadd.f32 %v2729, %v2730
    %v2732 = vrot.slane %v2731, 2
    %v2733 = vadd.f32 %v2731, %v2732
    %v2734 = vrot.slane %v2733, 1
    %v2735 = vadd.f32 %v2733, %v2734
    %v2736 = vsel %vm273, %v2684, 0.0
    %v2737 = vrot.slane %v2736, 4
    %v2738 = vadd.f32 %v2736, %v2737
    %v2739 = vrot.slane %v2738, 2
    %v2740 = vadd.f32 %v2738, %v2739
    %v2741 = vrot.slane %v2740, 1
    %v2742 = vadd.f32 %v2740, %v2741
    %v2743 = vsel %vm273, %v2685, 0.0
    %v2744 = vrot.slane %v2743, 4
    %v2745 = vadd.f32 %v2743, %v2744
    %v2746 = vrot.slane %v2745, 2
    %v2747 = vadd.f32 %v2745, %v2746
    %v2748 = vrot.slane %v2747, 1
    %v2749 = vadd.f32 %v2747, %v2748
    %v2750 = vsel %vm273, %v2686, 0.0
    %v2751 = vrot.slane %v2750, 4
    %v2752 = vadd.f32 %v2750, %v2751
    %v2753 = vrot.slane %v2752, 2
    %v2754 = vadd.f32 %v2752, %v2753
    %v2755 = vrot.slane %v2754, 1
    %v2756 = vadd.f32 %v2754, %v2755
    %v2757 = vadd.f32 %v157, %v2176
    %v2758 = vadd.f32 %v162, %v2181
    %v2759 = vadd.f32 %v167, %v2186
    %v2760 = vadd.f32 %v172, %v2191
    %v2761 = vadd.f32 %v177, %v2196
    %v2762 = vadd.f32 %v182, %v2201
    %v2763 = vadd.f32 %v187, %v2206
    %v2764 = vadd.f32 %v192, %v2211
    %v2765 = vadd.f32 %v197, %v2216
    %v2766 = vadd.f32 %v202, %v2221
    %v2767 = vlaneseq
    %v2768 = vshrl.u32 %v2767, 7
    %v2769 = vsub.s32 2, %v2768
    %v2770 = vrot.slane %v32, %v2769
    %v2771 = vmul.f32 %v2757, %v2770
    %v2772 = vmul.f32 %v2758, %v2770
    %v2773 = vmul.f32 %v2759, %v2770
    %v2774 = vmul.f32 %v2760, %v2770
    %v2775 = vmul.f32 %v2761, %v2770
    %v2776 = vmul.f32 %v2762, %v2770
    %v2777 = vmul.f32 %v2763, %v2770
    %v2778 = vmul.f32 %v2764, %v2770
    %v2779 = vmul.f32 %v2765, %v2770
    %v2780 = vmul.f32 %v2766, %v2770
    %v2781 = vsel %vm273, %v2771, 0.0
    %2782 = vadd.xlane.f32.xlu0 %v2781
    %v2783 = vpop.xlane.xlu0 %2782
    %v2784 = vsel %vm273, %v2772, 0.0
    %2785 = vadd.xlane.f32.xlu0 %v2784
    %v2786 = vpop.xlane.xlu0 %2785
    %v2787 = vsel %vm273, %v2773, 0.0
    %2788 = vadd.xlane.f32.xlu0 %v2787
    %v2789 = vpop.xlane.xlu0 %2788
    %v2790 = vsel %vm273, %v2774, 0.0
    %2791 = vadd.xlane.f32.xlu0 %v2790
    %v2792 = vpop.xlane.xlu0 %2791
    %v2793 = vsel %vm273, %v2775, 0.0
    %2794 = vadd.xlane.f32.xlu0 %v2793
    %v2795 = vpop.xlane.xlu0 %2794
    %v2796 = vsel %vm273, %v2776, 0.0
    %2797 = vadd.xlane.f32.xlu0 %v2796
    %v2798 = vpop.xlane.xlu0 %2797
    %v2799 = vsel %vm273, %v2777, 0.0
    %2800 = vadd.xlane.f32.xlu0 %v2799
    %v2801 = vpop.xlane.xlu0 %2800
    %v2802 = vsel %vm273, %v2778, 0.0
    %2803 = vadd.xlane.f32.xlu0 %v2802
    %v2804 = vpop.xlane.xlu0 %2803
    %v2805 = vsel %vm273, %v2779, 0.0
    %2806 = vadd.xlane.f32.xlu0 %v2805
    %v2807 = vpop.xlane.xlu0 %2806
    %v2808 = vsel %vm273, %v2780, 0.0
    %2809 = vadd.xlane.f32.xlu0 %v2808
    %v2810 = vpop.xlane.xlu0 %2809
    %v2821 = vlaneseq
    %v2822 = vshrl.u32 %v2821, 7
    %v2823 = vsub.s32 %v2319, %v2822
    %v2824 = vrot.slane %v2783, %v2823
    %v2825 = vlaneseq
    %v2826 = vshrl.u32 %v2825, 7
    %v2827 = vsub.s32 %v2319, %v2826
    %v2828 = vrot.slane %v2786, %v2827
    %v2829 = vlaneseq
    %v2830 = vshrl.u32 %v2829, 7
    %v2831 = vsub.s32 %v2319, %v2830
    %v2832 = vrot.slane %v2789, %v2831
    %v2833 = vlaneseq
    %v2834 = vshrl.u32 %v2833, 7
    %v2835 = vsub.s32 %v2319, %v2834
    %v2836 = vrot.slane %v2792, %v2835
    %v2837 = vlaneseq
    %v2838 = vshrl.u32 %v2837, 7
    %v2839 = vsub.s32 %v2319, %v2838
    %v2840 = vrot.slane %v2795, %v2839
    %v2841 = vlaneseq
    %v2842 = vshrl.u32 %v2841, 7
    %v2843 = vsub.s32 %v2319, %v2842
    %v2844 = vrot.slane %v2798, %v2843
    %v2845 = vlaneseq
    %v2846 = vshrl.u32 %v2845, 7
    %v2847 = vsub.s32 %v2319, %v2846
    %v2848 = vrot.slane %v2801, %v2847
    %v2849 = vlaneseq
    %v2850 = vshrl.u32 %v2849, 7
    %v2851 = vsub.s32 %v2319, %v2850
    %v2852 = vrot.slane %v2804, %v2851
    %v2853 = vlaneseq
    %v2854 = vshrl.u32 %v2853, 7
    %v2855 = vsub.s32 %v2319, %v2854
    %v2856 = vrot.slane %v2807, %v2855
    %v2857 = vlaneseq
    %v2858 = vshrl.u32 %v2857, 7
    %v2859 = vsub.s32 %v2319, %v2858
    %v2860 = vrot.slane %v2810, %v2859
    %v2861 = vsel %vm2360, %v2828, %v2824
    %v2862 = vsel %vm2362, %v2832, %v2861
    %v2863 = vsel %vm2364, %v2836, %v2862
    %v2864 = vsel %vm2366, %v2840, %v2863
    %v2865 = vsel %vm2368, %v2844, %v2864
    %v2866 = vsel %vm2370, %v2848, %v2865
    %v2867 = vsel %vm2372, %v2852, %v2866
    %v2868 = vsel %vm2360, %v2860, %v2856
    %v2871 = vsel %vm2377, %v2867, -inf
    %2872 = vmax.xlane.f32.xlu0 %v2871
    %v2873 = vpop.xlane.xlu0 %2872
    %v2874 = vsel %vm2381, %v2868, -inf
    %2875 = vmax.xlane.f32.xlu0 %v2874
    %v2876 = vpop.xlane.xlu0 %2875
    %v2879 = vlaneseq
    %v2880 = vshrl.u32 %v2879, 7
    %v2881 = vsub.s32 0, %v2880
    %v2882 = vrot.slane %v2873, %v2881
    %v2883 = vlaneseq
    %v2884 = vshrl.u32 %v2883, 7
    %v2885 = vsub.s32 1, %v2884
    %v2886 = vrot.slane %v2873, %v2885
    %v2887 = vlaneseq
    %v2888 = vshrl.u32 %v2887, 7
    %v2889 = vsub.s32 2, %v2888
    %v2890 = vrot.slane %v2873, %v2889
    %v2891 = vlaneseq
    %v2892 = vshrl.u32 %v2891, 7
    %v2893 = vsub.s32 3, %v2892
    %v2894 = vrot.slane %v2873, %v2893
    %v2895 = vlaneseq
    %v2896 = vshrl.u32 %v2895, 7
    %v2897 = vsub.s32 4, %v2896
    %v2898 = vrot.slane %v2873, %v2897
    %v2899 = vlaneseq
    %v2900 = vshrl.u32 %v2899, 7
    %v2901 = vsub.s32 5, %v2900
    %v2902 = vrot.slane %v2873, %v2901
    %v2903 = vlaneseq
    %v2904 = vshrl.u32 %v2903, 7
    %v2905 = vsub.s32 6, %v2904
    %v2906 = vrot.slane %v2873, %v2905
    %v2907 = vlaneseq
    %v2908 = vshrl.u32 %v2907, 7
    %v2909 = vsub.s32 7, %v2908
    %v2910 = vrot.slane %v2873, %v2909
    %v2911 = vlaneseq
    %v2912 = vshrl.u32 %v2911, 7
    %v2913 = vsub.s32 0, %v2912
    %v2914 = vrot.slane %v2876, %v2913
    %v2915 = vlaneseq
    %v2916 = vshrl.u32 %v2915, 7
    %v2917 = vsub.s32 1, %v2916
    %v2918 = vrot.slane %v2876, %v2917
    %v2929 = vsub.f32 %v2783, %v2882
    %v2930 = vsub.f32 %v2786, %v2886
    %v2931 = vsub.f32 %v2789, %v2890
    %v2932 = vsub.f32 %v2792, %v2894
    %v2933 = vsub.f32 %v2795, %v2898
    %v2934 = vsub.f32 %v2798, %v2902
    %v2935 = vsub.f32 %v2801, %v2906
    %v2936 = vsub.f32 %v2804, %v2910
    %v2937 = vsub.f32 %v2807, %v2914
    %v2938 = vsub.f32 %v2810, %v2918
    %v2939 = vmul.f32 %v2929, 1.442695
    %v2940 = vpow.pop %v2939
    %v2941 = vmul.f32 %v2930, 1.442695
    %v2942 = vpow.pop %v2941
    %v2943 = vmul.f32 %v2931, 1.442695
    %v2944 = vpow.pop %v2943
    %v2945 = vmul.f32 %v2932, 1.442695
    %v2946 = vpow.pop %v2945
    %v2947 = vmul.f32 %v2933, 1.442695
    %v2948 = vpow.pop %v2947
    %v2949 = vmul.f32 %v2934, 1.442695
    %v2950 = vpow.pop %v2949
    %v2951 = vmul.f32 %v2935, 1.442695
    %v2952 = vpow.pop %v2951
    %v2953 = vmul.f32 %v2936, 1.442695
    %v2954 = vpow.pop %v2953
    %v2955 = vmul.f32 %v2937, 1.442695
    %v2956 = vpow.pop %v2955
    %v2957 = vmul.f32 %v2938, 1.442695
    %v2958 = vpow.pop %v2957
    %2969 = vset.pattern.permute.xlu0 0
    %2970 = vperm.xlu0 %2969, %v2940
    %v2971 = vpop.permute.xlu0 %2970
    %2972 = vset.pattern.permute.xlu0 0
    %2973 = vperm.xlu0 %2972, %v2942
    %v2974 = vpop.permute.xlu0 %2973
    %2975 = vset.pattern.permute.xlu0 0
    %2976 = vperm.xlu0 %2975, %v2944
    %v2977 = vpop.permute.xlu0 %2976
    %2978 = vset.pattern.permute.xlu0 0
    %2979 = vperm.xlu0 %2978, %v2946
    %v2980 = vpop.permute.xlu0 %2979
    %2981 = vset.pattern.permute.xlu0 0
    %2982 = vperm.xlu0 %2981, %v2948
    %v2983 = vpop.permute.xlu0 %2982
    %2984 = vset.pattern.permute.xlu0 0
    %2985 = vperm.xlu0 %2984, %v2950
    %v2986 = vpop.permute.xlu0 %2985
    %2987 = vset.pattern.permute.xlu0 0
    %2988 = vperm.xlu0 %2987, %v2952
    %v2989 = vpop.permute.xlu0 %2988
    %2990 = vset.pattern.permute.xlu0 0
    %2991 = vperm.xlu0 %2990, %v2954
    %v2992 = vpop.permute.xlu0 %2991
    %2993 = vset.pattern.permute.xlu0 0
    %2994 = vperm.xlu0 %2993, %v2956
    %v2995 = vpop.permute.xlu0 %2994
    %2996 = vset.pattern.permute.xlu0 0
    %2997 = vperm.xlu0 %2996, %v2958
    %v2998 = vpop.permute.xlu0 %2997
    %v2999 = vlaneseq
    %v3000 = vshrl.u32 %v2999, 7
    %v3001 = vsub.s32 %v2319, %v3000
    %v3002 = vrot.slane %v2971, %v3001
    %v3003 = vlaneseq
    %v3004 = vshrl.u32 %v3003, 7
    %v3005 = vsub.s32 %v2319, %v3004
    %v3006 = vrot.slane %v2974, %v3005
    %v3007 = vlaneseq
    %v3008 = vshrl.u32 %v3007, 7
    %v3009 = vsub.s32 %v2319, %v3008
    %v3010 = vrot.slane %v2977, %v3009
    %v3011 = vlaneseq
    %v3012 = vshrl.u32 %v3011, 7
    %v3013 = vsub.s32 %v2319, %v3012
    %v3014 = vrot.slane %v2980, %v3013
    %v3015 = vlaneseq
    %v3016 = vshrl.u32 %v3015, 7
    %v3017 = vsub.s32 %v2319, %v3016
    %v3018 = vrot.slane %v2983, %v3017
    %v3019 = vlaneseq
    %v3020 = vshrl.u32 %v3019, 7
    %v3021 = vsub.s32 %v2319, %v3020
    %v3022 = vrot.slane %v2986, %v3021
    %v3023 = vlaneseq
    %v3024 = vshrl.u32 %v3023, 7
    %v3025 = vsub.s32 %v2319, %v3024
    %v3026 = vrot.slane %v2989, %v3025
    %v3027 = vlaneseq
    %v3028 = vshrl.u32 %v3027, 7
    %v3029 = vsub.s32 %v2319, %v3028
    %v3030 = vrot.slane %v2992, %v3029
    %v3031 = vlaneseq
    %v3032 = vshrl.u32 %v3031, 7
    %v3033 = vsub.s32 %v2319, %v3032
    %v3034 = vrot.slane %v2995, %v3033
    %v3035 = vlaneseq
    %v3036 = vshrl.u32 %v3035, 7
    %v3037 = vsub.s32 %v2319, %v3036
    %v3038 = vrot.slane %v2998, %v3037
    %v3039 = vsel %vm2360, %v3006, %v3002
    %v3040 = vsel %vm2362, %v3010, %v3039
    %v3041 = vsel %vm2364, %v3014, %v3040
    %v3042 = vsel %vm2366, %v3018, %v3041
    %v3043 = vsel %vm2368, %v3022, %v3042
    %v3044 = vsel %vm2370, %v3026, %v3043
    %v3045 = vsel %vm2372, %v3030, %v3044
    %v3046 = vsel %vm2360, %v3038, %v3034
    %v3049 = vsel %vm2377, %v3045, 0.0
    %3050 = vadd.xlane.f32.xlu0 %v3049
    %v3051 = vpop.xlane.xlu0 %3050
    %v3052 = vsel %vm2381, %v3046, 0.0
    %3053 = vadd.xlane.f32.xlu0 %v3052
    %v3054 = vpop.xlane.xlu0 %3053
    %v3055 = vrcp.pop %v3051
    %v3056 = vrcp.pop %v3054
    %v3059 = vlaneseq
    %v3060 = vshrl.u32 %v3059, 7
    %v3061 = vsub.s32 0, %v3060
    %v3062 = vrot.slane %v3055, %v3061
    %v3063 = vlaneseq
    %v3064 = vshrl.u32 %v3063, 7
    %v3065 = vsub.s32 1, %v3064
    %v3066 = vrot.slane %v3055, %v3065
    %v3067 = vlaneseq
    %v3068 = vshrl.u32 %v3067, 7
    %v3069 = vsub.s32 2, %v3068
    %v3070 = vrot.slane %v3055, %v3069
    %v3071 = vlaneseq
    %v3072 = vshrl.u32 %v3071, 7
    %v3073 = vsub.s32 3, %v3072
    %v3074 = vrot.slane %v3055, %v3073
    %v3075 = vlaneseq
    %v3076 = vshrl.u32 %v3075, 7
    %v3077 = vsub.s32 4, %v3076
    %v3078 = vrot.slane %v3055, %v3077
    %v3079 = vlaneseq
    %v3080 = vshrl.u32 %v3079, 7
    %v3081 = vsub.s32 5, %v3080
    %v3082 = vrot.slane %v3055, %v3081
    %v3083 = vlaneseq
    %v3084 = vshrl.u32 %v3083, 7
    %v3085 = vsub.s32 6, %v3084
    %v3086 = vrot.slane %v3055, %v3085
    %v3087 = vlaneseq
    %v3088 = vshrl.u32 %v3087, 7
    %v3089 = vsub.s32 7, %v3088
    %v3090 = vrot.slane %v3055, %v3089
    %v3091 = vlaneseq
    %v3092 = vshrl.u32 %v3091, 7
    %v3093 = vsub.s32 0, %v3092
    %v3094 = vrot.slane %v3056, %v3093
    %v3095 = vlaneseq
    %v3096 = vshrl.u32 %v3095, 7
    %v3097 = vsub.s32 1, %v3096
    %v3098 = vrot.slane %v3056, %v3097
    %v3109 = vmul.f32 %v2940, %v3062
    %v3110 = vmul.f32 %v2942, %v3066
    %v3111 = vmul.f32 %v2944, %v3070
    %v3112 = vmul.f32 %v2946, %v3074
    %v3113 = vmul.f32 %v2948, %v3078
    %v3114 = vmul.f32 %v2950, %v3082
    %v3115 = vmul.f32 %v2952, %v3086
    %v3116 = vmul.f32 %v2954, %v3090
    %v3117 = vmul.f32 %v2956, %v3094
    %v3118 = vmul.f32 %v2958, %v3098
    %3120 = vset.pattern.permute.xlu0 0
    %3121 = vperm.xlu0 %3120, %v3109
    %v3122 = vpop.permute.xlu0 %3121
    %3125 = vset.pattern.permute.xlu0 0
    %3126 = vperm.xlu0 %3125, %v3110
    %v3127 = vpop.permute.xlu0 %3126
    %3130 = vset.pattern.permute.xlu0 0
    %3131 = vperm.xlu0 %3130, %v3111
    %v3132 = vpop.permute.xlu0 %3131
    %3135 = vset.pattern.permute.xlu0 0
    %3136 = vperm.xlu0 %3135, %v3112
    %v3137 = vpop.permute.xlu0 %3136
    %3140 = vset.pattern.permute.xlu0 0
    %3141 = vperm.xlu0 %3140, %v3113
    %v3142 = vpop.permute.xlu0 %3141
    %3145 = vset.pattern.permute.xlu0 0
    %3146 = vperm.xlu0 %3145, %v3114
    %v3147 = vpop.permute.xlu0 %3146
    %3150 = vset.pattern.permute.xlu0 0
    %3151 = vperm.xlu0 %3150, %v3115
    %v3152 = vpop.permute.xlu0 %3151
    %3155 = vset.pattern.permute.xlu0 0
    %3156 = vperm.xlu0 %3155, %v3116
    %v3157 = vpop.permute.xlu0 %3156
    %3160 = vset.pattern.permute.xlu0 0
    %3161 = vperm.xlu0 %3160, %v3117
    %v3162 = vpop.permute.xlu0 %3161
    %3165 = vset.pattern.permute.xlu0 0
    %3166 = vperm.xlu0 %3165, %v3118
    %v3167 = vpop.permute.xlu0 %3166
    %v3169 = vmul.f32 %v3122, %v2176
    %v3170 = vmul.f32 %v3127, %v2181
    %v3171 = vmul.f32 %v3132, %v2186
    %v3172 = vmul.f32 %v3137, %v2191
    %v3173 = vmul.f32 %v3142, %v2196
    %v3174 = vmul.f32 %v3147, %v2201
    %v3175 = vmul.f32 %v3152, %v2206
    %v3176 = vmul.f32 %v3157, %v2211
    %v3177 = vmul.f32 %v3162, %v2216
    %v3178 = vmul.f32 %v3167, %v2221
    %v3179 = vsel %vm273, %v3169, 0.0
    %v3180 = vrot.slane %v3179, 4
    %v3181 = vadd.f32 %v3179, %v3180
    %v3182 = vrot.slane %v3181, 2
    %v3183 = vadd.f32 %v3181, %v3182
    %v3184 = vrot.slane %v3183, 1
    %v3185 = vadd.f32 %v3183, %v3184
    %v3186 = vsel %vm273, %v3170, 0.0
    %v3187 = vrot.slane %v3186, 4
    %v3188 = vadd.f32 %v3186, %v3187
    %v3189 = vrot.slane %v3188, 2
    %v3190 = vadd.f32 %v3188, %v3189
    %v3191 = vrot.slane %v3190, 1
    %v3192 = vadd.f32 %v3190, %v3191
    %v3193 = vsel %vm273, %v3171, 0.0
    %v3194 = vrot.slane %v3193, 4
    %v3195 = vadd.f32 %v3193, %v3194
    %v3196 = vrot.slane %v3195, 2
    %v3197 = vadd.f32 %v3195, %v3196
    %v3198 = vrot.slane %v3197, 1
    %v3199 = vadd.f32 %v3197, %v3198
    %v3200 = vsel %vm273, %v3172, 0.0
    %v3201 = vrot.slane %v3200, 4
    %v3202 = vadd.f32 %v3200, %v3201
    %v3203 = vrot.slane %v3202, 2
    %v3204 = vadd.f32 %v3202, %v3203
    %v3205 = vrot.slane %v3204, 1
    %v3206 = vadd.f32 %v3204, %v3205
    %v3207 = vsel %vm273, %v3173, 0.0
    %v3208 = vrot.slane %v3207, 4
    %v3209 = vadd.f32 %v3207, %v3208
    %v3210 = vrot.slane %v3209, 2
    %v3211 = vadd.f32 %v3209, %v3210
    %v3212 = vrot.slane %v3211, 1
    %v3213 = vadd.f32 %v3211, %v3212
    %v3214 = vsel %vm273, %v3174, 0.0
    %v3215 = vrot.slane %v3214, 4
    %v3216 = vadd.f32 %v3214, %v3215
    %v3217 = vrot.slane %v3216, 2
    %v3218 = vadd.f32 %v3216, %v3217
    %v3219 = vrot.slane %v3218, 1
    %v3220 = vadd.f32 %v3218, %v3219
    %v3221 = vsel %vm273, %v3175, 0.0
    %v3222 = vrot.slane %v3221, 4
    %v3223 = vadd.f32 %v3221, %v3222
    %v3224 = vrot.slane %v3223, 2
    %v3225 = vadd.f32 %v3223, %v3224
    %v3226 = vrot.slane %v3225, 1
    %v3227 = vadd.f32 %v3225, %v3226
    %v3228 = vsel %vm273, %v3176, 0.0
    %v3229 = vrot.slane %v3228, 4
    %v3230 = vadd.f32 %v3228, %v3229
    %v3231 = vrot.slane %v3230, 2
    %v3232 = vadd.f32 %v3230, %v3231
    %v3233 = vrot.slane %v3232, 1
    %v3234 = vadd.f32 %v3232, %v3233
    %v3235 = vsel %vm273, %v3177, 0.0
    %v3236 = vrot.slane %v3235, 4
    %v3237 = vadd.f32 %v3235, %v3236
    %v3238 = vrot.slane %v3237, 2
    %v3239 = vadd.f32 %v3237, %v3238
    %v3240 = vrot.slane %v3239, 1
    %v3241 = vadd.f32 %v3239, %v3240
    %v3242 = vsel %vm273, %v3178, 0.0
    %v3243 = vrot.slane %v3242, 4
    %v3244 = vadd.f32 %v3242, %v3243
    %v3245 = vrot.slane %v3244, 2
    %v3246 = vadd.f32 %v3244, %v3245
    %v3247 = vrot.slane %v3246, 1
    %v3248 = vadd.f32 %v3246, %v3247
    %v3249 = vld [vmem:[%s4] sm:$0xff]
    %v3250 = vld [vmem:[%s4 + $0x8] sm:$0xff]
    %v3251 = vld [vmem:[%s4 + $0x10] sm:$0xff]
    %v3252 = vld [vmem:[%s4 + $0x18] sm:$0xff]
    %s3253 = scalar_lea.vmem %s4, 32
    %v3254 = vld [vmem:[%s3253] sm:$0xff]
    %v3255 = vld [vmem:[%s3253 + $0x8] sm:$0xff]
    %v3256 = vld [vmem:[%s3253 + $0x10] sm:$0xff]
    %v3257 = vld [vmem:[%s3253 + $0x18] sm:$0xff]
    %v3268 = vsel %vm2360, %v3192, %v3185
    %v3269 = vsel %vm2362, %v3199, %v3268
    %v3270 = vsel %vm2364, %v3206, %v3269
    %v3271 = vsel %vm2366, %v3213, %v3270
    %v3272 = vsel %vm2368, %v3220, %v3271
    %v3273 = vsel %vm2370, %v3227, %v3272
    %v3274 = vsel %vm2372, %v3234, %v3273
    %v3275 = vsel %vm2360, %v3248, %v3241
    %v3276 = vsel %vm273, %v3274, 0
    %v3278 = vsel %vm273, %v3275, 0
    %3280 = vmatprep.subr.mxu0 0.0
    %3281 = vmatpush1.msra.mxu0 %v3254
    %3282 = vmatprep.subr.mxu0 0.0
    %3283 = vmatpush1.msra.mxu0 %v3255
    %3284 = vmatprep.subr.mxu0 0.0
    %3285 = vmatpush1.msra.mxu0 %v3256
    %3286 = vmatprep.subr.mxu0 0.0
    %3287 = vmatpush1.msra.mxu0 %v3257
    %3288 = vmatprep.subr.mxu0 0.0
    %3289 = vmatpush1.msra.mxu0 0.0
    %3290 = vmatprep.subr.mxu0 0.0
    %3291 = vmatpush1.msra.mxu0 0.0
    %3292 = vmatprep.subr.mxu0 0.0
    %3293 = vmatpush1.msra.mxu0 0.0
    %3294 = vmatprep.subr.mxu0 0.0
    %3295 = vmatpush1.msra.mxu0 0.0
    %3296 = vmatprep.subr.mxu0 0.0
    %3297 = vmatpush1.msra.mxu0 0.0
    %3298 = vmatprep.subr.mxu0 0.0
    %3299 = vmatpush1.msra.mxu0 0.0
    %3300 = vmatprep.subr.mxu0 0.0
    %3301 = vmatpush1.msra.mxu0 0.0
    %3302 = vmatprep.subr.mxu0 0.0
    %3303 = vmatpush1.msra.mxu0 0.0
    %3304 = vmatprep.subr.mxu0 0.0
    %3305 = vmatpush1.msra.mxu0 0.0
    %3306 = vmatprep.subr.mxu0 0.0
    %3307 = vmatpush1.msra.mxu0 0.0
    %3308 = vmatprep.subr.mxu0 0.0
    %3309 = vmatpush1.msra.mxu0 0.0
    %3310 = vmatprep.subr.mxu0 0.0
    %3311 = vmatpush1.msra.mxu0 0.0
    %3312 = vmatprep.subr.mxu0 0.0
    %3313 = vmatpush1.msra.mxu0 0.0
    %3314 = vmatprep.subr.mxu0 0.0
    %3315 = vmatpush1.msra.mxu0 0.0
    %3316 = vmatprep.subr.mxu0 0.0
    %3317 = vmatpush1.msra.mxu0 0.0
    %3318 = vmatprep.subr.mxu0 0.0
    %3319 = vmatpush1.msra.mxu0 0.0
    %3320 = vmatprep.subr.mxu0 0.0
    %3321 = vmatpush1.msra.mxu0 0.0
    %3322 = vmatprep.subr.mxu0 0.0
    %3323 = vmatpush1.msra.mxu0 0.0
    %3324 = vmatprep.subr.mxu0 0.0
    %3325 = vmatpush1.msra.mxu0 0.0
    %3326 = vmatprep.subr.mxu0 0.0
    %3327 = vmatpush1.msra.mxu0 0.0
    %3328 = vmatprep.subr.mxu0 0.0
    %3329 = vmatpush1.msra.mxu0 0.0
    %3330 = vmatprep.subr.mxu0 0.0
    %3331 = vmatpush1.msra.mxu0 0.0
    %3332 = vmatprep.subr.mxu0 0.0
    %3333 = vmatpush1.msra.mxu0 0.0
    %3334 = vmatprep.subr.mxu0 0.0
    %3335 = vmatpush1.msra.mxu0 0.0
    %3336 = vmatprep.subr.mxu0 0.0
    %3337 = vmatpush1.msra.mxu0 0.0
    %3338 = vmatprep.subr.mxu0 0.0
    %3339 = vmatpush1.msra.mxu0 0.0
    %3340 = vmatprep.subr.mxu0 0.0
    %3341 = vmatpush1.msra.mxu0 0.0
    %3342 = vmatprep.subr.mxu0 0.0
    %3343 = vmatpush1.msra.mxu0 0.0
    %3344 = vmatprep.mubr.f32.mxu0 0.0
    %3345 = vmatmul.mubr.f32.gmra.mrb[0].mxu0 %v3276
    %v3346 = vpop.f32.mrb[0].mxu0
    %v3347 = vadd.f32 0.0, %v3346
    %v3348 = vpop.f32.mrb[0].mxu0
    %3349 = vmatprep.mubr.f32.mxu0 0.0
    %3350 = vmatmul.mubr.f32.gmra.mrb[0].mxu0 %v3278
    %v3351 = vpop.f32.mrb[0].mxu0
    %v3352 = vadd.f32 0.0, %v3351
    %v3353 = vpop.f32.mrb[0].mxu0
    %3354 = vdwg.mxu0
    %v3365 = vsel %vm2360, %v2700, %v2693
    %v3366 = vsel %vm2362, %v2707, %v3365
    %v3367 = vsel %vm2364, %v2714, %v3366
    %v3368 = vsel %vm2366, %v2721, %v3367
    %v3369 = vsel %vm2368, %v2728, %v3368
    %v3370 = vsel %vm2370, %v2735, %v3369
    %v3371 = vsel %vm2372, %v2742, %v3370
    %v3372 = vsel %vm2360, %v2756, %v2749
    %v3373 = vsel %vm273, %v3371, 0
    %v3375 = vsel %vm273, %v3372, 0
    %3377 = vmatprep.subr.mxu0 0.0
    %3378 = vmatpush1.msra.mxu0 %v3249
    %3379 = vmatprep.subr.mxu0 0.0
    %3380 = vmatpush1.msra.mxu0 %v3250
    %3381 = vmatprep.subr.mxu0 0.0
    %3382 = vmatpush1.msra.mxu0 %v3251
    %3383 = vmatprep.subr.mxu0 0.0
    %3384 = vmatpush1.msra.mxu0 %v3252
    %3385 = vmatprep.subr.mxu0 0.0
    %3386 = vmatpush1.msra.mxu0 0.0
    %3387 = vmatprep.subr.mxu0 0.0
    %3388 = vmatpush1.msra.mxu0 0.0
    %3389 = vmatprep.subr.mxu0 0.0
    %3390 = vmatpush1.msra.mxu0 0.0
    %3391 = vmatprep.subr.mxu0 0.0
    %3392 = vmatpush1.msra.mxu0 0.0
    %3393 = vmatprep.subr.mxu0 0.0
    %3394 = vmatpush1.msra.mxu0 0.0
    %3395 = vmatprep.subr.mxu0 0.0
    %3396 = vmatpush1.msra.mxu0 0.0
    %3397 = vmatprep.subr.mxu0 0.0
    %3398 = vmatpush1.msra.mxu0 0.0
    %3399 = vmatprep.subr.mxu0 0.0
    %3400 = vmatpush1.msra.mxu0 0.0
    %3401 = vmatprep.subr.mxu0 0.0
    %3402 = vmatpush1.msra.mxu0 0.0
    %3403 = vmatprep.subr.mxu0 0.0
    %3404 = vmatpush1.msra.mxu0 0.0
    %3405 = vmatprep.subr.mxu0 0.0
    %3406 = vmatpush1.msra.mxu0 0.0
    %3407 = vmatprep.subr.mxu0 0.0
    %3408 = vmatpush1.msra.mxu0 0.0
    %3409 = vmatprep.subr.mxu0 0.0
    %3410 = vmatpush1.msra.mxu0 0.0
    %3411 = vmatprep.subr.mxu0 0.0
    %3412 = vmatpush1.msra.mxu0 0.0
    %3413 = vmatprep.subr.mxu0 0.0
    %3414 = vmatpush1.msra.mxu0 0.0
    %3415 = vmatprep.subr.mxu0 0.0
    %3416 = vmatpush1.msra.mxu0 0.0
    %3417 = vmatprep.subr.mxu0 0.0
    %3418 = vmatpush1.msra.mxu0 0.0
    %3419 = vmatprep.subr.mxu0 0.0
    %3420 = vmatpush1.msra.mxu0 0.0
    %3421 = vmatprep.subr.mxu0 0.0
    %3422 = vmatpush1.msra.mxu0 0.0
    %3423 = vmatprep.subr.mxu0 0.0
    %3424 = vmatpush1.msra.mxu0 0.0
    %3425 = vmatprep.subr.mxu0 0.0
    %3426 = vmatpush1.msra.mxu0 0.0
    %3427 = vmatprep.subr.mxu0 0.0
    %3428 = vmatpush1.msra.mxu0 0.0
    %3429 = vmatprep.subr.mxu0 0.0
    %3430 = vmatpush1.msra.mxu0 0.0
    %3431 = vmatprep.subr.mxu0 0.0
    %3432 = vmatpush1.msra.mxu0 0.0
    %3433 = vmatprep.subr.mxu0 0.0
    %3434 = vmatpush1.msra.mxu0 0.0
    %3435 = vmatprep.subr.mxu0 0.0
    %3436 = vmatpush1.msra.mxu0 0.0
    %3437 = vmatprep.subr.mxu0 0.0
    %3438 = vmatpush1.msra.mxu0 0.0
    %3439 = vmatprep.subr.mxu0 0.0
    %3440 = vmatpush1.msra.mxu0 0.0
    %3441 = vmatprep.mubr.f32.mxu0 0.0
    %3442 = vmatmul.mubr.f32.gmra.mrb[0].mxu0 %v3373
    %v3443 = vpop.f32.mrb[0].mxu0
    %v3444 = vadd.f32 %v3347, %v3443
    %v3445 = vpop.f32.mrb[0].mxu0
    %3446 = vmatprep.mubr.f32.mxu0 0.0
    %3447 = vmatmul.mubr.f32.gmra.mrb[0].mxu0 %v3375
    %v3448 = vpop.f32.mrb[0].mxu0
    %v3449 = vadd.f32 %v3352, %v3448
    %v3450 = vpop.f32.mrb[0].mxu0
    %3451 = vdwg.mxu0
    %v3452 = vlaneseq
    %v3453 = vshrl.u32 %v3452, 7
    %v3454 = vsub.s32 3, %v3453
    %v3455 = vrot.slane %v32, %v3454
    %v3456 = vadd.f32 %v3444, %v3455
    %v3457 = vadd.f32 %v3449, %v3455
    %v3458 = vxor.u32 %v3456, 2147483648
    %v3459 = vxor.u32 %v3457, 2147483648
    %v3460 = vmul.f32 %v3458, 1.442695
    %v3461 = vpow.pop %v3460
    %v3462 = vmul.f32 %v3459, 1.442695
    %v3463 = vpow.pop %v3462
    %v3464 = vadd.f32 %v3461, 1.0
    %v3465 = vadd.f32 %v3463, 1.0
    %v3466 = vrcp.pop %v3464
    %v3467 = vmul.f32 1.0, %v3466
    %v3468 = vrcp.pop %v3465
    %v3469 = vmul.f32 1.0, %v3468
    %v3472 = vmul.f32 %v3467, %v3371
    %v3473 = vmul.f32 %v3469, %v3372
    %3474 = vrot.lane.b32.xlu0 %v3274, 32
    %v3475 = vpop.permute.xlu0 %3474
    %3476 = vrot.lane.b32.xlu0 %v3275, 32
    %v3477 = vpop.permute.xlu0 %3476
    %v3480 = vmul.f32 %v3467, %v3475
    %v3481 = vmul.f32 %v3469, %v3477
    %v3483 = vrot.slane %v32, 4
    %3484 = vrot.lane.b32.xlu0 %v3483, 96
    %v3485 = vpop.permute.xlu0 %3484
    %3488 = vrot.lane.b32.xlu0 %v3480, 96
    %v3489 = vpop.permute.xlu0 %3488
    %3490 = vrot.lane.b32.xlu0 %v3481, 96
    %v3491 = vpop.permute.xlu0 %3490
    %v3492 = vsel %vm273, %v3485, 0
    %v3494 = vsel %vm273, %v3489, 0
    %v3496 = vsel %vm273, %v3491, 0
    %3498 = vmatprep.subr.mxu0 0.0
    %3499 = vmatpush1.xpose.msra.mxu0 %v3494
    %3500 = vmatprep.subr.mxu0 0.0
    %3501 = vmatpush1.xpose.msra.mxu0 %v3496
    %3502 = vmatprep.subr.mxu0 0.0
    %3503 = vmatpush1.xpose.msra.mxu0 0.0
    %3504 = vmatprep.subr.mxu0 0.0
    %3505 = vmatpush1.xpose.msra.mxu0 0.0
    %3506 = vmatprep.subr.mxu0 0.0
    %3507 = vmatpush1.xpose.msra.mxu0 0.0
    %3508 = vmatprep.subr.mxu0 0.0
    %3509 = vmatpush1.xpose.msra.mxu0 0.0
    %3510 = vmatprep.subr.mxu0 0.0
    %3511 = vmatpush1.xpose.msra.mxu0 0.0
    %3512 = vmatprep.subr.mxu0 0.0
    %3513 = vmatpush1.xpose.msra.mxu0 0.0
    %3514 = vmatprep.subr.mxu0 0.0
    %3515 = vmatpush1.xpose.msra.mxu0 0.0
    %3516 = vmatprep.subr.mxu0 0.0
    %3517 = vmatpush1.xpose.msra.mxu0 0.0
    %3518 = vmatprep.subr.mxu0 0.0
    %3519 = vmatpush1.xpose.msra.mxu0 0.0
    %3520 = vmatprep.subr.mxu0 0.0
    %3521 = vmatpush1.xpose.msra.mxu0 0.0
    %3522 = vmatprep.subr.mxu0 0.0
    %3523 = vmatpush1.xpose.msra.mxu0 0.0
    %3524 = vmatprep.subr.mxu0 0.0
    %3525 = vmatpush1.xpose.msra.mxu0 0.0
    %3526 = vmatprep.subr.mxu0 0.0
    %3527 = vmatpush1.xpose.msra.mxu0 0.0
    %3528 = vmatprep.subr.mxu0 0.0
    %3529 = vmatpush1.xpose.msra.mxu0 0.0
    %3530 = vmatprep.subr.mxu0 0.0
    %3531 = vmatpush1.xpose.msra.mxu0 0.0
    %3532 = vmatprep.subr.mxu0 0.0
    %3533 = vmatpush1.xpose.msra.mxu0 0.0
    %3534 = vmatprep.subr.mxu0 0.0
    %3535 = vmatpush1.xpose.msra.mxu0 0.0
    %3536 = vmatprep.subr.mxu0 0.0
    %3537 = vmatpush1.xpose.msra.mxu0 0.0
    %3538 = vmatprep.subr.mxu0 0.0
    %3539 = vmatpush1.xpose.msra.mxu0 0.0
    %3540 = vmatprep.subr.mxu0 0.0
    %3541 = vmatpush1.xpose.msra.mxu0 0.0
    %3542 = vmatprep.subr.mxu0 0.0
    %3543 = vmatpush1.xpose.msra.mxu0 0.0
    %3544 = vmatprep.subr.mxu0 0.0
    %3545 = vmatpush1.xpose.msra.mxu0 0.0
    %3546 = vmatprep.subr.mxu0 0.0
    %3547 = vmatpush1.xpose.msra.mxu0 0.0
    %3548 = vmatprep.subr.mxu0 0.0
    %3549 = vmatpush1.xpose.msra.mxu0 0.0
    %3550 = vmatprep.subr.mxu0 0.0
    %3551 = vmatpush1.xpose.msra.mxu0 0.0
    %3552 = vmatprep.subr.mxu0 0.0
    %3553 = vmatpush1.xpose.msra.mxu0 0.0
    %3554 = vmatprep.subr.mxu0 0.0
    %3555 = vmatpush1.xpose.msra.mxu0 0.0
    %3556 = vmatprep.subr.mxu0 0.0
    %3557 = vmatpush1.xpose.msra.mxu0 0.0
    %3558 = vmatprep.subr.mxu0 0.0
    %3559 = vmatpush1.xpose.msra.mxu0 0.0
    %3560 = vmatprep.subr.mxu0 0.0
    %3561 = vmatpush1.xpose.msra.mxu0 0.0
    %3562 = vmatprep.mubr.f32.mxu0 0.0
    %3563 = vmatmul.mubr.f32.gmra.mrb[0].mxu0 %v3492
    %v3564 = vpop.f32.mrb[0].mxu0
    %v3565 = vadd.f32 0.0, %v3564
    %v3566 = vpop.f32.mrb[0].mxu0
    %3567 = vdwg.mxu0
    %v3568 = vsel %vm273, %v3483, 0
    %v3571 = vsel %vm273, %v3472, 0
    %v3574 = vsel %vm273, %v3473, 0
    %3576 = vmatprep.subr.mxu0 0.0
    %3577 = vmatpush1.xpose.msra.mxu0 %v3571
    %3578 = vmatprep.subr.mxu0 0.0
    %3579 = vmatpush1.xpose.msra.mxu0 %v3574
    %3580 = vmatprep.subr.mxu0 0.0
    %3581 = vmatpush1.xpose.msra.mxu0 0.0
    %3582 = vmatprep.subr.mxu0 0.0
    %3583 = vmatpush1.xpose.msra.mxu0 0.0
    %3584 = vmatprep.subr.mxu0 0.0
    %3585 = vmatpush1.xpose.msra.mxu0 0.0
    %3586 = vmatprep.subr.mxu0 0.0
    %3587 = vmatpush1.xpose.msra.mxu0 0.0
    %3588 = vmatprep.subr.mxu0 0.0
    %3589 = vmatpush1.xpose.msra.mxu0 0.0
    %3590 = vmatprep.subr.mxu0 0.0
    %3591 = vmatpush1.xpose.msra.mxu0 0.0
    %3592 = vmatprep.subr.mxu0 0.0
    %3593 = vmatpush1.xpose.msra.mxu0 0.0
    %3594 = vmatprep.subr.mxu0 0.0
    %3595 = vmatpush1.xpose.msra.mxu0 0.0
    %3596 = vmatprep.subr.mxu0 0.0
    %3597 = vmatpush1.xpose.msra.mxu0 0.0
    %3598 = vmatprep.subr.mxu0 0.0
    %3599 = vmatpush1.xpose.msra.mxu0 0.0
    %3600 = vmatprep.subr.mxu0 0.0
    %3601 = vmatpush1.xpose.msra.mxu0 0.0
    %3602 = vmatprep.subr.mxu0 0.0
    %3603 = vmatpush1.xpose.msra.mxu0 0.0
    %3604 = vmatprep.subr.mxu0 0.0
    %3605 = vmatpush1.xpose.msra.mxu0 0.0
    %3606 = vmatprep.subr.mxu0 0.0
    %3607 = vmatpush1.xpose.msra.mxu0 0.0
    %3608 = vmatprep.subr.mxu0 0.0
    %3609 = vmatpush1.xpose.msra.mxu0 0.0
    %3610 = vmatprep.subr.mxu0 0.0
    %3611 = vmatpush1.xpose.msra.mxu0 0.0
    %3612 = vmatprep.subr.mxu0 0.0
    %3613 = vmatpush1.xpose.msra.mxu0 0.0
    %3614 = vmatprep.subr.mxu0 0.0
    %3615 = vmatpush1.xpose.msra.mxu0 0.0
    %3616 = vmatprep.subr.mxu0 0.0
    %3617 = vmatpush1.xpose.msra.mxu0 0.0
    %3618 = vmatprep.subr.mxu0 0.0
    %3619 = vmatpush1.xpose.msra.mxu0 0.0
    %3620 = vmatprep.subr.mxu0 0.0
    %3621 = vmatpush1.xpose.msra.mxu0 0.0
    %3622 = vmatprep.subr.mxu0 0.0
    %3623 = vmatpush1.xpose.msra.mxu0 0.0
    %3624 = vmatprep.subr.mxu0 0.0
    %3625 = vmatpush1.xpose.msra.mxu0 0.0
    %3626 = vmatprep.subr.mxu0 0.0
    %3627 = vmatpush1.xpose.msra.mxu0 0.0
    %3628 = vmatprep.subr.mxu0 0.0
    %3629 = vmatpush1.xpose.msra.mxu0 0.0
    %3630 = vmatprep.subr.mxu0 0.0
    %3631 = vmatpush1.xpose.msra.mxu0 0.0
    %3632 = vmatprep.subr.mxu0 0.0
    %3633 = vmatpush1.xpose.msra.mxu0 0.0
    %3634 = vmatprep.subr.mxu0 0.0
    %3635 = vmatpush1.xpose.msra.mxu0 0.0
    %3636 = vmatprep.subr.mxu0 0.0
    %3637 = vmatpush1.xpose.msra.mxu0 0.0
    %3638 = vmatprep.subr.mxu0 0.0
    %3639 = vmatpush1.xpose.msra.mxu0 0.0
    %3640 = vmatprep.mubr.f32.mxu0 0.0
    %3641 = vmatmul.mubr.f32.gmra.mrb[0].mxu0 %v3568
    %v3642 = vpop.f32.mrb[0].mxu0
    %v3643 = vadd.f32 %v3565, %v3642
    %v3644 = vpop.f32.mrb[0].mxu0
    %3645 = vdwg.mxu0
    %3646 = vset.pattern.permute.xlu0 0
    %3647 = vperm.xlu0 %3646, %v32
    %v3648 = vpop.permute.xlu0 %3647
    %v3649 = vrot.slane %v3648, 5
    %v3651 = vadd.f32 %v3643, %v3649
    %vm3652 = vcmask 73728
    %3653 = vst.msk [vmem:[%s8] sm:$0x1] %vm3652, %v3651
    %v3654 = vsel %vm604, %v2244, 0.0
    %v3655 = vsel %vm604, %v2245, 0.0
    %v3656 = vadd.f32 %v3654, %v3655
    %v3657 = vsel %vm604, %v2246, 0.0
    %v3658 = vadd.f32 %v3656, %v3657
    %v3659 = vsel %vm604, %v2247, 0.0
    %v3660 = vadd.f32 %v3658, %v3659
    %v3661 = vsel %vm604, %v2248, 0.0
    %v3662 = vadd.f32 %v3660, %v3661
    %v3663 = vsel %vm604, %v2249, 0.0
    %v3664 = vadd.f32 %v3662, %v3663
    %v3665 = vsel %vm604, %v2250, 0.0
    %v3666 = vadd.f32 %v3664, %v3665
    %v3667 = vsel %vm604, %v2251, 0.0
    %v3668 = vadd.f32 %v3666, %v3667
    %v3669 = vsel %vm604, %v2252, 0.0
    %v3670 = vadd.f32 %v3668, %v3669
    %v3671 = vsel %vm604, %v2253, 0.0
    %v3672 = vadd.f32 %v3670, %v3671
    %3673 = vadd.xlane.f32.xlu0 %v3672
    %v3674 = vpop.xlane.xlu0 %3673
    %v3675 = vrot.slane %v3674, 4
    %v3676 = vadd.f32 %v3674, %v3675
    %v3677 = vrot.slane %v3676, 2
    %v3678 = vadd.f32 %v3676, %v3677
    %v3679 = vrot.slane %v3678, 1
    %v3680 = vadd.f32 %v3678, %v3679
    %s3681 = vtos %v3680
    %s3682 = smul.f32 %s3681, 0.0015625
    %v3683 = vstv %s3682
    %vm3684 = vcmask 0
    %3685 = vst.msk [vmem:[#allocation2] sm:$0x1] %vm3684, %v3683
    // Predicated region
    $region34: #{trans_model_forward.1} parent=1 // pred_check
      _
    $region35: #{trans_model_forward.1} parent=1 // pred_check_branch
      %3687 = sbr.rel (0) target = $region37
    $region36: #{trans_model_forward.1} parent=1 // pred_region
      _
    $region37: #{trans_model_forward.1} parent=1 // pred_fallthru
      _
    // Predicated region
    $region38: #{trans_model_forward.1} parent=1 // pred_check
      _
    $region39: #{trans_model_forward.1} parent=1 // pred_check_branch
      %3689 = sbr.rel (0) target = $region41
    $region40: #{trans_model_forward.1} parent=1 // pred_region
      %s3691 = ssub.s32 16, 16
      %3692 = vsyncadd [#allocation3], %s3691
      %s3694 = sshll.u32 [#allocation2], 4
      %s3695 = int_to_ptr.vmem [resolvable:$true] %s3694
      %3697 = dma.vmem_to_hbm [thread:$0]  %s3695, 16, %s9, [#allocation3]
    $region41: #{trans_model_forward.1} parent=1 // pred_fallthru
      _
    // Predicated region
    $region42: #{trans_model_forward.1} parent=1 // pred_check
      _
    $region43: #{trans_model_forward.1} parent=1 // pred_check_branch
      %3699 = sbr.rel (0) target = $region45
    $region44: #{trans_model_forward.1} parent=1 // pred_region
      _
    $region45: #{trans_model_forward.1} parent=1 // pred_fallthru
      _
    // Predicated region
    $region46: #{trans_model_forward.1} parent=1 // pred_check
      _
    $region47: #{trans_model_forward.1} parent=1 // pred_check_branch
      %3701 = sbr.rel (0) target = $region49
    $region48: #{trans_model_forward.1} parent=1 // pred_region
      %3702 = dma.done [#allocation3], 16
    $region49: #{trans_model_forward.1} parent=1 // pred_fallthru
      _
    %3703 = vsyncpa [#allocation3], 1

</llo_original>
